<compile_context>
chip_gen: v7x
topology: tpu7x:2x2x1
jax: 0.10.0
libtpu: 0.0.40
codegen_flags: <defaults>
</compile_context>

<pallas_src>
import functools
import math

import jax
import jax.numpy as jnp
from jax.experimental import pallas as pl
from jax.experimental.pallas import tpu as pltpu


def mhsa_kernel(x_ref, wqkv_ref, bqkv_ref, wp_ref, bp_ref, gamma_ref, o_ref, *, heads):
    bt, c, n = x_ref.shape
    hd = c // heads

    # Loop-invariant loads / constants hoisted out of the per-image unroll.
    wqkv = wqkv_ref[...]                                  # (3C, C) bf16
    bqkv = bqkv_ref[...]                                  # (3C, 1) f32
    wp = wp_ref[...]                                      # (C, C)  bf16
    bp = bp_ref[...]                                      # (C, 1)  f32
    gamma = gamma_ref[0]                                  # scalar f32 (SMEM)
    ones_q = jnp.ones((heads, 1, n), jnp.bfloat16)        # row-sum lhs (hoisted)

    for b in range(bt):                                   # static unroll, bt is small
        x = x_ref[b]                                      # (C, N) f32, channels on sublanes
        xb = x.astype(jnp.bfloat16)

        # Fused Q/K/V 1x1 conv: one (3C, C) x (C, N) MXU matmul, f32 accumulate.
        # 1/sqrt(hd) is already folded into the query weights/bias in the wrapper.
        qkv = jnp.dot(wqkv, xb, preferred_element_type=jnp.float32) + bqkv   # (3C, N)
        qkv_b = qkv.astype(jnp.bfloat16)                  # one lane-dense slab cast

        # Head split (channel = h*hd + d), matching torch's view(B, heads, hd, H, W).
        q = qkv_b[:c].reshape(heads, hd, n)
        k = qkv_b[c:2 * c].reshape(heads, hd, n)
        v = qkv_b[2 * c:].reshape(heads, hd, n)

        # Scores: s[h,i,j] = sum_d q[h,d,i] * k[h,d,j]; contraction on d of BOTH
        # operands so no (N, hd) lane-sparse transpose is materialized.
        s = jnp.einsum('hdi,hdj->hij', q, k,
                       preferred_element_type=jnp.float32)          # (h, N, N) f32

        # Numerically stable softmax numerator only; normalization is deferred.
        p = jnp.exp(s - jnp.max(s, axis=-1, keepdims=True))         # f32, in (0, 1]
        p_b = p.astype(jnp.bfloat16)

        # out[h,d,i] = sum_j v[h,d,j] * p[h,i,j] (unnormalized), channel-major output.
        o_h = jnp.einsum('hdj,hij->hdi', v, p_b,
                         preferred_element_type=jnp.float32)        # (h, hd, N)
        # Row sums with the query index already on lanes (ones-lhs reuse of the same
        # contraction -> no XLU reduction, no layout flip); same bf16 p as numerator.
        denom = jnp.einsum('hdj,hij->hdi', ones_q, p_b,
                           preferred_element_type=jnp.float32)      # (h, 1, N)
        attn = (o_h * pl.reciprocal(denom, approx=True)).reshape(c, n)   # (C, N) f32

        # Output 1x1 conv + gamma-gated residual (residual stays f32 against raw x).
        y = jnp.dot(wp, attn.astype(jnp.bfloat16),
                    preferred_element_type=jnp.float32) + bp
        o_ref[b] = (gamma * y + x).astype(o_ref.dtype)


def _pick_bt(batch, c, heads, n, *, vmem_budget_bytes=8 << 20, max_bt=8):
    """Largest divisor of batch that fits the score budget and keeps >=2 grid steps."""
    per_image = heads * n * n * 6 + 10 * c * n            # f32+bf16 scores + qkv/attn slabs
    best = 1
    for cand in range(1, min(batch, max_bt) + 1):
        if batch % cand:
            continue
        if cand * per_image > vmem_budget_bytes:
            continue
        if batch > 1 and batch // cand < 2:
            continue                                       # keep megacore parallelism
        best = cand
    return best


def _vmem_estimate(bt, c, n, heads):
    io = 2 * 2 * bt * c * n * 4                            # x + out, double-buffered, f32
    scores = heads * n * n * 6                             # f32 scores + bf16 copy (per image)
    slabs = 5 * c * n * 6                                  # qkv + attn/y working slabs
    weights = 2 * (3 * c * c * 2 + c * c * 2 + 8 * c * 4)
    return io + scores + slabs + weights


def mhsa_forward(x_nchw, params, heads, *, bt=None):
    B, C, H, W = x_nchw.shape
    assert C % heads == 0
    N = H * W
    hd = C // heads
    scale = 1.0 / math.sqrt(hd)

    # NCHW -> (B, C, N): a free reshape, NOT a transpose.  Spatial N is the lane dim.
    x = x_nchw.reshape(B, C, N)

    # Fuse Q/K/V into one (3C, C) weight; fold the attention scale into the query proj.
    w_qkv = jnp.concatenate(
        [params["wq"] * scale, params["wk"], params["wv"]], axis=0).astype(jnp.bfloat16)
    b_qkv = jnp.concatenate(
        [params["bq"] * scale, params["bk"], params["bv"]], axis=0
    ).reshape(3 * C, 1).astype(jnp.float32)
    wp_b = params["wp"].astype(jnp.bfloat16)               # (C, C)
    bp_c = params["bp"].reshape(C, 1).astype(jnp.float32)  # (C, 1)
    gamma = params["gamma"].reshape(1).astype(jnp.float32) # (1,) scalar -> SMEM

    if bt is None:
        bt = _pick_bt(B, C, heads, N)
    assert B % bt == 0

    compiler_kwargs = {}
    est = _vmem_estimate(bt, C, N, heads)
    if est > (16 << 20):
        # Only override when the default scoped VMEM (16 MiB v5e / 32 MiB v6e,v7x) is
        # likely too small; cap below any generation's physical VMEM.
        compiler_kwargs["vmem_limit_bytes"] = int(min(est * 3 // 2, 60 << 20))

    kernel = functools.partial(mhsa_kernel, heads=heads)
    const2d = lambda i: (0, 0)
    out = pl.pallas_call(
        kernel,
        out_shape=jax.ShapeDtypeStruct((B, C, N), x.dtype),
        grid_spec=pltpu.PrefetchScalarGridSpec(
            num_scalar_prefetch=0,
            grid=(B // bt,),
            in_specs=[
                pl.BlockSpec((bt, C, N), lambda i: (i, 0, 0)),       # x (lane-dense)
                pl.BlockSpec((3 * C, C), const2d),                   # fused QKV weight (bf16)
                pl.BlockSpec((3 * C, 1), const2d),                   # fused QKV bias (f32)
                pl.BlockSpec((C, C), const2d),                       # proj weight (bf16)
                pl.BlockSpec((C, 1), const2d),                       # proj bias (f32)
                pl.BlockSpec(memory_space=pltpu.MemorySpace.SMEM),   # gamma scalar
            ],
            out_specs=pl.BlockSpec((bt, C, N), lambda i: (i, 0, 0)),
        ),
        compiler_params=pltpu.CompilerParams(
            dimension_semantics=("parallel",), **compiler_kwargs),
    )(x, w_qkv, b_qkv, wp_b, bp_c, gamma)
    # (B, C, N) -> NCHW: free reshape, no transpose.
    return out.reshape(B, C, H, W)


def ref_forward(x, params, heads):
    """Pure-JAX f32 reference mirroring the PyTorch forward (NCHW)."""
    B, C, H, W = x.shape
    hd = C // heads

    def conv1x1(t, w, b):
        return jnp.einsum('oc,bchw->bohw', w, t) + b[None, :, None, None]

    q = conv1x1(x, params["wq"], params["bq"]).reshape(B, heads, hd, H * W)
    k = conv1x1(x, params["wk"], params["bk"]).reshape(B, heads, hd, H * W)
    v = conv1x1(x, params["wv"], params["bv"]).reshape(B, heads, hd, H * W)
    attn = jax.nn.softmax(
        jnp.einsum('bhdi,bhdj->bhij', q, k) / math.sqrt(hd), axis=-1)
    out = jnp.einsum('bhij,bhdj->bhid', attn, v)              # (B, heads, N, hd)
    out = out.transpose(0, 1, 3, 2).reshape(B, C, H, W)
    out = conv1x1(out, params["wp"], params["bp"])
    return params["gamma"][0] * out + x


def init_params(key, C):
    ks = jax.random.split(key, 8)
    std = 1.0 / math.sqrt(C)
    p = {}
    for i, name in enumerate(("q", "k", "v", "p")):
        p[f"w{name}"] = jax.random.uniform(ks[2 * i], (C, C), jnp.float32, -std, std)
        p[f"b{name}"] = jax.random.uniform(ks[2 * i + 1], (C,), jnp.float32, -std, std)
    # nn.Parameter(torch.zeros(1)) in the module; set nonzero so the attention path
    # actually contributes to the output in this synthetic test.
    p["gamma"] = jnp.array([0.5], dtype=jnp.float32)
    return p


if __name__ == "__main__":
    # B=4 so bt=2 images per grid step AND 2 parallel grid steps are both exercised.
    B, C, H, W, HEADS = 4, 32, 16, 16, 4        # N = H*W = 256 (lane-dense, 256-aligned)
    key = jax.random.PRNGKey(0)
    kx, kp = jax.random.split(key)
    x = jax.random.normal(kx, (B, C, H, W), dtype=jnp.float32)
    params = init_params(kp, C)

    out = mhsa_forward(x, params, HEADS)
    out = jax.block_until_ready(out)

    ref = ref_forward(x, params, HEADS)
    assert out.shape == (B, C, H, W)
    max_err = float(jnp.max(jnp.abs(out - ref)))
    # bf16 matmul operands + approx reciprocal + bf16 softmax weights -> loosened
    # tolerance (accumulation stays f32).
    assert bool(jnp.allclose(out, ref, atol=2e-2, rtol=2e-2)), (
        f"mismatch vs reference (max abs err {max_err})")
    print("KERNEL_OK")
</pallas_src>

<mosaic_0001>
module attributes {stable_mosaic.version = 11 : i64} {
  func.func @mhsa_kernel(%arg0: i32, %arg1: memref<2x32x256xf32, #tpu.memory_space<vmem>>, %arg2: memref<96x32xbf16, #tpu.memory_space<vmem>>, %arg3: memref<96x1xf32, #tpu.memory_space<vmem>>, %arg4: memref<32x32xbf16, #tpu.memory_space<vmem>>, %arg5: memref<32x1xf32, #tpu.memory_space<vmem>>, %arg6: memref<1xf32, #tpu.memory_space<smem>>, %arg7: memref<2x32x256xf32, #tpu.memory_space<vmem>>) attributes {dimension_semantics = [#tpu.dimension_semantics<parallel>], iteration_bounds = array<i64: 2>, scalar_prefetch = 0 : i64, scratch_operands = 0 : i64, tpu.core_type = #tpu.core_type<tc>, window_params = [{transform_indices = @transform_0, window_bounds = array<i64: 2, 32, 256>}, {pipeline_mode = #tpu.pipeline_mode<synchronous>, transform_indices = @transform_1, window_bounds = array<i64: 96, 32>}, {pipeline_mode = #tpu.pipeline_mode<synchronous>, transform_indices = @transform_2, window_bounds = array<i64: 96, 1>}, {pipeline_mode = #tpu.pipeline_mode<synchronous>, transform_indices = @transform_3, window_bounds = array<i64: 32, 32>}, {pipeline_mode = #tpu.pipeline_mode<synchronous>, transform_indices = @transform_4, window_bounds = array<i64: 32, 1>}, {transform_indices = @transform_5, window_bounds = array<i64: 1>}, {transform_indices = @transform_6, window_bounds = array<i64: 2, 32, 256>}]} {
    %c0 = arith.constant 0 : index
    %c0_0 = arith.constant 0 : index
    %0 = vector.load %arg2[%c0, %c0_0] : memref<96x32xbf16, #tpu.memory_space<vmem>>, vector<96x32xbf16>
    %c0_1 = arith.constant 0 : index
    %c0_2 = arith.constant 0 : index
    %1 = vector.load %arg3[%c0_1, %c0_2] : memref<96x1xf32, #tpu.memory_space<vmem>>, vector<96x1xf32>
    %c0_3 = arith.constant 0 : index
    %c0_4 = arith.constant 0 : index
    %2 = vector.load %arg4[%c0_3, %c0_4] : memref<32x32xbf16, #tpu.memory_space<vmem>>, vector<32x32xbf16>
    %c0_5 = arith.constant 0 : index
    %c0_6 = arith.constant 0 : index
    %3 = vector.load %arg5[%c0_5, %c0_6] : memref<32x1xf32, #tpu.memory_space<vmem>>, vector<32x1xf32>
    %c0_7 = arith.constant 0 : index
    %4 = memref.load %arg6[%c0_7] : memref<1xf32, #tpu.memory_space<smem>>
    %cst = arith.constant 1.000000e+00 : bf16
    %5 = vector.broadcast %cst : bf16 to vector<4x1x256xbf16>
    %c0_8 = arith.constant 0 : index
    %c0_9 = arith.constant 0 : index
    %c0_10 = arith.constant 0 : index
    %6 = vector.load %arg1[%c0_8, %c0_9, %c0_10] : memref<2x32x256xf32, #tpu.memory_space<vmem>>, vector<1x32x256xf32>
    %7 = vector.shape_cast %6 : vector<1x32x256xf32> to vector<32x256xf32>
    %8 = arith.truncf %7 : vector<32x256xf32> to vector<32x256xbf16>
    %cst_11 = arith.constant dense<0.000000e+00> : vector<96x256xf32>
    %9 = tpu.matmul %0, %8, %cst_11 {dimension_numbers = #tpu.dot_dimension_numbers<[1], [0], [0], [1], [0, 0, 1, 1], [], []>} : vector<96x32xbf16>, vector<32x256xbf16>, vector<96x256xf32> -> vector<96x256xf32>
    %10 = vector.broadcast %1 : vector<96x1xf32> to vector<96x256xf32>
    %11 = arith.addf %9, %10 : vector<96x256xf32>
    %12 = arith.truncf %11 : vector<96x256xf32> to vector<96x256xbf16>
    %13 = vector.extract_strided_slice %12 {offsets = [0, 0], sizes = [32, 256], strides = [1, 1]} : vector<96x256xbf16> to vector<32x256xbf16>
    %14 = vector.shape_cast %13 : vector<32x256xbf16> to vector<4x8x256xbf16>
    %15 = vector.extract_strided_slice %12 {offsets = [32, 0], sizes = [32, 256], strides = [1, 1]} : vector<96x256xbf16> to vector<32x256xbf16>
    %16 = vector.shape_cast %15 : vector<32x256xbf16> to vector<4x8x256xbf16>
    %17 = vector.extract_strided_slice %12 {offsets = [64, 0], sizes = [32, 256], strides = [1, 1]} : vector<96x256xbf16> to vector<32x256xbf16>
    %18 = vector.shape_cast %17 : vector<32x256xbf16> to vector<4x8x256xbf16>
    "tpu.trace_start"() <{level = 10 : i32, message = "hdi,hdj->hij"}> : () -> ()
    %cst_12 = arith.constant dense<0.000000e+00> : vector<4x256x256xf32>
    %19 = tpu.matmul %14, %16, %cst_12 {dimension_numbers = #tpu.dot_dimension_numbers<[1], [1], [2], [2], [0, 0, 0, 2, 1, 2], [0], [0]>} : vector<4x8x256xbf16>, vector<4x8x256xbf16>, vector<4x256x256xf32> -> vector<4x256x256xf32>
    "tpu.trace_stop"() : () -> ()
    %cst_13 = arith.constant dense<0xFF800000> : vector<4x256xf32>
    %20 = vector.multi_reduction <maximumf>, %19, %cst_13 [2] : vector<4x256x256xf32> to vector<4x256xf32>
    %21 = vector.shape_cast %20 : vector<4x256xf32> to vector<4x256x1xf32>
    %22 = vector.broadcast %21 : vector<4x256x1xf32> to vector<4x256x256xf32>
    %23 = arith.subf %19, %22 : vector<4x256x256xf32>
    %24 = math.exp %23 : vector<4x256x256xf32>
    %25 = arith.truncf %24 : vector<4x256x256xf32> to vector<4x256x256xbf16>
    "tpu.trace_start"() <{level = 10 : i32, message = "hdj,hij->hdi"}> : () -> ()
    %cst_14 = arith.constant dense<0.000000e+00> : vector<4x8x256xf32>
    %26 = tpu.matmul %18, %25, %cst_14 {dimension_numbers = #tpu.dot_dimension_numbers<[2], [2], [1], [1], [0, 0, 0, 1, 1, 1], [0], [0]>} : vector<4x8x256xbf16>, vector<4x256x256xbf16>, vector<4x8x256xf32> -> vector<4x8x256xf32>
    %cst_15 = arith.constant dense<0.000000e+00> : vector<4x1x256xf32>
    %27 = tpu.matmul %5, %25, %cst_15 {dimension_numbers = #tpu.dot_dimension_numbers<[2], [2], [1], [1], [0, 0, 0, 1, 1, 1], [0], [0]>} : vector<4x1x256xbf16>, vector<4x256x256xbf16>, vector<4x1x256xf32> -> vector<4x1x256xf32>
    "tpu.trace_stop"() : () -> ()
    %28 = tpu.reciprocal %27 {approx = true} : vector<4x1x256xf32> -> vector<4x1x256xf32>
    %29 = vector.broadcast %28 : vector<4x1x256xf32> to vector<4x8x256xf32>
    %30 = arith.mulf %26, %29 : vector<4x8x256xf32>
    %31 = vector.shape_cast %30 : vector<4x8x256xf32> to vector<32x256xf32>
    %32 = arith.truncf %31 : vector<32x256xf32> to vector<32x256xbf16>
    %cst_16 = arith.constant dense<0.000000e+00> : vector<32x256xf32>
    %33 = tpu.matmul %2, %32, %cst_16 {dimension_numbers = #tpu.dot_dimension_numbers<[1], [0], [0], [1], [0, 0, 1, 1], [], []>} : vector<32x32xbf16>, vector<32x256xbf16>, vector<32x256xf32> -> vector<32x256xf32>
    %34 = vector.broadcast %3 : vector<32x1xf32> to vector<32x256xf32>
    %35 = arith.addf %33, %34 : vector<32x256xf32>
    %36 = vector.broadcast %4 : f32 to vector<32x256xf32>
    %37 = arith.mulf %36, %35 : vector<32x256xf32>
    %38 = arith.addf %37, %7 : vector<32x256xf32>
    %c0_17 = arith.constant 0 : index
    %c0_18 = arith.constant 0 : index
    %c0_19 = arith.constant 0 : index
    %39 = vector.load %arg7[%c0_17, %c0_18, %c0_19] : memref<2x32x256xf32, #tpu.memory_space<vmem>>, vector<1x32x256xf32>
    %40 = vector.shape_cast %39 : vector<1x32x256xf32> to vector<32x256xf32>
    %41 = vector.shape_cast %38 : vector<32x256xf32> to vector<1x32x256xf32>
    tpu.vector_store %arg7[%c0_17, %c0_18, %c0_19], %41 {strides = array<i32>} : memref<2x32x256xf32, #tpu.memory_space<vmem>>, vector<1x32x256xf32>,
    %c1 = arith.constant 1 : index
    %c0_20 = arith.constant 0 : index
    %c0_21 = arith.constant 0 : index
    %42 = vector.load %arg1[%c1, %c0_20, %c0_21] : memref<2x32x256xf32, #tpu.memory_space<vmem>>, vector<1x32x256xf32>
    %43 = vector.shape_cast %42 : vector<1x32x256xf32> to vector<32x256xf32>
    %44 = arith.truncf %43 : vector<32x256xf32> to vector<32x256xbf16>
    %cst_22 = arith.constant dense<0.000000e+00> : vector<96x256xf32>
    %45 = tpu.matmul %0, %44, %cst_22 {dimension_numbers = #tpu.dot_dimension_numbers<[1], [0], [0], [1], [0, 0, 1, 1], [], []>} : vector<96x32xbf16>, vector<32x256xbf16>, vector<96x256xf32> -> vector<96x256xf32>
    %46 = vector.broadcast %1 : vector<96x1xf32> to vector<96x256xf32>
    %47 = arith.addf %45, %46 : vector<96x256xf32>
    %48 = arith.truncf %47 : vector<96x256xf32> to vector<96x256xbf16>
    %49 = vector.extract_strided_slice %48 {offsets = [0, 0], sizes = [32, 256], strides = [1, 1]} : vector<96x256xbf16> to vector<32x256xbf16>
    %50 = vector.shape_cast %49 : vector<32x256xbf16> to vector<4x8x256xbf16>
    %51 = vector.extract_strided_slice %48 {offsets = [32, 0], sizes = [32, 256], strides = [1, 1]} : vector<96x256xbf16> to vector<32x256xbf16>
    %52 = vector.shape_cast %51 : vector<32x256xbf16> to vector<4x8x256xbf16>
    %53 = vector.extract_strided_slice %48 {offsets = [64, 0], sizes = [32, 256], strides = [1, 1]} : vector<96x256xbf16> to vector<32x256xbf16>
    %54 = vector.shape_cast %53 : vector<32x256xbf16> to vector<4x8x256xbf16>
    "tpu.trace_start"() <{level = 10 : i32, message = "hdi,hdj->hij"}> : () -> ()
    %cst_23 = arith.constant dense<0.000000e+00> : vector<4x256x256xf32>
    %55 = tpu.matmul %50, %52, %cst_23 {dimension_numbers = #tpu.dot_dimension_numbers<[1], [1], [2], [2], [0, 0, 0, 2, 1, 2], [0], [0]>} : vector<4x8x256xbf16>, vector<4x8x256xbf16>, vector<4x256x256xf32> -> vector<4x256x256xf32>
    "tpu.trace_stop"() : () -> ()
    %cst_24 = arith.constant dense<0xFF800000> : vector<4x256xf32>
    %56 = vector.multi_reduction <maximumf>, %55, %cst_24 [2] : vector<4x256x256xf32> to vector<4x256xf32>
    %57 = vector.shape_cast %56 : vector<4x256xf32> to vector<4x256x1xf32>
    %58 = vector.broadcast %57 : vector<4x256x1xf32> to vector<4x256x256xf32>
    %59 = arith.subf %55, %58 : vector<4x256x256xf32>
    %60 = math.exp %59 : vector<4x256x256xf32>
    %61 = arith.truncf %60 : vector<4x256x256xf32> to vector<4x256x256xbf16>
    "tpu.trace_start"() <{level = 10 : i32, message = "hdj,hij->hdi"}> : () -> ()
    %cst_25 = arith.constant dense<0.000000e+00> : vector<4x8x256xf32>
    %62 = tpu.matmul %54, %61, %cst_25 {dimension_numbers = #tpu.dot_dimension_numbers<[2], [2], [1], [1], [0, 0, 0, 1, 1, 1], [0], [0]>} : vector<4x8x256xbf16>, vector<4x256x256xbf16>, vector<4x8x256xf32> -> vector<4x8x256xf32>
    %cst_26 = arith.constant dense<0.000000e+00> : vector<4x1x256xf32>
    %63 = tpu.matmul %5, %61, %cst_26 {dimension_numbers = #tpu.dot_dimension_numbers<[2], [2], [1], [1], [0, 0, 0, 1, 1, 1], [0], [0]>} : vector<4x1x256xbf16>, vector<4x256x256xbf16>, vector<4x1x256xf32> -> vector<4x1x256xf32>
    "tpu.trace_stop"() : () -> ()
    %64 = tpu.reciprocal %63 {approx = true} : vector<4x1x256xf32> -> vector<4x1x256xf32>
    %65 = vector.broadcast %64 : vector<4x1x256xf32> to vector<4x8x256xf32>
    %66 = arith.mulf %62, %65 : vector<4x8x256xf32>
    %67 = vector.shape_cast %66 : vector<4x8x256xf32> to vector<32x256xf32>
    %68 = arith.truncf %67 : vector<32x256xf32> to vector<32x256xbf16>
    %cst_27 = arith.constant dense<0.000000e+00> : vector<32x256xf32>
    %69 = tpu.matmul %2, %68, %cst_27 {dimension_numbers = #tpu.dot_dimension_numbers<[1], [0], [0], [1], [0, 0, 1, 1], [], []>} : vector<32x32xbf16>, vector<32x256xbf16>, vector<32x256xf32> -> vector<32x256xf32>
    %70 = vector.broadcast %3 : vector<32x1xf32> to vector<32x256xf32>
    %71 = arith.addf %69, %70 : vector<32x256xf32>
    %72 = vector.broadcast %4 : f32 to vector<32x256xf32>
    %73 = arith.mulf %72, %71 : vector<32x256xf32>
    %74 = arith.addf %73, %43 : vector<32x256xf32>
    %c1_28 = arith.constant 1 : index
    %c0_29 = arith.constant 0 : index
    %c0_30 = arith.constant 0 : index
    %75 = vector.load %arg7[%c1_28, %c0_29, %c0_30] : memref<2x32x256xf32, #tpu.memory_space<vmem>>, vector<1x32x256xf32>
    %76 = vector.shape_cast %75 : vector<1x32x256xf32> to vector<32x256xf32>
    %77 = vector.shape_cast %74 : vector<32x256xf32> to vector<1x32x256xf32>
    tpu.vector_store %arg7[%c1_28, %c0_29, %c0_30], %77 {strides = array<i32>} : memref<2x32x256xf32, #tpu.memory_space<vmem>>, vector<1x32x256xf32>,
    return
  }
  func.func @transform_0(%arg0: i32) -> (i32, i32, i32) {
    %c0_i32 = arith.constant 0 : i32
    %c0_i32_0 = arith.constant 0 : i32
    %c0_i32_1 = arith.constant 0 : i32
    return %arg0, %c0_i32, %c0_i32_0 : i32, i32, i32
  }
  func.func @transform_1(%arg0: i32) -> (i32, i32) {
    %c0_i32 = arith.constant 0 : i32
    %c0_i32_0 = arith.constant 0 : i32
    %c0_i32_1 = arith.constant 0 : i32
    return %c0_i32, %c0_i32_0 : i32, i32
  }
  func.func @transform_2(%arg0: i32) -> (i32, i32) {
    %c0_i32 = arith.constant 0 : i32
    %c0_i32_0 = arith.constant 0 : i32
    %c0_i32_1 = arith.constant 0 : i32
    return %c0_i32, %c0_i32_0 : i32, i32
  }
  func.func @transform_3(%arg0: i32) -> (i32, i32) {
    %c0_i32 = arith.constant 0 : i32
    %c0_i32_0 = arith.constant 0 : i32
    %c0_i32_1 = arith.constant 0 : i32
    return %c0_i32, %c0_i32_0 : i32, i32
  }
  func.func @transform_4(%arg0: i32) -> (i32, i32) {
    %c0_i32 = arith.constant 0 : i32
    %c0_i32_0 = arith.constant 0 : i32
    %c0_i32_1 = arith.constant 0 : i32
    return %c0_i32, %c0_i32_0 : i32, i32
  }
  func.func @transform_5(%arg0: i32) -> i32 {
    %c0_i32 = arith.constant 0 : i32
    %c0_i32_0 = arith.constant 0 : i32
    return %c0_i32 : i32
  }
  func.func @transform_6(%arg0: i32) -> (i32, i32, i32) {
    %c0_i32 = arith.constant 0 : i32
    %c0_i32_0 = arith.constant 0 : i32
    %c0_i32_1 = arith.constant 0 : i32
    return %arg0, %c0_i32, %c0_i32_0 : i32, i32, i32
  }
}

</mosaic_0001>

<llo_original>
// kernel: tpu_custom_call.1
$region0: #{tpu_custom_call.1}
  #allocation0 [shape = 'u32[]', space=smem, size = 0x4, offset = 0x4, fixed_abs, tag = 'smem constant byte address 0x4 - core index']
  #allocation1 [shape = 'u32[144,128]{1,0:T(1,128)}', space=vmem, size = 0x12000, scoped, tag = 'internal scratch']
  #allocation2 [shape = 'f32[1]{0:T(128)S(6)}', space=smem, size = 0x200, scoped, tag = 'scoped memory for tpu_custom_call.1']
  %s0 = inlined_call_operand.hbm [shape: f32[4,32,256], index: 0, kind: input, shape index: {}]
  %s1 = inlined_call_operand.vmem [shape: bf16[96,32], index: 1, kind: input, shape index: {}]
  %s2 = inlined_call_operand.vmem [shape: f32[96,1], index: 2, kind: input, shape index: {}]
  %s3 = inlined_call_operand.vmem [shape: bf16[32,32], index: 3, kind: input, shape index: {}]
  %s4 = inlined_call_operand.vmem [shape: f32[32,1], index: 4, kind: input, shape index: {}]
  %s5 = inlined_call_operand.<no memory space> [shape: f32[1], index: 5, kind: input, shape index: {}]
  %s6 = inlined_call_operand.hbm [shape: f32[4,32,256], index: 6, kind: output, shape index: {}]
  %s7 = sld [smem:[#allocation0]]
  $region61: #{tpu_custom_call.1} parent=0
    _
  %s9 = ssub.s32 1, %s7
  %s10 = scalar_select 0, %s9, %s7
  %11 = sst [smem:[#allocation2]] %s5
  $region1: #{tpu_custom_call.1} parent=0
    #allocation3 [shape = 'u8[131072]{0}', space=vmem, size = 0x20000, scoped, tag = 'input window, operand 0']
    #allocation4 [shape = 's32[2]{0}', space=sflag, size = 0x8, scoped, tag = 'scoped memory for tpu_custom_call.1']
    #allocation5 [shape = 's32[2]{0}', space=sflag, size = 0x8, scoped, tag = 'scoped memory for tpu_custom_call.1']
    #allocation6 [shape = 'u8[131072]{0}', space=vmem, size = 0x20000, scoped, tag = 'output window, operand 0']
    %12 = vsyncpa [#allocation4], 0
    %s13 = scalar_lea.sflag [#allocation4], 1
    %14 = vsyncpa %s13, 0
    %15 = vsyncpa [#allocation5], 0
    %s16 = scalar_lea.sflag [#allocation5], 1
    %17 = vsyncpa %s16, 0
    loop: start=0, step=1, limit=4
    $region2: #{tpu_custom_call.1} parent=1 // loop_pre_header
      _
    $region3: #{tpu_custom_call.1} parent=1 // loop_header
      %s19 = sphi 0, %s23
      %p20 = scmp.ge.s32.totalorder %s19, 4
      %s29 = sphi 0, %s31
      %s32 = sphi 0, %s29
      %s33 = sphi 0, %s32
      %s49 = sphi 0, %s33
      %s53 = sphi 0, %s53
      %s55 = sphi 0, %s53
      %s56 = sphi 0, %s55
      %s70 = sphi 0, %s56
      %s74 = sphi 0, %s74
      %s76 = sphi 0, %s74
      %s77 = sphi 0, %s76
      %s91 = sphi 0, %s77
      %s95 = sphi 0, %s95
      %s97 = sphi 0, %s95
      %s98 = sphi 0, %s97
      %s112 = sphi 0, %s98
      %s116 = sphi 0, %s116
      %s118 = sphi 0, %s116
      %s119 = sphi 0, %s118
      %s133 = sphi 0, %s119
      %s137 = sphi 0, %s137
      %s139 = sphi 0, %s137
      %s140 = sphi 0, %s139
      %s154 = sphi 0, %s140
      %s160 = sphi 0, %s162
      %s163 = sphi 0, %s160
      %s164 = sphi 0, %s163
      %s180 = sphi 0, %s164
    $region4: #{tpu_custom_call.1} parent=1 // loop_header_branch
      %22 = sbr.rel (%p20) target = $region8
    $region5: #{tpu_custom_call.1} parent=1 // loop_body
      %s24 = ssub.s32 %s19, 1
      %s25 = ssub.s32 %s19, 2
      %s26 = sadd.s32 %s19, 1
      %s27 = ssub.s32 %s19, %s26
      %p28 = scmp.eq.s32.totalorder %s27, 0
      %s30 = sadd.s32 %s29, 1
      %s31 = scalar_select %p28, %s29, %s30
      %p34 = pneg %p28
      %p35 = scmp.eq.s32.totalorder %s19, 1
      %p36 = por %p34, %p35
      %p37 = scmp.ne.s32.totalorder %s29, %s32
      %p38 = scmp.eq.s32.totalorder %s19, 0
      %p39 = por %p37, %p38
      %p40 = scmp.ne.s32.totalorder %s29, %s32
      %p41 = scmp.eq.s32.totalorder %s24, 1
      %p42 = por %p40, %p41
      %p43 = scmp.ne.s32.totalorder %s32, %s33
      %p44 = scmp.eq.s32.totalorder %s24, 0
      %p45 = por %p43, %p44
      %p46 = scmp.ne.s32.totalorder %s32, %s33
      %p47 = scmp.eq.s32.totalorder %s25, 1
      %p48 = por %p46, %p47
      %p50 = scmp.ne.s32.totalorder %s33, %s49
      %p51 = scmp.eq.s32.totalorder %s25, 0
      %p52 = por %p50, %p51
      %s54 = sadd.s32 %s53, 1
      %p57 = scmp.eq.s32.totalorder %s19, 1
      %p58 = scmp.ne.s32.totalorder %s53, %s55
      %p59 = scmp.eq.s32.totalorder %s19, 0
      %p60 = por %p58, %p59
      %p61 = scmp.ne.s32.totalorder %s53, %s55
      %p62 = scmp.eq.s32.totalorder %s24, 1
      %p63 = por %p61, %p62
      %p64 = scmp.ne.s32.totalorder %s55, %s56
      %p65 = scmp.eq.s32.totalorder %s24, 0
      %p66 = por %p64, %p65
      %p67 = scmp.ne.s32.totalorder %s55, %s56
      %p68 = scmp.eq.s32.totalorder %s25, 1
      %p69 = por %p67, %p68
      %p71 = scmp.ne.s32.totalorder %s56, %s70
      %p72 = scmp.eq.s32.totalorder %s25, 0
      %p73 = por %p71, %p72
      %s75 = sadd.s32 %s74, 1
      %p78 = scmp.eq.s32.totalorder %s19, 1
      %p79 = scmp.ne.s32.totalorder %s74, %s76
      %p80 = scmp.eq.s32.totalorder %s19, 0
      %p81 = por %p79, %p80
      %p82 = scmp.ne.s32.totalorder %s74, %s76
      %p83 = scmp.eq.s32.totalorder %s24, 1
      %p84 = por %p82, %p83
      %p85 = scmp.ne.s32.totalorder %s76, %s77
      %p86 = scmp.eq.s32.totalorder %s24, 0
      %p87 = por %p85, %p86
      %p88 = scmp.ne.s32.totalorder %s76, %s77
      %p89 = scmp.eq.s32.totalorder %s25, 1
      %p90 = por %p88, %p89
      %p92 = scmp.ne.s32.totalorder %s77, %s91
      %p93 = scmp.eq.s32.totalorder %s25, 0
      %p94 = por %p92, %p93
      %s96 = sadd.s32 %s95, 1
      %p99 = scmp.eq.s32.totalorder %s19, 1
      %p100 = scmp.ne.s32.totalorder %s95, %s97
      %p101 = scmp.eq.s32.totalorder %s19, 0
      %p102 = por %p100, %p101
      %p103 = scmp.ne.s32.totalorder %s95, %s97
      %p104 = scmp.eq.s32.totalorder %s24, 1
      %p105 = por %p103, %p104
      %p106 = scmp.ne.s32.totalorder %s97, %s98
      %p107 = scmp.eq.s32.totalorder %s24, 0
      %p108 = por %p106, %p107
      %p109 = scmp.ne.s32.totalorder %s97, %s98
      %p110 = scmp.eq.s32.totalorder %s25, 1
      %p111 = por %p109, %p110
      %p113 = scmp.ne.s32.totalorder %s98, %s112
      %p114 = scmp.eq.s32.totalorder %s25, 0
      %p115 = por %p113, %p114
      %s117 = sadd.s32 %s116, 1
      %p120 = scmp.eq.s32.totalorder %s19, 1
      %p121 = scmp.ne.s32.totalorder %s116, %s118
      %p122 = scmp.eq.s32.totalorder %s19, 0
      %p123 = por %p121, %p122
      %p124 = scmp.ne.s32.totalorder %s116, %s118
      %p125 = scmp.eq.s32.totalorder %s24, 1
      %p126 = por %p124, %p125
      %p127 = scmp.ne.s32.totalorder %s118, %s119
      %p128 = scmp.eq.s32.totalorder %s24, 0
      %p129 = por %p127, %p128
      %p130 = scmp.ne.s32.totalorder %s118, %s119
      %p131 = scmp.eq.s32.totalorder %s25, 1
      %p132 = por %p130, %p131
      %p134 = scmp.ne.s32.totalorder %s119, %s133
      %p135 = scmp.eq.s32.totalorder %s25, 0
      %p136 = por %p134, %p135
      %s138 = sadd.s32 %s137, 1
      %p141 = scmp.eq.s32.totalorder %s19, 1
      %p142 = scmp.ne.s32.totalorder %s137, %s139
      %p143 = scmp.eq.s32.totalorder %s19, 0
      %p144 = por %p142, %p143
      %p145 = scmp.ne.s32.totalorder %s137, %s139
      %p146 = scmp.eq.s32.totalorder %s24, 1
      %p147 = por %p145, %p146
      %p148 = scmp.ne.s32.totalorder %s139, %s140
      %p149 = scmp.eq.s32.totalorder %s24, 0
      %p150 = por %p148, %p149
      %p151 = scmp.ne.s32.totalorder %s139, %s140
      %p152 = scmp.eq.s32.totalorder %s25, 1
      %p153 = por %p151, %p152
      %p155 = scmp.ne.s32.totalorder %s140, %s154
      %p156 = scmp.eq.s32.totalorder %s25, 0
      %p157 = por %p155, %p156
      %s158 = ssub.s32 %s19, %s26
      %p159 = scmp.eq.s32.totalorder %s158, 0
      %s161 = sadd.s32 %s160, 1
      %s162 = scalar_select %p159, %s160, %s161
      %p165 = pneg %p159
      %p166 = scmp.eq.s32.totalorder %s19, 1
      %p167 = por %p165, %p166
      %p168 = scmp.ne.s32.totalorder %s160, %s163
      %p169 = scmp.eq.s32.totalorder %s19, 0
      %p170 = por %p168, %p169
      %p171 = scmp.ne.s32.totalorder %s160, %s163
      %p172 = scmp.eq.s32.totalorder %s24, 1
      %p173 = por %p171, %p172
      %p174 = scmp.ne.s32.totalorder %s163, %s164
      %p175 = scmp.eq.s32.totalorder %s24, 0
      %p176 = por %p174, %p175
      %p177 = scmp.ne.s32.totalorder %s163, %s164
      %p178 = scmp.eq.s32.totalorder %s25, 1
      %p179 = por %p177, %p178
      %p181 = scmp.ne.s32.totalorder %s164, %s180
      %p182 = scmp.eq.s32.totalorder %s25, 0
      %p183 = por %p181, %p182
      %p184 = scmp.le.s32.totalorder 1, %s19
      %p185 = scmp.lt.s32.totalorder %s19, 3
      %p186 = pnand %p184, %p185
      %p187 = pneg %p186
      // Predicated region
      $region9: #{tpu_custom_call.1} parent=5 // pred_check
        _
      $region10: #{tpu_custom_call.1} parent=5 // pred_check_branch
        %189 = sbr.rel (%p186) target = $region12
      $region11: #{tpu_custom_call.1} parent=5 // pred_region
        %s190 = ssub.s32 %s19, 1
        // Predicated region
        $region13: #{tpu_custom_call.1} parent=11 // pred_check
          %p191 = pneg %p66
        $region14: #{tpu_custom_call.1} parent=11 // pred_check_branch
          %193 = sbr.rel (%p191) target = $region16
        $region15: #{tpu_custom_call.1} parent=11 // pred_region
          _
        $region16: #{tpu_custom_call.1} parent=11 // pred_fallthru
          _
        // Predicated region
        $region17: #{tpu_custom_call.1} parent=11 // pred_check
          %p194 = pneg %p87
        $region18: #{tpu_custom_call.1} parent=11 // pred_check_branch
          %196 = sbr.rel (%p194) target = $region20
        $region19: #{tpu_custom_call.1} parent=11 // pred_region
          _
        $region20: #{tpu_custom_call.1} parent=11 // pred_fallthru
          _
        // Predicated region
        $region21: #{tpu_custom_call.1} parent=11 // pred_check
          %p197 = pneg %p108
        $region22: #{tpu_custom_call.1} parent=11 // pred_check_branch
          %199 = sbr.rel (%p197) target = $region24
        $region23: #{tpu_custom_call.1} parent=11 // pred_region
          _
        $region24: #{tpu_custom_call.1} parent=11 // pred_fallthru
          _
        // Predicated region
        $region25: #{tpu_custom_call.1} parent=11 // pred_check
          %p200 = pneg %p129
        $region26: #{tpu_custom_call.1} parent=11 // pred_check_branch
          %202 = sbr.rel (%p200) target = $region28
        $region27: #{tpu_custom_call.1} parent=11 // pred_region
          _
        $region28: #{tpu_custom_call.1} parent=11 // pred_fallthru
          _
        // Predicated region
        $region29: #{tpu_custom_call.1} parent=11 // pred_check
          %p203 = pneg %p150
        $region30: #{tpu_custom_call.1} parent=11 // pred_check_branch
          %205 = sbr.rel (%p203) target = $region32
        $region31: #{tpu_custom_call.1} parent=11 // pred_region
          _
        $region32: #{tpu_custom_call.1} parent=11 // pred_fallthru
          _
      $region12: #{tpu_custom_call.1} parent=5 // pred_fallthru
        _
      %p206 = scmp.lt.s32.totalorder %s19, 2
      // Predicated region
      $region33: #{tpu_custom_call.1} parent=5 // pred_check
        %p207 = pneg %p206
      $region34: #{tpu_custom_call.1} parent=5 // pred_check_branch
        %209 = sbr.rel (%p207) target = $region36
      $region35: #{tpu_custom_call.1} parent=5 // pred_region
        // Predicated region
        $region37: #{tpu_custom_call.1} parent=35 // pred_check
          %p210 = pneg %p39
        $region38: #{tpu_custom_call.1} parent=35 // pred_check_branch
          %212 = sbr.rel (%p210) target = $region40
        $region39: #{tpu_custom_call.1} parent=35 // pred_region
          %s213 = sand.u32 %s29, 1
          %s214 = scalar_lea.sflag [#allocation4], %s213
          %s215 = sand.u32 %s29, 1
          %s216 = smul.addr %s215, 128
          %s217 = scalar_lea.vmem [#allocation3], %s216
          %s218 = smul.u32 2, %s19
          %s220 = ssub.s32 2048, 2048
          %221 = vsyncadd %s214, %s220
          %s222 = smul.addr %s218, 8
          %s223 = smul.addr %s222, 128
          %s224 = scalar_lea.hbm %s0, %s223
          %s225 = sshll.u32 %s217, 4
          %s226 = int_to_ptr.vmem [resolvable:$true] %s225
          %231 = dma.hbm_to_vmem [thread:$0]  %s224, 2048, %s226, %s214, 256, 256, 16
        $region40: #{tpu_custom_call.1} parent=35 // pred_fallthru
          _
      $region36: #{tpu_custom_call.1} parent=5 // pred_fallthru
        _
      %p232 = scmp.le.s32.totalorder 1, %s19
      %p233 = scmp.lt.s32.totalorder %s19, 3
      %p234 = pnand %p232, %p233
      %p235 = pneg %p234
      // Predicated region
      $region41: #{tpu_custom_call.1} parent=5 // pred_check
        _
      $region42: #{tpu_custom_call.1} parent=5 // pred_check_branch
        %237 = sbr.rel (%p234) target = $region44
      $region43: #{tpu_custom_call.1} parent=5 // pred_region
        %s238 = ssub.s32 %s19, 1
        %s239 = sand.u32 %s32, 1
        %s240 = scalar_lea.sflag [#allocation4], %s239
        %s241 = sand.u32 %s32, 1
        %s242 = smul.addr %s241, 128
        %s243 = scalar_lea.vmem [#allocation3], %s242
        // Predicated region
        $region45: #{tpu_custom_call.1} parent=43 // pred_check
          %p244 = pneg %p45
        $region46: #{tpu_custom_call.1} parent=43 // pred_check_branch
          %246 = sbr.rel (%p244) target = $region48
        $region47: #{tpu_custom_call.1} parent=43 // pred_region
          %247 = dma.done %s240, 2048
        $region48: #{tpu_custom_call.1} parent=43 // pred_fallthru
          _
        %s248 = sand.u32 %s32, 1
        %s249 = scalar_lea.sflag [#allocation4], %s248
        %s250 = sand.u32 %s32, 1
        %s251 = smul.addr %s250, 128
        %s252 = scalar_lea.vmem [#allocation3], %s251
        %p253 = pneg %p45
        %p254 = pneg %p42
        %p255 = pneg %p66
        %p256 = pneg %p63
        %p257 = pneg %p87
        %p258 = pneg %p84
        %p259 = pneg %p108
        %p260 = pneg %p105
        %p261 = pneg %p129
        %p262 = pneg %p126
        %p263 = pneg %p150
        %p264 = pneg %p147
        %p265 = pneg %p176
        %p266 = pneg %p173
        %s267 = sand.u32 %s163, 1
        %s268 = scalar_lea.sflag [#allocation5], %s267
        %s269 = sand.u32 %s163, 1
        %s270 = smul.addr %s269, 128
        %s271 = scalar_lea.vmem [#allocation6], %s270
        %s272 = smul.u32 2, %s24
        %s273 = smul.u32 2, %s24
        %v276 = vld [vmem:[%s1] sm:$0xf]
        %v277 = vld [vmem:[%s1 + $0x4] sm:$0xf]
        %v278 = vld [vmem:[%s1 + $0x8] sm:$0xf]
        %v279 = vld [vmem:[%s1 + $0xc] sm:$0xf]
        %v280 = vld [vmem:[%s1 + $0x10] sm:$0xf]
        %v281 = vld [vmem:[%s1 + $0x14] sm:$0xf]
        %v282 = vld [vmem:[%s1 + $0x18] sm:$0xf]
        %v283 = vld [vmem:[%s1 + $0x1c] sm:$0xf]
        %v284 = vld [vmem:[%s1 + $0x20] sm:$0xf]
        %v285 = vld [vmem:[%s1 + $0x24] sm:$0xf]
        %v286 = vld [vmem:[%s1 + $0x28] sm:$0xf]
        %v287 = vld [vmem:[%s1 + $0x2c] sm:$0xf]
        %v288 = vld [vmem:[%s2] sm:$0xff]
        %v289 = vld [vmem:[%s2 + $0x8] sm:$0xff]
        %v290 = vld [vmem:[%s2 + $0x10] sm:$0xff]
        %v291 = vld [vmem:[%s2 + $0x18] sm:$0xff]
        %v292 = vld [vmem:[%s2 + $0x20] sm:$0xff]
        %v293 = vld [vmem:[%s2 + $0x28] sm:$0xff]
        %v294 = vld [vmem:[%s2 + $0x30] sm:$0xff]
        %v295 = vld [vmem:[%s2 + $0x38] sm:$0xff]
        %v296 = vld [vmem:[%s2 + $0x40] sm:$0xff]
        %v297 = vld [vmem:[%s2 + $0x48] sm:$0xff]
        %v298 = vld [vmem:[%s2 + $0x50] sm:$0xff]
        %v299 = vld [vmem:[%s2 + $0x58] sm:$0xff]
        %v300 = vld [vmem:[%s3] sm:$0xf]
        %v301 = vld [vmem:[%s3 + $0x4] sm:$0xf]
        %v302 = vld [vmem:[%s3 + $0x8] sm:$0xf]
        %v303 = vld [vmem:[%s3 + $0xc] sm:$0xf]
        %v304 = vld [vmem:[%s4] sm:$0xff]
        %v305 = vld [vmem:[%s4 + $0x8] sm:$0xff]
        %v306 = vld [vmem:[%s4 + $0x10] sm:$0xff]
        %v307 = vld [vmem:[%s4 + $0x18] sm:$0xff]
        %s308 = sld [smem:[#allocation2]]
        %v309 = vld [vmem:[%s243] sm:$0xff]
        %v310 = vld [vmem:[%s243 + $0x8] sm:$0xff]
        %v311 = vld [vmem:[%s243 + $0x10] sm:$0xff]
        %v312 = vld [vmem:[%s243 + $0x18] sm:$0xff]
        %v313 = vld [vmem:[%s243 + $0x20] sm:$0xff]
        %v314 = vld [vmem:[%s243 + $0x28] sm:$0xff]
        %v315 = vld [vmem:[%s243 + $0x30] sm:$0xff]
        %v316 = vld [vmem:[%s243 + $0x38] sm:$0xff]
        %v317 = vpack.c.bf16 %v311, %v309
        %v318 = vpack.c.bf16 %v312, %v310
        %v319 = vpack.c.bf16 %v315, %v313
        %v320 = vpack.c.bf16 %v316, %v314
        %322 = vset.pattern.permute.xlu0 0
        %323 = vperm.xlu0 %322, %v288
        %v324 = vpop.permute.xlu0 %323
        %327 = vset.pattern.permute.xlu0 0
        %328 = vperm.xlu0 %327, %v289
        %v329 = vpop.permute.xlu0 %328
        %332 = vset.pattern.permute.xlu0 0
        %333 = vperm.xlu0 %332, %v290
        %v334 = vpop.permute.xlu0 %333
        %337 = vset.pattern.permute.xlu0 0
        %338 = vperm.xlu0 %337, %v291
        %v339 = vpop.permute.xlu0 %338
        %342 = vset.pattern.permute.xlu0 0
        %343 = vperm.xlu0 %342, %v292
        %v344 = vpop.permute.xlu0 %343
        %347 = vset.pattern.permute.xlu0 0
        %348 = vperm.xlu0 %347, %v293
        %v349 = vpop.permute.xlu0 %348
        %352 = vset.pattern.permute.xlu0 0
        %353 = vperm.xlu0 %352, %v294
        %v354 = vpop.permute.xlu0 %353
        %357 = vset.pattern.permute.xlu0 0
        %358 = vperm.xlu0 %357, %v295
        %v359 = vpop.permute.xlu0 %358
        %362 = vset.pattern.permute.xlu0 0
        %363 = vperm.xlu0 %362, %v296
        %v364 = vpop.permute.xlu0 %363
        %367 = vset.pattern.permute.xlu0 0
        %368 = vperm.xlu0 %367, %v297
        %v369 = vpop.permute.xlu0 %368
        %372 = vset.pattern.permute.xlu0 0
        %373 = vperm.xlu0 %372, %v298
        %v374 = vpop.permute.xlu0 %373
        %377 = vset.pattern.permute.xlu0 0
        %378 = vperm.xlu0 %377, %v299
        %v379 = vpop.permute.xlu0 %378
        %v393 = vunpack.c.l.b16 %v276
        %v394 = vunpack.c.l.b16 %v277
        %v395 = vunpack.c.l.b16 %v278
        %v396 = vunpack.c.l.b16 %v279
        %v397 = vunpack.c.l.b16 %v280
        %v398 = vunpack.c.l.b16 %v281
        %v399 = vunpack.c.l.b16 %v282
        %v400 = vunpack.c.l.b16 %v283
        %v401 = vunpack.c.l.b16 %v284
        %v402 = vunpack.c.l.b16 %v285
        %v403 = vunpack.c.l.b16 %v286
        %v404 = vunpack.c.l.b16 %v287
        %v405 = vpack.c.b16 %v394, %v393
        %v406 = vpack.c.b16 %v396, %v395
        %v407 = vpack.c.b16 %v398, %v397
        %v408 = vpack.c.b16 %v400, %v399
        %v409 = vpack.c.b16 %v402, %v401
        %v410 = vpack.c.b16 %v404, %v403
        %vm411 = vcmask 261120
        %v413 = vsel %vm411, %v405, 0
        %v416 = vsel %vm411, %v406, 0
        %v419 = vsel %vm411, %v407, 0
        %v422 = vsel %vm411, %v408, 0
        %v425 = vsel %vm411, %v409, 0
        %v428 = vsel %vm411, %v410, 0
        %430 = vmatprep.subr.bf16.mxu0 %v318
        %431 = vmatpush1.bf16.msra.mxu0 %v317
        %432 = vmatprep.subr.bf16.mxu0 %v320
        %433 = vmatpush1.bf16.msra.mxu0 %v319
        %434 = vmatprep.subr.bf16.mxu0 0
        %435 = vmatpush1.bf16.msra.mxu0 0
        %436 = vmatprep.subr.bf16.mxu0 0
        %437 = vmatpush1.bf16.msra.mxu0 0
        %438 = vmatprep.subr.bf16.mxu0 0
        %439 = vmatpush1.bf16.msra.mxu0 0
        %440 = vmatprep.subr.bf16.mxu0 0
        %441 = vmatpush1.bf16.msra.mxu0 0
        %442 = vmatprep.subr.bf16.mxu0 0
        %443 = vmatpush1.bf16.msra.mxu0 0
        %444 = vmatprep.subr.bf16.mxu0 0
        %445 = vmatpush1.bf16.msra.mxu0 0
        %446 = vmatprep.subr.bf16.mxu0 0
        %447 = vmatpush1.bf16.msra.mxu0 0
        %448 = vmatprep.subr.bf16.mxu0 0
        %449 = vmatpush1.bf16.msra.mxu0 0
        %450 = vmatprep.subr.bf16.mxu0 0
        %451 = vmatpush1.bf16.msra.mxu0 0
        %452 = vmatprep.subr.bf16.mxu0 0
        %453 = vmatpush1.bf16.msra.mxu0 0
        %454 = vmatprep.subr.bf16.mxu0 0
        %455 = vmatpush1.bf16.msra.mxu0 0
        %456 = vmatprep.subr.bf16.mxu0 0
        %457 = vmatpush1.bf16.msra.mxu0 0
        %458 = vmatprep.subr.bf16.mxu0 0
        %459 = vmatpush1.bf16.msra.mxu0 0
        %460 = vmatprep.subr.bf16.mxu0 0
        %461 = vmatpush1.bf16.msra.mxu0 0
        %462 = vmatprep.mubr.bf16.mxu0 0
        %463 = vmatmul.mubr.bf16.gmra.mrb[0].mxu0 %v413
        %v464 = vpop.f32.mrb[0].mxu0
        %v465 = vadd.f32 %v324, %v464
        %v466 = vpop.f32.mrb[0].mxu0
        %v467 = vadd.f32 %v324, %v466
        %v468 = vpop.f32.mrb[0].mxu0
        %v469 = vadd.f32 %v329, %v468
        %v470 = vpop.f32.mrb[0].mxu0
        %v471 = vadd.f32 %v329, %v470
        %472 = vmatprep.mubr.bf16.mxu0 0
        %473 = vmatmul.mubr.bf16.gmra.mrb[0].mxu0 %v416
        %v474 = vpop.f32.mrb[0].mxu0
        %v475 = vadd.f32 %v334, %v474
        %v476 = vpop.f32.mrb[0].mxu0
        %v477 = vadd.f32 %v334, %v476
        %v478 = vpop.f32.mrb[0].mxu0
        %v479 = vadd.f32 %v339, %v478
        %v480 = vpop.f32.mrb[0].mxu0
        %v481 = vadd.f32 %v339, %v480
        %482 = vmatprep.mubr.bf16.mxu0 0
        %483 = vmatmul.mubr.bf16.gmra.mrb[0].mxu0 %v419
        %v484 = vpop.f32.mrb[0].mxu0
        %v485 = vadd.f32 %v344, %v484
        %v486 = vpop.f32.mrb[0].mxu0
        %v487 = vadd.f32 %v344, %v486
        %v488 = vpop.f32.mrb[0].mxu0
        %v489 = vadd.f32 %v349, %v488
        %v490 = vpop.f32.mrb[0].mxu0
        %v491 = vadd.f32 %v349, %v490
        %492 = vmatprep.mubr.bf16.mxu0 0
        %493 = vmatmul.mubr.bf16.gmra.mrb[0].mxu0 %v422
        %v494 = vpop.f32.mrb[0].mxu0
        %v495 = vadd.f32 %v354, %v494
        %v496 = vpop.f32.mrb[0].mxu0
        %v497 = vadd.f32 %v354, %v496
        %v498 = vpop.f32.mrb[0].mxu0
        %v499 = vadd.f32 %v359, %v498
        %v500 = vpop.f32.mrb[0].mxu0
        %v501 = vadd.f32 %v359, %v500
        %502 = vmatprep.mubr.bf16.mxu0 0
        %503 = vmatmul.mubr.bf16.gmra.mrb[0].mxu0 %v425
        %v504 = vpop.f32.mrb[0].mxu0
        %v505 = vadd.f32 %v364, %v504
        %v506 = vpop.f32.mrb[0].mxu0
        %v507 = vadd.f32 %v364, %v506
        %v508 = vpop.f32.mrb[0].mxu0
        %v509 = vadd.f32 %v369, %v508
        %v510 = vpop.f32.mrb[0].mxu0
        %v511 = vadd.f32 %v369, %v510
        %512 = vmatprep.mubr.bf16.mxu0 0
        %513 = vmatmul.mubr.bf16.gmra.mrb[0].mxu0 %v428
        %v514 = vpop.f32.mrb[0].mxu0
        %v515 = vadd.f32 %v374, %v514
        %v516 = vpop.f32.mrb[0].mxu0
        %v517 = vadd.f32 %v374, %v516
        %v518 = vpop.f32.mrb[0].mxu0
        %v519 = vadd.f32 %v379, %v518
        %v520 = vpop.f32.mrb[0].mxu0
        %v521 = vadd.f32 %v379, %v520
        %522 = vdwg.mxu0
        %v523 = vpack.c.bf16 %v469, %v465
        %v524 = vpack.c.bf16 %v471, %v467
        %v525 = vpack.c.bf16 %v479, %v475
        %v526 = vpack.c.bf16 %v481, %v477
        %v527 = vpack.c.bf16 %v489, %v485
        %v528 = vpack.c.bf16 %v491, %v487
        %v529 = vpack.c.bf16 %v499, %v495
        %v530 = vpack.c.bf16 %v501, %v497
        %v531 = vpack.c.bf16 %v509, %v505
        %v532 = vpack.c.bf16 %v511, %v507
        %v533 = vpack.c.bf16 %v519, %v515
        %v534 = vpack.c.bf16 %v521, %v517
        %v539 = vunpack.c.l.b16 %v523
        %v540 = vunpack.c.l.b16 %v524
        %v541 = vunpack.c.h.b16 %v523
        %v542 = vunpack.c.h.b16 %v524
        %v543 = vunpack.c.l.b16 %v525
        %v544 = vunpack.c.l.b16 %v526
        %v545 = vunpack.c.h.b16 %v525
        %v546 = vunpack.c.h.b16 %v526
        %v551 = vunpack.c.l.b16 %v527
        %v552 = vunpack.c.l.b16 %v528
        %v553 = vunpack.c.h.b16 %v527
        %v554 = vunpack.c.h.b16 %v528
        %v555 = vunpack.c.l.b16 %v529
        %v556 = vunpack.c.l.b16 %v530
        %v557 = vunpack.c.h.b16 %v529
        %v558 = vunpack.c.h.b16 %v530
        %v563 = vunpack.c.l.b16 %v531
        %v564 = vunpack.c.l.b16 %v532
        %v565 = vunpack.c.h.b16 %v531
        %v566 = vunpack.c.h.b16 %v532
        %v567 = vunpack.c.l.b16 %v533
        %v568 = vunpack.c.l.b16 %v534
        %v569 = vunpack.c.h.b16 %v533
        %v570 = vunpack.c.h.b16 %v534
        %v571 = vpack.c.b16 %v539, %v539
        %v572 = vpack.c.b16 %v540, %v540
        %575 = vxpose.xlu0.c.b16.start [1/8] %v571, 128
        %576 = vxpose.xlu0.c.b16.cont [2/8] 0, 128
        %577 = vxpose.xlu0.c.b16.cont [3/8] 0, 128
        %578 = vxpose.xlu0.c.b16.cont [4/8] 0, 128
        %579 = vxpose.xlu0.c.b16.cont [5/8] 0, 128
        %580 = vxpose.xlu0.c.b16.cont [6/8] 0, 128
        %581 = vxpose.xlu0.c.b16.cont [7/8] 0, 128
        %582 = vxpose.xlu0.c.b16.end [8/8] 0, 128
        %v583 = vpop.trf.xlu0
        %v584 = vpop.trf.xlu0
        %v585 = vpop.trf.xlu0
        %v586 = vpop.trf.xlu0
        %v587 = vpop.trf.xlu0
        %v588 = vpop.trf.xlu0
        %v589 = vpop.trf.xlu0
        %v590 = vpop.trf.xlu0
        %591 = vxpose.xlu0.c.b16.start [1/8] %v572, 128
        %592 = vxpose.xlu0.c.b16.cont [2/8] 0, 128
        %593 = vxpose.xlu0.c.b16.cont [3/8] 0, 128
        %594 = vxpose.xlu0.c.b16.cont [4/8] 0, 128
        %595 = vxpose.xlu0.c.b16.cont [5/8] 0, 128
        %596 = vxpose.xlu0.c.b16.cont [6/8] 0, 128
        %597 = vxpose.xlu0.c.b16.cont [7/8] 0, 128
        %598 = vxpose.xlu0.c.b16.end [8/8] 0, 128
        %v599 = vpop.trf.xlu0
        %v600 = vpop.trf.xlu0
        %v601 = vpop.trf.xlu0
        %v602 = vpop.trf.xlu0
        %v603 = vpop.trf.xlu0
        %v604 = vpop.trf.xlu0
        %v605 = vpop.trf.xlu0
        %v606 = vpop.trf.xlu0
        %v607 = vpack.c.b16 %v551, %v551
        %v608 = vpack.c.b16 %v552, %v552
        %vm609 = vcmask 64512
        %v611 = vsel %vm609, %v583, 0
        %v614 = vsel %vm609, %v584, 0
        %v617 = vsel %vm609, %v585, 0
        %v620 = vsel %vm609, %v586, 0
        %v623 = vsel %vm609, %v587, 0
        %v626 = vsel %vm609, %v588, 0
        %v629 = vsel %vm609, %v589, 0
        %v632 = vsel %vm609, %v590, 0
        %v635 = vsel %vm609, %v599, 0
        %v638 = vsel %vm609, %v600, 0
        %v641 = vsel %vm609, %v601, 0
        %v644 = vsel %vm609, %v602, 0
        %v647 = vsel %vm609, %v603, 0
        %v650 = vsel %vm609, %v604, 0
        %v653 = vsel %vm609, %v605, 0
        %v656 = vsel %vm609, %v606, 0
        %vm658 = vcmask 1043456
        %v660 = vsel %vm658, %v607, 0
        %v663 = vsel %vm658, %v608, 0
        %665 = vmatprep.subr.bf16.mxu0 %v663
        %666 = vmatpush1.bf16.msra.mxu0 %v660
        %667 = vmatprep.subr.bf16.mxu0 0
        %668 = vmatpush1.bf16.msra.mxu0 0
        %669 = vmatprep.subr.bf16.mxu0 0
        %670 = vmatpush1.bf16.msra.mxu0 0
        %671 = vmatprep.subr.bf16.mxu0 0
        %672 = vmatpush1.bf16.msra.mxu0 0
        %673 = vmatprep.subr.bf16.mxu0 0
        %674 = vmatpush1.bf16.msra.mxu0 0
        %675 = vmatprep.subr.bf16.mxu0 0
        %676 = vmatpush1.bf16.msra.mxu0 0
        %677 = vmatprep.subr.bf16.mxu0 0
        %678 = vmatpush1.bf16.msra.mxu0 0
        %679 = vmatprep.subr.bf16.mxu0 0
        %680 = vmatpush1.bf16.msra.mxu0 0
        %681 = vmatprep.subr.bf16.mxu0 0
        %682 = vmatpush1.bf16.msra.mxu0 0
        %683 = vmatprep.subr.bf16.mxu0 0
        %684 = vmatpush1.bf16.msra.mxu0 0
        %685 = vmatprep.subr.bf16.mxu0 0
        %686 = vmatpush1.bf16.msra.mxu0 0
        %687 = vmatprep.subr.bf16.mxu0 0
        %688 = vmatpush1.bf16.msra.mxu0 0
        %689 = vmatprep.subr.bf16.mxu0 0
        %690 = vmatpush1.bf16.msra.mxu0 0
        %691 = vmatprep.subr.bf16.mxu0 0
        %692 = vmatpush1.bf16.msra.mxu0 0
        %693 = vmatprep.subr.bf16.mxu0 0
        %694 = vmatpush1.bf16.msra.mxu0 0
        %695 = vmatprep.subr.bf16.mxu0 0
        %696 = vmatpush1.bf16.msra.mxu0 0
        %697 = vmatprep.mubr.bf16.mxu0 0
        %698 = vmatmul.mubr.bf16.gmra.mrb[0].mxu0 %v611
        %v699 = vpop.f32.mrb[0].mxu0
        %v700 = vadd.f32 0.0, %v699
        %v701 = vpop.f32.mrb[0].mxu0
        %v702 = vadd.f32 0.0, %v701
        %v703 = vpop.f32.mrb[0].mxu0
        %v704 = vadd.f32 0.0, %v703
        %v705 = vpop.f32.mrb[0].mxu0
        %v706 = vadd.f32 0.0, %v705
        %707 = vmatprep.mubr.bf16.mxu0 0
        %708 = vmatmul.mubr.bf16.gmra.mrb[0].mxu0 %v614
        %v709 = vpop.f32.mrb[0].mxu0
        %v710 = vadd.f32 0.0, %v709
        %v711 = vpop.f32.mrb[0].mxu0
        %v712 = vadd.f32 0.0, %v711
        %v713 = vpop.f32.mrb[0].mxu0
        %v714 = vadd.f32 0.0, %v713
        %v715 = vpop.f32.mrb[0].mxu0
        %v716 = vadd.f32 0.0, %v715
        %717 = vmatprep.mubr.bf16.mxu0 0
        %718 = vmatmul.mubr.bf16.gmra.mrb[0].mxu0 %v617
        %v719 = vpop.f32.mrb[0].mxu0
        %v720 = vadd.f32 0.0, %v719
        %v721 = vpop.f32.mrb[0].mxu0
        %v722 = vadd.f32 0.0, %v721
        %v723 = vpop.f32.mrb[0].mxu0
        %v724 = vadd.f32 0.0, %v723
        %v725 = vpop.f32.mrb[0].mxu0
        %v726 = vadd.f32 0.0, %v725
        %727 = vmatprep.mubr.bf16.mxu0 0
        %728 = vmatmul.mubr.bf16.gmra.mrb[0].mxu0 %v620
        %v729 = vpop.f32.mrb[0].mxu0
        %v730 = vadd.f32 0.0, %v729
        %v731 = vpop.f32.mrb[0].mxu0
        %v732 = vadd.f32 0.0, %v731
        %v733 = vpop.f32.mrb[0].mxu0
        %v734 = vadd.f32 0.0, %v733
        %v735 = vpop.f32.mrb[0].mxu0
        %v736 = vadd.f32 0.0, %v735
        %737 = vmatprep.mubr.bf16.mxu0 0
        %738 = vmatmul.mubr.bf16.gmra.mrb[0].mxu0 %v623
        %v739 = vpop.f32.mrb[0].mxu0
        %v740 = vadd.f32 0.0, %v739
        %v741 = vpop.f32.mrb[0].mxu0
        %v742 = vadd.f32 0.0, %v741
        %v743 = vpop.f32.mrb[0].mxu0
        %v744 = vadd.f32 0.0, %v743
        %v745 = vpop.f32.mrb[0].mxu0
        %v746 = vadd.f32 0.0, %v745
        %747 = vmatprep.mubr.bf16.mxu0 0
        %748 = vmatmul.mubr.bf16.gmra.mrb[0].mxu0 %v626
        %v749 = vpop.f32.mrb[0].mxu0
        %v750 = vadd.f32 0.0, %v749
        %v751 = vpop.f32.mrb[0].mxu0
        %v752 = vadd.f32 0.0, %v751
        %v753 = vpop.f32.mrb[0].mxu0
        %v754 = vadd.f32 0.0, %v753
        %v755 = vpop.f32.mrb[0].mxu0
        %v756 = vadd.f32 0.0, %v755
        %757 = vmatprep.mubr.bf16.mxu0 0
        %758 = vmatmul.mubr.bf16.gmra.mrb[0].mxu0 %v629
        %v759 = vpop.f32.mrb[0].mxu0
        %v760 = vadd.f32 0.0, %v759
        %v761 = vpop.f32.mrb[0].mxu0
        %v762 = vadd.f32 0.0, %v761
        %v763 = vpop.f32.mrb[0].mxu0
        %v764 = vadd.f32 0.0, %v763
        %v765 = vpop.f32.mrb[0].mxu0
        %v766 = vadd.f32 0.0, %v765
        %767 = vmatprep.mubr.bf16.mxu0 0
        %768 = vmatmul.mubr.bf16.gmra.mrb[0].mxu0 %v632
        %v769 = vpop.f32.mrb[0].mxu0
        %v770 = vadd.f32 0.0, %v769
        %v771 = vpop.f32.mrb[0].mxu0
        %v772 = vadd.f32 0.0, %v771
        %v773 = vpop.f32.mrb[0].mxu0
        %v774 = vadd.f32 0.0, %v773
        %v775 = vpop.f32.mrb[0].mxu0
        %v776 = vadd.f32 0.0, %v775
        %777 = vmatprep.mubr.bf16.mxu0 0
        %778 = vmatmul.mubr.bf16.gmra.mrb[0].mxu0 %v635
        %v779 = vpop.f32.mrb[0].mxu0
        %v780 = vadd.f32 0.0, %v779
        %v781 = vpop.f32.mrb[0].mxu0
        %v782 = vadd.f32 0.0, %v781
        %v783 = vpop.f32.mrb[0].mxu0
        %v784 = vadd.f32 0.0, %v783
        %v785 = vpop.f32.mrb[0].mxu0
        %v786 = vadd.f32 0.0, %v785
        %787 = vmatprep.mubr.bf16.mxu0 0
        %788 = vmatmul.mubr.bf16.gmra.mrb[0].mxu0 %v638
        %v789 = vpop.f32.mrb[0].mxu0
        %v790 = vadd.f32 0.0, %v789
        %v791 = vpop.f32.mrb[0].mxu0
        %v792 = vadd.f32 0.0, %v791
        %v793 = vpop.f32.mrb[0].mxu0
        %v794 = vadd.f32 0.0, %v793
        %v795 = vpop.f32.mrb[0].mxu0
        %v796 = vadd.f32 0.0, %v795
        %797 = vmatprep.mubr.bf16.mxu0 0
        %798 = vmatmul.mubr.bf16.gmra.mrb[0].mxu0 %v641
        %v799 = vpop.f32.mrb[0].mxu0
        %v800 = vadd.f32 0.0, %v799
        %v801 = vpop.f32.mrb[0].mxu0
        %v802 = vadd.f32 0.0, %v801
        %v803 = vpop.f32.mrb[0].mxu0
        %v804 = vadd.f32 0.0, %v803
        %v805 = vpop.f32.mrb[0].mxu0
        %v806 = vadd.f32 0.0, %v805
        %807 = vmatprep.mubr.bf16.mxu0 0
        %808 = vmatmul.mubr.bf16.gmra.mrb[0].mxu0 %v644
        %v809 = vpop.f32.mrb[0].mxu0
        %v810 = vadd.f32 0.0, %v809
        %v811 = vpop.f32.mrb[0].mxu0
        %v812 = vadd.f32 0.0, %v811
        %v813 = vpop.f32.mrb[0].mxu0
        %v814 = vadd.f32 0.0, %v813
        %v815 = vpop.f32.mrb[0].mxu0
        %v816 = vadd.f32 0.0, %v815
        %817 = vmatprep.mubr.bf16.mxu0 0
        %818 = vmatmul.mubr.bf16.gmra.mrb[0].mxu0 %v647
        %v819 = vpop.f32.mrb[0].mxu0
        %v820 = vadd.f32 0.0, %v819
        %v821 = vpop.f32.mrb[0].mxu0
        %v822 = vadd.f32 0.0, %v821
        %v823 = vpop.f32.mrb[0].mxu0
        %v824 = vadd.f32 0.0, %v823
        %v825 = vpop.f32.mrb[0].mxu0
        %v826 = vadd.f32 0.0, %v825
        %827 = vmatprep.mubr.bf16.mxu0 0
        %828 = vmatmul.mubr.bf16.gmra.mrb[0].mxu0 %v650
        %v829 = vpop.f32.mrb[0].mxu0
        %v830 = vadd.f32 0.0, %v829
        %v831 = vpop.f32.mrb[0].mxu0
        %v832 = vadd.f32 0.0, %v831
        %v833 = vpop.f32.mrb[0].mxu0
        %v834 = vadd.f32 0.0, %v833
        %v835 = vpop.f32.mrb[0].mxu0
        %v836 = vadd.f32 0.0, %v835
        %837 = vmatprep.mubr.bf16.mxu0 0
        %838 = vmatmul.mubr.bf16.gmra.mrb[0].mxu0 %v653
        %v839 = vpop.f32.mrb[0].mxu0
        %v840 = vadd.f32 0.0, %v839
        %v841 = vpop.f32.mrb[0].mxu0
        %v842 = vadd.f32 0.0, %v841
        %v843 = vpop.f32.mrb[0].mxu0
        %v844 = vadd.f32 0.0, %v843
        %v845 = vpop.f32.mrb[0].mxu0
        %v846 = vadd.f32 0.0, %v845
        %847 = vmatprep.mubr.bf16.mxu0 0
        %848 = vmatmul.mubr.bf16.gmra.mrb[0].mxu0 %v656
        %v849 = vpop.f32.mrb[0].mxu0
        %v850 = vadd.f32 0.0, %v849
        %v851 = vpop.f32.mrb[0].mxu0
        %v852 = vadd.f32 0.0, %v851
        %v853 = vpop.f32.mrb[0].mxu0
        %v854 = vadd.f32 0.0, %v853
        %v855 = vpop.f32.mrb[0].mxu0
        %v856 = vadd.f32 0.0, %v855
        %857 = vdwg.mxu0
        %v858 = vpack.c.b16 %v541, %v541
        %v859 = vpack.c.b16 %v542, %v542
        %862 = vxpose.xlu0.c.b16.start [1/8] %v858, 128
        %863 = vxpose.xlu0.c.b16.cont [2/8] 0, 128
        %864 = vxpose.xlu0.c.b16.cont [3/8] 0, 128
        %865 = vxpose.xlu0.c.b16.cont [4/8] 0, 128
        %866 = vxpose.xlu0.c.b16.cont [5/8] 0, 128
        %867 = vxpose.xlu0.c.b16.cont [6/8] 0, 128
        %868 = vxpose.xlu0.c.b16.cont [7/8] 0, 128
        %869 = vxpose.xlu0.c.b16.end [8/8] 0, 128
        %v870 = vpop.trf.xlu0
        %v871 = vpop.trf.xlu0
        %v872 = vpop.trf.xlu0
        %v873 = vpop.trf.xlu0
        %v874 = vpop.trf.xlu0
        %v875 = vpop.trf.xlu0
        %v876 = vpop.trf.xlu0
        %v877 = vpop.trf.xlu0
        %878 = vxpose.xlu0.c.b16.start [1/8] %v859, 128
        %879 = vxpose.xlu0.c.b16.cont [2/8] 0, 128
        %880 = vxpose.xlu0.c.b16.cont [3/8] 0, 128
        %881 = vxpose.xlu0.c.b16.cont [4/8] 0, 128
        %882 = vxpose.xlu0.c.b16.cont [5/8] 0, 128
        %883 = vxpose.xlu0.c.b16.cont [6/8] 0, 128
        %884 = vxpose.xlu0.c.b16.cont [7/8] 0, 128
        %885 = vxpose.xlu0.c.b16.end [8/8] 0, 128
        %v886 = vpop.trf.xlu0
        %v887 = vpop.trf.xlu0
        %v888 = vpop.trf.xlu0
        %v889 = vpop.trf.xlu0
        %v890 = vpop.trf.xlu0
        %v891 = vpop.trf.xlu0
        %v892 = vpop.trf.xlu0
        %v893 = vpop.trf.xlu0
        %v894 = vpack.c.b16 %v553, %v553
        %v895 = vpack.c.b16 %v554, %v554
        %v897 = vsel %vm609, %v870, 0
        %v900 = vsel %vm609, %v871, 0
        %v903 = vsel %vm609, %v872, 0
        %v906 = vsel %vm609, %v873, 0
        %v909 = vsel %vm609, %v874, 0
        %v912 = vsel %vm609, %v875, 0
        %v915 = vsel %vm609, %v876, 0
        %v918 = vsel %vm609, %v877, 0
        %v921 = vsel %vm609, %v886, 0
        %v924 = vsel %vm609, %v887, 0
        %v927 = vsel %vm609, %v888, 0
        %v930 = vsel %vm609, %v889, 0
        %v933 = vsel %vm609, %v890, 0
        %v936 = vsel %vm609, %v891, 0
        %v939 = vsel %vm609, %v892, 0
        %v942 = vsel %vm609, %v893, 0
        %v945 = vsel %vm658, %v894, 0
        %v948 = vsel %vm658, %v895, 0
        %950 = vmatprep.subr.bf16.mxu0 %v948
        %951 = vmatpush1.bf16.msra.mxu0 %v945
        %952 = vmatprep.subr.bf16.mxu0 0
        %953 = vmatpush1.bf16.msra.mxu0 0
        %954 = vmatprep.subr.bf16.mxu0 0
        %955 = vmatpush1.bf16.msra.mxu0 0
        %956 = vmatprep.subr.bf16.mxu0 0
        %957 = vmatpush1.bf16.msra.mxu0 0
        %958 = vmatprep.subr.bf16.mxu0 0
        %959 = vmatpush1.bf16.msra.mxu0 0
        %960 = vmatprep.subr.bf16.mxu0 0
        %961 = vmatpush1.bf16.msra.mxu0 0
        %962 = vmatprep.subr.bf16.mxu0 0
        %963 = vmatpush1.bf16.msra.mxu0 0
        %964 = vmatprep.subr.bf16.mxu0 0
        %965 = vmatpush1.bf16.msra.mxu0 0
        %966 = vmatprep.subr.bf16.mxu0 0
        %967 = vmatpush1.bf16.msra.mxu0 0
        %968 = vmatprep.subr.bf16.mxu0 0
        %969 = vmatpush1.bf16.msra.mxu0 0
        %970 = vmatprep.subr.bf16.mxu0 0
        %971 = vmatpush1.bf16.msra.mxu0 0
        %972 = vmatprep.subr.bf16.mxu0 0
        %973 = vmatpush1.bf16.msra.mxu0 0
        %974 = vmatprep.subr.bf16.mxu0 0
        %975 = vmatpush1.bf16.msra.mxu0 0
        %976 = vmatprep.subr.bf16.mxu0 0
        %977 = vmatpush1.bf16.msra.mxu0 0
        %978 = vmatprep.subr.bf16.mxu0 0
        %979 = vmatpush1.bf16.msra.mxu0 0
        %980 = vmatprep.subr.bf16.mxu0 0
        %981 = vmatpush1.bf16.msra.mxu0 0
        %982 = vmatprep.mubr.bf16.mxu0 0
        %983 = vmatmul.mubr.bf16.gmra.mrb[0].mxu0 %v897
        %v984 = vpop.f32.mrb[0].mxu0
        %v985 = vadd.f32 0.0, %v984
        %v986 = vpop.f32.mrb[0].mxu0
        %v987 = vadd.f32 0.0, %v986
        %v988 = vpop.f32.mrb[0].mxu0
        %v989 = vadd.f32 0.0, %v988
        %v990 = vpop.f32.mrb[0].mxu0
        %v991 = vadd.f32 0.0, %v990
        %992 = vmatprep.mubr.bf16.mxu0 0
        %993 = vmatmul.mubr.bf16.gmra.mrb[0].mxu0 %v900
        %v994 = vpop.f32.mrb[0].mxu0
        %v995 = vadd.f32 0.0, %v994
        %v996 = vpop.f32.mrb[0].mxu0
        %v997 = vadd.f32 0.0, %v996
        %v998 = vpop.f32.mrb[0].mxu0
        %v999 = vadd.f32 0.0, %v998
        %v1000 = vpop.f32.mrb[0].mxu0
        %v1001 = vadd.f32 0.0, %v1000
        %1002 = vmatprep.mubr.bf16.mxu0 0
        %1003 = vmatmul.mubr.bf16.gmra.mrb[0].mxu0 %v903
        %v1004 = vpop.f32.mrb[0].mxu0
        %v1005 = vadd.f32 0.0, %v1004
        %v1006 = vpop.f32.mrb[0].mxu0
        %v1007 = vadd.f32 0.0, %v1006
        %v1008 = vpop.f32.mrb[0].mxu0
        %v1009 = vadd.f32 0.0, %v1008
        %v1010 = vpop.f32.mrb[0].mxu0
        %v1011 = vadd.f32 0.0, %v1010
        %1012 = vmatprep.mubr.bf16.mxu0 0
        %1013 = vmatmul.mubr.bf16.gmra.mrb[0].mxu0 %v906
        %v1014 = vpop.f32.mrb[0].mxu0
        %v1015 = vadd.f32 0.0, %v1014
        %v1016 = vpop.f32.mrb[0].mxu0
        %v1017 = vadd.f32 0.0, %v1016
        %v1018 = vpop.f32.mrb[0].mxu0
        %v1019 = vadd.f32 0.0, %v1018
        %v1020 = vpop.f32.mrb[0].mxu0
        %v1021 = vadd.f32 0.0, %v1020
        %1022 = vmatprep.mubr.bf16.mxu0 0
        %1023 = vmatmul.mubr.bf16.gmra.mrb[0].mxu0 %v909
        %v1024 = vpop.f32.mrb[0].mxu0
        %v1025 = vadd.f32 0.0, %v1024
        %v1026 = vpop.f32.mrb[0].mxu0
        %v1027 = vadd.f32 0.0, %v1026
        %v1028 = vpop.f32.mrb[0].mxu0
        %v1029 = vadd.f32 0.0, %v1028
        %v1030 = vpop.f32.mrb[0].mxu0
        %v1031 = vadd.f32 0.0, %v1030
        %1032 = vmatprep.mubr.bf16.mxu0 0
        %1033 = vmatmul.mubr.bf16.gmra.mrb[0].mxu0 %v912
        %v1034 = vpop.f32.mrb[0].mxu0
        %v1035 = vadd.f32 0.0, %v1034
        %v1036 = vpop.f32.mrb[0].mxu0
        %v1037 = vadd.f32 0.0, %v1036
        %v1038 = vpop.f32.mrb[0].mxu0
        %v1039 = vadd.f32 0.0, %v1038
        %v1040 = vpop.f32.mrb[0].mxu0
        %v1041 = vadd.f32 0.0, %v1040
        %1042 = vmatprep.mubr.bf16.mxu0 0
        %1043 = vmatmul.mubr.bf16.gmra.mrb[0].mxu0 %v915
        %v1044 = vpop.f32.mrb[0].mxu0
        %v1045 = vadd.f32 0.0, %v1044
        %v1046 = vpop.f32.mrb[0].mxu0
        %v1047 = vadd.f32 0.0, %v1046
        %v1048 = vpop.f32.mrb[0].mxu0
        %v1049 = vadd.f32 0.0, %v1048
        %v1050 = vpop.f32.mrb[0].mxu0
        %v1051 = vadd.f32 0.0, %v1050
        %1052 = vmatprep.mubr.bf16.mxu0 0
        %1053 = vmatmul.mubr.bf16.gmra.mrb[0].mxu0 %v918
        %v1054 = vpop.f32.mrb[0].mxu0
        %v1055 = vadd.f32 0.0, %v1054
        %v1056 = vpop.f32.mrb[0].mxu0
        %v1057 = vadd.f32 0.0, %v1056
        %v1058 = vpop.f32.mrb[0].mxu0
        %v1059 = vadd.f32 0.0, %v1058
        %v1060 = vpop.f32.mrb[0].mxu0
        %v1061 = vadd.f32 0.0, %v1060
        %1062 = vmatprep.mubr.bf16.mxu0 0
        %1063 = vmatmul.mubr.bf16.gmra.mrb[0].mxu0 %v921
        %v1064 = vpop.f32.mrb[0].mxu0
        %v1065 = vadd.f32 0.0, %v1064
        %v1066 = vpop.f32.mrb[0].mxu0
        %v1067 = vadd.f32 0.0, %v1066
        %v1068 = vpop.f32.mrb[0].mxu0
        %v1069 = vadd.f32 0.0, %v1068
        %v1070 = vpop.f32.mrb[0].mxu0
        %v1071 = vadd.f32 0.0, %v1070
        %1072 = vmatprep.mubr.bf16.mxu0 0
        %1073 = vmatmul.mubr.bf16.gmra.mrb[0].mxu0 %v924
        %v1074 = vpop.f32.mrb[0].mxu0
        %v1075 = vadd.f32 0.0, %v1074
        %v1076 = vpop.f32.mrb[0].mxu0
        %v1077 = vadd.f32 0.0, %v1076
        %v1078 = vpop.f32.mrb[0].mxu0
        %v1079 = vadd.f32 0.0, %v1078
        %v1080 = vpop.f32.mrb[0].mxu0
        %v1081 = vadd.f32 0.0, %v1080
        %1082 = vmatprep.mubr.bf16.mxu0 0
        %1083 = vmatmul.mubr.bf16.gmra.mrb[0].mxu0 %v927
        %v1084 = vpop.f32.mrb[0].mxu0
        %v1085 = vadd.f32 0.0, %v1084
        %v1086 = vpop.f32.mrb[0].mxu0
        %v1087 = vadd.f32 0.0, %v1086
        %v1088 = vpop.f32.mrb[0].mxu0
        %v1089 = vadd.f32 0.0, %v1088
        %v1090 = vpop.f32.mrb[0].mxu0
        %v1091 = vadd.f32 0.0, %v1090
        %1092 = vmatprep.mubr.bf16.mxu0 0
        %1093 = vmatmul.mubr.bf16.gmra.mrb[0].mxu0 %v930
        %v1094 = vpop.f32.mrb[0].mxu0
        %v1095 = vadd.f32 0.0, %v1094
        %v1096 = vpop.f32.mrb[0].mxu0
        %v1097 = vadd.f32 0.0, %v1096
        %v1098 = vpop.f32.mrb[0].mxu0
        %v1099 = vadd.f32 0.0, %v1098
        %v1100 = vpop.f32.mrb[0].mxu0
        %v1101 = vadd.f32 0.0, %v1100
        %1102 = vmatprep.mubr.bf16.mxu0 0
        %1103 = vmatmul.mubr.bf16.gmra.mrb[0].mxu0 %v933
        %v1104 = vpop.f32.mrb[0].mxu0
        %v1105 = vadd.f32 0.0, %v1104
        %v1106 = vpop.f32.mrb[0].mxu0
        %v1107 = vadd.f32 0.0, %v1106
        %v1108 = vpop.f32.mrb[0].mxu0
        %v1109 = vadd.f32 0.0, %v1108
        %v1110 = vpop.f32.mrb[0].mxu0
        %v1111 = vadd.f32 0.0, %v1110
        %1112 = vmatprep.mubr.bf16.mxu0 0
        %1113 = vmatmul.mubr.bf16.gmra.mrb[0].mxu0 %v936
        %v1114 = vpop.f32.mrb[0].mxu0
        %v1115 = vadd.f32 0.0, %v1114
        %v1116 = vpop.f32.mrb[0].mxu0
        %v1117 = vadd.f32 0.0, %v1116
        %v1118 = vpop.f32.mrb[0].mxu0
        %v1119 = vadd.f32 0.0, %v1118
        %v1120 = vpop.f32.mrb[0].mxu0
        %v1121 = vadd.f32 0.0, %v1120
        %1122 = vmatprep.mubr.bf16.mxu0 0
        %1123 = vmatmul.mubr.bf16.gmra.mrb[0].mxu0 %v939
        %v1124 = vpop.f32.mrb[0].mxu0
        %v1125 = vadd.f32 0.0, %v1124
        %v1126 = vpop.f32.mrb[0].mxu0
        %v1127 = vadd.f32 0.0, %v1126
        %v1128 = vpop.f32.mrb[0].mxu0
        %v1129 = vadd.f32 0.0, %v1128
        %v1130 = vpop.f32.mrb[0].mxu0
        %v1131 = vadd.f32 0.0, %v1130
        %1132 = vmatprep.mubr.bf16.mxu0 0
        %1133 = vmatmul.mubr.bf16.gmra.mrb[0].mxu0 %v942
        %v1134 = vpop.f32.mrb[0].mxu0
        %v1135 = vadd.f32 0.0, %v1134
        %v1136 = vpop.f32.mrb[0].mxu0
        %v1137 = vadd.f32 0.0, %v1136
        %v1138 = vpop.f32.mrb[0].mxu0
        %v1139 = vadd.f32 0.0, %v1138
        %v1140 = vpop.f32.mrb[0].mxu0
        %v1141 = vadd.f32 0.0, %v1140
        %1142 = vdwg.mxu0
        %v1143 = vpack.c.b16 %v543, %v543
        %v1144 = vpack.c.b16 %v544, %v544
        %1147 = vxpose.xlu0.c.b16.start [1/8] %v1143, 128
        %1148 = vxpose.xlu0.c.b16.cont [2/8] 0, 128
        %1149 = vxpose.xlu0.c.b16.cont [3/8] 0, 128
        %1150 = vxpose.xlu0.c.b16.cont [4/8] 0, 128
        %1151 = vxpose.xlu0.c.b16.cont [5/8] 0, 128
        %1152 = vxpose.xlu0.c.b16.cont [6/8] 0, 128
        %1153 = vxpose.xlu0.c.b16.cont [7/8] 0, 128
        %1154 = vxpose.xlu0.c.b16.end [8/8] 0, 128
        %v1155 = vpop.trf.xlu0
        %v1156 = vpop.trf.xlu0
        %v1157 = vpop.trf.xlu0
        %v1158 = vpop.trf.xlu0
        %v1159 = vpop.trf.xlu0
        %v1160 = vpop.trf.xlu0
        %v1161 = vpop.trf.xlu0
        %v1162 = vpop.trf.xlu0
        %1163 = vxpose.xlu0.c.b16.start [1/8] %v1144, 128
        %1164 = vxpose.xlu0.c.b16.cont [2/8] 0, 128
        %1165 = vxpose.xlu0.c.b16.cont [3/8] 0, 128
        %1166 = vxpose.xlu0.c.b16.cont [4/8] 0, 128
        %1167 = vxpose.xlu0.c.b16.cont [5/8] 0, 128
        %1168 = vxpose.xlu0.c.b16.cont [6/8] 0, 128
        %1169 = vxpose.xlu0.c.b16.cont [7/8] 0, 128
        %1170 = vxpose.xlu0.c.b16.end [8/8] 0, 128
        %v1171 = vpop.trf.xlu0
        %v1172 = vpop.trf.xlu0
        %v1173 = vpop.trf.xlu0
        %v1174 = vpop.trf.xlu0
        %v1175 = vpop.trf.xlu0
        %v1176 = vpop.trf.xlu0
        %v1177 = vpop.trf.xlu0
        %v1178 = vpop.trf.xlu0
        %v1179 = vpack.c.b16 %v555, %v555
        %v1180 = vpack.c.b16 %v556, %v556
        %v1182 = vsel %vm609, %v1155, 0
        %v1185 = vsel %vm609, %v1156, 0
        %v1188 = vsel %vm609, %v1157, 0
        %v1191 = vsel %vm609, %v1158, 0
        %v1194 = vsel %vm609, %v1159, 0
        %v1197 = vsel %vm609, %v1160, 0
        %v1200 = vsel %vm609, %v1161, 0
        %v1203 = vsel %vm609, %v1162, 0
        %v1206 = vsel %vm609, %v1171, 0
        %v1209 = vsel %vm609, %v1172, 0
        %v1212 = vsel %vm609, %v1173, 0
        %v1215 = vsel %vm609, %v1174, 0
        %v1218 = vsel %vm609, %v1175, 0
        %v1221 = vsel %vm609, %v1176, 0
        %v1224 = vsel %vm609, %v1177, 0
        %v1227 = vsel %vm609, %v1178, 0
        %v1230 = vsel %vm658, %v1179, 0
        %v1233 = vsel %vm658, %v1180, 0
        %1235 = vmatprep.subr.bf16.mxu0 %v1233
        %1236 = vmatpush1.bf16.msra.mxu0 %v1230
        %1237 = vmatprep.subr.bf16.mxu0 0
        %1238 = vmatpush1.bf16.msra.mxu0 0
        %1239 = vmatprep.subr.bf16.mxu0 0
        %1240 = vmatpush1.bf16.msra.mxu0 0
        %1241 = vmatprep.subr.bf16.mxu0 0
        %1242 = vmatpush1.bf16.msra.mxu0 0
        %1243 = vmatprep.subr.bf16.mxu0 0
        %1244 = vmatpush1.bf16.msra.mxu0 0
        %1245 = vmatprep.subr.bf16.mxu0 0
        %1246 = vmatpush1.bf16.msra.mxu0 0
        %1247 = vmatprep.subr.bf16.mxu0 0
        %1248 = vmatpush1.bf16.msra.mxu0 0
        %1249 = vmatprep.subr.bf16.mxu0 0
        %1250 = vmatpush1.bf16.msra.mxu0 0
        %1251 = vmatprep.subr.bf16.mxu0 0
        %1252 = vmatpush1.bf16.msra.mxu0 0
        %1253 = vmatprep.subr.bf16.mxu0 0
        %1254 = vmatpush1.bf16.msra.mxu0 0
        %1255 = vmatprep.subr.bf16.mxu0 0
        %1256 = vmatpush1.bf16.msra.mxu0 0
        %1257 = vmatprep.subr.bf16.mxu0 0
        %1258 = vmatpush1.bf16.msra.mxu0 0
        %1259 = vmatprep.subr.bf16.mxu0 0
        %1260 = vmatpush1.bf16.msra.mxu0 0
        %1261 = vmatprep.subr.bf16.mxu0 0
        %1262 = vmatpush1.bf16.msra.mxu0 0
        %1263 = vmatprep.subr.bf16.mxu0 0
        %1264 = vmatpush1.bf16.msra.mxu0 0
        %1265 = vmatprep.subr.bf16.mxu0 0
        %1266 = vmatpush1.bf16.msra.mxu0 0
        %1267 = vmatprep.mubr.bf16.mxu0 0
        %1268 = vmatmul.mubr.bf16.gmra.mrb[0].mxu0 %v1182
        %v1269 = vpop.f32.mrb[0].mxu0
        %v1270 = vadd.f32 0.0, %v1269
        %v1271 = vpop.f32.mrb[0].mxu0
        %v1272 = vadd.f32 0.0, %v1271
        %v1273 = vpop.f32.mrb[0].mxu0
        %v1274 = vadd.f32 0.0, %v1273
        %v1275 = vpop.f32.mrb[0].mxu0
        %v1276 = vadd.f32 0.0, %v1275
        %1277 = vmatprep.mubr.bf16.mxu0 0
        %1278 = vmatmul.mubr.bf16.gmra.mrb[0].mxu0 %v1185
        %v1279 = vpop.f32.mrb[0].mxu0
        %v1280 = vadd.f32 0.0, %v1279
        %v1281 = vpop.f32.mrb[0].mxu0
        %v1282 = vadd.f32 0.0, %v1281
        %v1283 = vpop.f32.mrb[0].mxu0
        %v1284 = vadd.f32 0.0, %v1283
        %v1285 = vpop.f32.mrb[0].mxu0
        %v1286 = vadd.f32 0.0, %v1285
        %1287 = vmatprep.mubr.bf16.mxu0 0
        %1288 = vmatmul.mubr.bf16.gmra.mrb[0].mxu0 %v1188
        %v1289 = vpop.f32.mrb[0].mxu0
        %v1290 = vadd.f32 0.0, %v1289
        %v1291 = vpop.f32.mrb[0].mxu0
        %v1292 = vadd.f32 0.0, %v1291
        %v1293 = vpop.f32.mrb[0].mxu0
        %v1294 = vadd.f32 0.0, %v1293
        %v1295 = vpop.f32.mrb[0].mxu0
        %v1296 = vadd.f32 0.0, %v1295
        %1297 = vmatprep.mubr.bf16.mxu0 0
        %1298 = vmatmul.mubr.bf16.gmra.mrb[0].mxu0 %v1191
        %v1299 = vpop.f32.mrb[0].mxu0
        %v1300 = vadd.f32 0.0, %v1299
        %v1301 = vpop.f32.mrb[0].mxu0
        %v1302 = vadd.f32 0.0, %v1301
        %v1303 = vpop.f32.mrb[0].mxu0
        %v1304 = vadd.f32 0.0, %v1303
        %v1305 = vpop.f32.mrb[0].mxu0
        %v1306 = vadd.f32 0.0, %v1305
        %1307 = vmatprep.mubr.bf16.mxu0 0
        %1308 = vmatmul.mubr.bf16.gmra.mrb[0].mxu0 %v1194
        %v1309 = vpop.f32.mrb[0].mxu0
        %v1310 = vadd.f32 0.0, %v1309
        %v1311 = vpop.f32.mrb[0].mxu0
        %v1312 = vadd.f32 0.0, %v1311
        %v1313 = vpop.f32.mrb[0].mxu0
        %v1314 = vadd.f32 0.0, %v1313
        %v1315 = vpop.f32.mrb[0].mxu0
        %v1316 = vadd.f32 0.0, %v1315
        %1317 = vmatprep.mubr.bf16.mxu0 0
        %1318 = vmatmul.mubr.bf16.gmra.mrb[0].mxu0 %v1197
        %v1319 = vpop.f32.mrb[0].mxu0
        %v1320 = vadd.f32 0.0, %v1319
        %v1321 = vpop.f32.mrb[0].mxu0
        %v1322 = vadd.f32 0.0, %v1321
        %v1323 = vpop.f32.mrb[0].mxu0
        %v1324 = vadd.f32 0.0, %v1323
        %v1325 = vpop.f32.mrb[0].mxu0
        %v1326 = vadd.f32 0.0, %v1325
        %1327 = vmatprep.mubr.bf16.mxu0 0
        %1328 = vmatmul.mubr.bf16.gmra.mrb[0].mxu0 %v1200
        %v1329 = vpop.f32.mrb[0].mxu0
        %v1330 = vadd.f32 0.0, %v1329
        %v1331 = vpop.f32.mrb[0].mxu0
        %v1332 = vadd.f32 0.0, %v1331
        %v1333 = vpop.f32.mrb[0].mxu0
        %v1334 = vadd.f32 0.0, %v1333
        %v1335 = vpop.f32.mrb[0].mxu0
        %v1336 = vadd.f32 0.0, %v1335
        %1337 = vmatprep.mubr.bf16.mxu0 0
        %1338 = vmatmul.mubr.bf16.gmra.mrb[0].mxu0 %v1203
        %v1339 = vpop.f32.mrb[0].mxu0
        %v1340 = vadd.f32 0.0, %v1339
        %v1341 = vpop.f32.mrb[0].mxu0
        %v1342 = vadd.f32 0.0, %v1341
        %v1343 = vpop.f32.mrb[0].mxu0
        %v1344 = vadd.f32 0.0, %v1343
        %v1345 = vpop.f32.mrb[0].mxu0
        %v1346 = vadd.f32 0.0, %v1345
        %1347 = vmatprep.mubr.bf16.mxu0 0
        %1348 = vmatmul.mubr.bf16.gmra.mrb[0].mxu0 %v1206
        %v1349 = vpop.f32.mrb[0].mxu0
        %v1350 = vadd.f32 0.0, %v1349
        %v1351 = vpop.f32.mrb[0].mxu0
        %v1352 = vadd.f32 0.0, %v1351
        %v1353 = vpop.f32.mrb[0].mxu0
        %v1354 = vadd.f32 0.0, %v1353
        %v1355 = vpop.f32.mrb[0].mxu0
        %v1356 = vadd.f32 0.0, %v1355
        %1357 = vmatprep.mubr.bf16.mxu0 0
        %1358 = vmatmul.mubr.bf16.gmra.mrb[0].mxu0 %v1209
        %v1359 = vpop.f32.mrb[0].mxu0
        %v1360 = vadd.f32 0.0, %v1359
        %v1361 = vpop.f32.mrb[0].mxu0
        %v1362 = vadd.f32 0.0, %v1361
        %v1363 = vpop.f32.mrb[0].mxu0
        %v1364 = vadd.f32 0.0, %v1363
        %v1365 = vpop.f32.mrb[0].mxu0
        %v1366 = vadd.f32 0.0, %v1365
        %1367 = vmatprep.mubr.bf16.mxu0 0
        %1368 = vmatmul.mubr.bf16.gmra.mrb[0].mxu0 %v1212
        %v1369 = vpop.f32.mrb[0].mxu0
        %v1370 = vadd.f32 0.0, %v1369
        %v1371 = vpop.f32.mrb[0].mxu0
        %v1372 = vadd.f32 0.0, %v1371
        %v1373 = vpop.f32.mrb[0].mxu0
        %v1374 = vadd.f32 0.0, %v1373
        %v1375 = vpop.f32.mrb[0].mxu0
        %v1376 = vadd.f32 0.0, %v1375
        %1377 = vmatprep.mubr.bf16.mxu0 0
        %1378 = vmatmul.mubr.bf16.gmra.mrb[0].mxu0 %v1215
        %v1379 = vpop.f32.mrb[0].mxu0
        %v1380 = vadd.f32 0.0, %v1379
        %v1381 = vpop.f32.mrb[0].mxu0
        %v1382 = vadd.f32 0.0, %v1381
        %v1383 = vpop.f32.mrb[0].mxu0
        %v1384 = vadd.f32 0.0, %v1383
        %v1385 = vpop.f32.mrb[0].mxu0
        %v1386 = vadd.f32 0.0, %v1385
        %1387 = vmatprep.mubr.bf16.mxu0 0
        %1388 = vmatmul.mubr.bf16.gmra.mrb[0].mxu0 %v1218
        %v1389 = vpop.f32.mrb[0].mxu0
        %v1390 = vadd.f32 0.0, %v1389
        %v1391 = vpop.f32.mrb[0].mxu0
        %v1392 = vadd.f32 0.0, %v1391
        %v1393 = vpop.f32.mrb[0].mxu0
        %v1394 = vadd.f32 0.0, %v1393
        %v1395 = vpop.f32.mrb[0].mxu0
        %v1396 = vadd.f32 0.0, %v1395
        %1397 = vmatprep.mubr.bf16.mxu0 0
        %1398 = vmatmul.mubr.bf16.gmra.mrb[0].mxu0 %v1221
        %v1399 = vpop.f32.mrb[0].mxu0
        %v1400 = vadd.f32 0.0, %v1399
        %v1401 = vpop.f32.mrb[0].mxu0
        %v1402 = vadd.f32 0.0, %v1401
        %v1403 = vpop.f32.mrb[0].mxu0
        %v1404 = vadd.f32 0.0, %v1403
        %v1405 = vpop.f32.mrb[0].mxu0
        %v1406 = vadd.f32 0.0, %v1405
        %1407 = vmatprep.mubr.bf16.mxu0 0
        %1408 = vmatmul.mubr.bf16.gmra.mrb[0].mxu0 %v1224
        %v1409 = vpop.f32.mrb[0].mxu0
        %v1410 = vadd.f32 0.0, %v1409
        %v1411 = vpop.f32.mrb[0].mxu0
        %v1412 = vadd.f32 0.0, %v1411
        %v1413 = vpop.f32.mrb[0].mxu0
        %v1414 = vadd.f32 0.0, %v1413
        %v1415 = vpop.f32.mrb[0].mxu0
        %v1416 = vadd.f32 0.0, %v1415
        %1417 = vmatprep.mubr.bf16.mxu0 0
        %1418 = vmatmul.mubr.bf16.gmra.mrb[0].mxu0 %v1227
        %v1419 = vpop.f32.mrb[0].mxu0
        %v1420 = vadd.f32 0.0, %v1419
        %v1421 = vpop.f32.mrb[0].mxu0
        %v1422 = vadd.f32 0.0, %v1421
        %v1423 = vpop.f32.mrb[0].mxu0
        %v1424 = vadd.f32 0.0, %v1423
        %v1425 = vpop.f32.mrb[0].mxu0
        %v1426 = vadd.f32 0.0, %v1425
        %1427 = vdwg.mxu0
        %v1428 = vpack.c.b16 %v545, %v545
        %v1429 = vpack.c.b16 %v546, %v546
        %1432 = vxpose.xlu0.c.b16.start [1/8] %v1428, 128
        %1433 = vxpose.xlu0.c.b16.cont [2/8] 0, 128
        %1434 = vxpose.xlu0.c.b16.cont [3/8] 0, 128
        %1435 = vxpose.xlu0.c.b16.cont [4/8] 0, 128
        %1436 = vxpose.xlu0.c.b16.cont [5/8] 0, 128
        %1437 = vxpose.xlu0.c.b16.cont [6/8] 0, 128
        %1438 = vxpose.xlu0.c.b16.cont [7/8] 0, 128
        %1439 = vxpose.xlu0.c.b16.end [8/8] 0, 128
        %v1440 = vpop.trf.xlu0
        %v1441 = vpop.trf.xlu0
        %v1442 = vpop.trf.xlu0
        %v1443 = vpop.trf.xlu0
        %v1444 = vpop.trf.xlu0
        %v1445 = vpop.trf.xlu0
        %v1446 = vpop.trf.xlu0
        %v1447 = vpop.trf.xlu0
        %1448 = vxpose.xlu0.c.b16.start [1/8] %v1429, 128
        %1449 = vxpose.xlu0.c.b16.cont [2/8] 0, 128
        %1450 = vxpose.xlu0.c.b16.cont [3/8] 0, 128
        %1451 = vxpose.xlu0.c.b16.cont [4/8] 0, 128
        %1452 = vxpose.xlu0.c.b16.cont [5/8] 0, 128
        %1453 = vxpose.xlu0.c.b16.cont [6/8] 0, 128
        %1454 = vxpose.xlu0.c.b16.cont [7/8] 0, 128
        %1455 = vxpose.xlu0.c.b16.end [8/8] 0, 128
        %v1456 = vpop.trf.xlu0
        %v1457 = vpop.trf.xlu0
        %v1458 = vpop.trf.xlu0
        %v1459 = vpop.trf.xlu0
        %v1460 = vpop.trf.xlu0
        %v1461 = vpop.trf.xlu0
        %v1462 = vpop.trf.xlu0
        %v1463 = vpop.trf.xlu0
        %v1464 = vpack.c.b16 %v557, %v557
        %v1465 = vpack.c.b16 %v558, %v558
        %v1467 = vsel %vm609, %v1440, 0
        %v1470 = vsel %vm609, %v1441, 0
        %v1473 = vsel %vm609, %v1442, 0
        %v1476 = vsel %vm609, %v1443, 0
        %v1479 = vsel %vm609, %v1444, 0
        %v1482 = vsel %vm609, %v1445, 0
        %v1485 = vsel %vm609, %v1446, 0
        %v1488 = vsel %vm609, %v1447, 0
        %v1491 = vsel %vm609, %v1456, 0
        %v1494 = vsel %vm609, %v1457, 0
        %v1497 = vsel %vm609, %v1458, 0
        %v1500 = vsel %vm609, %v1459, 0
        %v1503 = vsel %vm609, %v1460, 0
        %v1506 = vsel %vm609, %v1461, 0
        %v1509 = vsel %vm609, %v1462, 0
        %v1512 = vsel %vm609, %v1463, 0
        %v1515 = vsel %vm658, %v1464, 0
        %v1518 = vsel %vm658, %v1465, 0
        %1520 = vmatprep.subr.bf16.mxu0 %v1518
        %1521 = vmatpush1.bf16.msra.mxu0 %v1515
        %1522 = vmatprep.subr.bf16.mxu0 0
        %1523 = vmatpush1.bf16.msra.mxu0 0
        %1524 = vmatprep.subr.bf16.mxu0 0
        %1525 = vmatpush1.bf16.msra.mxu0 0
        %1526 = vmatprep.subr.bf16.mxu0 0
        %1527 = vmatpush1.bf16.msra.mxu0 0
        %1528 = vmatprep.subr.bf16.mxu0 0
        %1529 = vmatpush1.bf16.msra.mxu0 0
        %1530 = vmatprep.subr.bf16.mxu0 0
        %1531 = vmatpush1.bf16.msra.mxu0 0
        %1532 = vmatprep.subr.bf16.mxu0 0
        %1533 = vmatpush1.bf16.msra.mxu0 0
        %1534 = vmatprep.subr.bf16.mxu0 0
        %1535 = vmatpush1.bf16.msra.mxu0 0
        %1536 = vmatprep.subr.bf16.mxu0 0
        %1537 = vmatpush1.bf16.msra.mxu0 0
        %1538 = vmatprep.subr.bf16.mxu0 0
        %1539 = vmatpush1.bf16.msra.mxu0 0
        %1540 = vmatprep.subr.bf16.mxu0 0
        %1541 = vmatpush1.bf16.msra.mxu0 0
        %1542 = vmatprep.subr.bf16.mxu0 0
        %1543 = vmatpush1.bf16.msra.mxu0 0
        %1544 = vmatprep.subr.bf16.mxu0 0
        %1545 = vmatpush1.bf16.msra.mxu0 0
        %1546 = vmatprep.subr.bf16.mxu0 0
        %1547 = vmatpush1.bf16.msra.mxu0 0
        %1548 = vmatprep.subr.bf16.mxu0 0
        %1549 = vmatpush1.bf16.msra.mxu0 0
        %1550 = vmatprep.subr.bf16.mxu0 0
        %1551 = vmatpush1.bf16.msra.mxu0 0
        %1552 = vmatprep.mubr.bf16.mxu0 0
        %1553 = vmatmul.mubr.bf16.gmra.mrb[0].mxu0 %v1467
        %v1554 = vpop.f32.mrb[0].mxu0
        %v1555 = vadd.f32 0.0, %v1554
        %v1556 = vpop.f32.mrb[0].mxu0
        %v1557 = vadd.f32 0.0, %v1556
        %v1558 = vpop.f32.mrb[0].mxu0
        %v1559 = vadd.f32 0.0, %v1558
        %v1560 = vpop.f32.mrb[0].mxu0
        %v1561 = vadd.f32 0.0, %v1560
        %1562 = vmatprep.mubr.bf16.mxu0 0
        %1563 = vmatmul.mubr.bf16.gmra.mrb[0].mxu0 %v1470
        %v1564 = vpop.f32.mrb[0].mxu0
        %v1565 = vadd.f32 0.0, %v1564
        %v1566 = vpop.f32.mrb[0].mxu0
        %v1567 = vadd.f32 0.0, %v1566
        %v1568 = vpop.f32.mrb[0].mxu0
        %v1569 = vadd.f32 0.0, %v1568
        %v1570 = vpop.f32.mrb[0].mxu0
        %v1571 = vadd.f32 0.0, %v1570
        %1572 = vmatprep.mubr.bf16.mxu0 0
        %1573 = vmatmul.mubr.bf16.gmra.mrb[0].mxu0 %v1473
        %v1574 = vpop.f32.mrb[0].mxu0
        %v1575 = vadd.f32 0.0, %v1574
        %v1576 = vpop.f32.mrb[0].mxu0
        %v1577 = vadd.f32 0.0, %v1576
        %v1578 = vpop.f32.mrb[0].mxu0
        %v1579 = vadd.f32 0.0, %v1578
        %v1580 = vpop.f32.mrb[0].mxu0
        %v1581 = vadd.f32 0.0, %v1580
        %1582 = vmatprep.mubr.bf16.mxu0 0
        %1583 = vmatmul.mubr.bf16.gmra.mrb[0].mxu0 %v1476
        %v1584 = vpop.f32.mrb[0].mxu0
        %v1585 = vadd.f32 0.0, %v1584
        %v1586 = vpop.f32.mrb[0].mxu0
        %v1587 = vadd.f32 0.0, %v1586
        %v1588 = vpop.f32.mrb[0].mxu0
        %v1589 = vadd.f32 0.0, %v1588
        %v1590 = vpop.f32.mrb[0].mxu0
        %v1591 = vadd.f32 0.0, %v1590
        %1592 = vmatprep.mubr.bf16.mxu0 0
        %1593 = vmatmul.mubr.bf16.gmra.mrb[0].mxu0 %v1479
        %v1594 = vpop.f32.mrb[0].mxu0
        %v1595 = vadd.f32 0.0, %v1594
        %v1596 = vpop.f32.mrb[0].mxu0
        %v1597 = vadd.f32 0.0, %v1596
        %v1598 = vpop.f32.mrb[0].mxu0
        %v1599 = vadd.f32 0.0, %v1598
        %v1600 = vpop.f32.mrb[0].mxu0
        %v1601 = vadd.f32 0.0, %v1600
        %1602 = vmatprep.mubr.bf16.mxu0 0
        %1603 = vmatmul.mubr.bf16.gmra.mrb[0].mxu0 %v1482
        %v1604 = vpop.f32.mrb[0].mxu0
        %v1605 = vadd.f32 0.0, %v1604
        %v1606 = vpop.f32.mrb[0].mxu0
        %v1607 = vadd.f32 0.0, %v1606
        %v1608 = vpop.f32.mrb[0].mxu0
        %v1609 = vadd.f32 0.0, %v1608
        %v1610 = vpop.f32.mrb[0].mxu0
        %v1611 = vadd.f32 0.0, %v1610
        %1612 = vmatprep.mubr.bf16.mxu0 0
        %1613 = vmatmul.mubr.bf16.gmra.mrb[0].mxu0 %v1485
        %v1614 = vpop.f32.mrb[0].mxu0
        %v1615 = vadd.f32 0.0, %v1614
        %v1616 = vpop.f32.mrb[0].mxu0
        %v1617 = vadd.f32 0.0, %v1616
        %v1618 = vpop.f32.mrb[0].mxu0
        %v1619 = vadd.f32 0.0, %v1618
        %v1620 = vpop.f32.mrb[0].mxu0
        %v1621 = vadd.f32 0.0, %v1620
        %1622 = vmatprep.mubr.bf16.mxu0 0
        %1623 = vmatmul.mubr.bf16.gmra.mrb[0].mxu0 %v1488
        %v1624 = vpop.f32.mrb[0].mxu0
        %v1625 = vadd.f32 0.0, %v1624
        %v1626 = vpop.f32.mrb[0].mxu0
        %v1627 = vadd.f32 0.0, %v1626
        %v1628 = vpop.f32.mrb[0].mxu0
        %v1629 = vadd.f32 0.0, %v1628
        %v1630 = vpop.f32.mrb[0].mxu0
        %v1631 = vadd.f32 0.0, %v1630
        %1632 = vmatprep.mubr.bf16.mxu0 0
        %1633 = vmatmul.mubr.bf16.gmra.mrb[0].mxu0 %v1491
        %v1634 = vpop.f32.mrb[0].mxu0
        %v1635 = vadd.f32 0.0, %v1634
        %v1636 = vpop.f32.mrb[0].mxu0
        %v1637 = vadd.f32 0.0, %v1636
        %v1638 = vpop.f32.mrb[0].mxu0
        %v1639 = vadd.f32 0.0, %v1638
        %v1640 = vpop.f32.mrb[0].mxu0
        %v1641 = vadd.f32 0.0, %v1640
        %1642 = vmatprep.mubr.bf16.mxu0 0
        %1643 = vmatmul.mubr.bf16.gmra.mrb[0].mxu0 %v1494
        %v1644 = vpop.f32.mrb[0].mxu0
        %v1645 = vadd.f32 0.0, %v1644
        %v1646 = vpop.f32.mrb[0].mxu0
        %v1647 = vadd.f32 0.0, %v1646
        %v1648 = vpop.f32.mrb[0].mxu0
        %v1649 = vadd.f32 0.0, %v1648
        %v1650 = vpop.f32.mrb[0].mxu0
        %v1651 = vadd.f32 0.0, %v1650
        %1652 = vmatprep.mubr.bf16.mxu0 0
        %1653 = vmatmul.mubr.bf16.gmra.mrb[0].mxu0 %v1497
        %v1654 = vpop.f32.mrb[0].mxu0
        %v1655 = vadd.f32 0.0, %v1654
        %v1656 = vpop.f32.mrb[0].mxu0
        %v1657 = vadd.f32 0.0, %v1656
        %v1658 = vpop.f32.mrb[0].mxu0
        %v1659 = vadd.f32 0.0, %v1658
        %v1660 = vpop.f32.mrb[0].mxu0
        %v1661 = vadd.f32 0.0, %v1660
        %1662 = vmatprep.mubr.bf16.mxu0 0
        %1663 = vmatmul.mubr.bf16.gmra.mrb[0].mxu0 %v1500
        %v1664 = vpop.f32.mrb[0].mxu0
        %v1665 = vadd.f32 0.0, %v1664
        %v1666 = vpop.f32.mrb[0].mxu0
        %v1667 = vadd.f32 0.0, %v1666
        %v1668 = vpop.f32.mrb[0].mxu0
        %v1669 = vadd.f32 0.0, %v1668
        %v1670 = vpop.f32.mrb[0].mxu0
        %v1671 = vadd.f32 0.0, %v1670
        %1672 = vmatprep.mubr.bf16.mxu0 0
        %1673 = vmatmul.mubr.bf16.gmra.mrb[0].mxu0 %v1503
        %v1674 = vpop.f32.mrb[0].mxu0
        %v1675 = vadd.f32 0.0, %v1674
        %v1676 = vpop.f32.mrb[0].mxu0
        %v1677 = vadd.f32 0.0, %v1676
        %v1678 = vpop.f32.mrb[0].mxu0
        %v1679 = vadd.f32 0.0, %v1678
        %v1680 = vpop.f32.mrb[0].mxu0
        %v1681 = vadd.f32 0.0, %v1680
        %1682 = vmatprep.mubr.bf16.mxu0 0
        %1683 = vmatmul.mubr.bf16.gmra.mrb[0].mxu0 %v1506
        %v1684 = vpop.f32.mrb[0].mxu0
        %v1685 = vadd.f32 0.0, %v1684
        %v1686 = vpop.f32.mrb[0].mxu0
        %v1687 = vadd.f32 0.0, %v1686
        %v1688 = vpop.f32.mrb[0].mxu0
        %v1689 = vadd.f32 0.0, %v1688
        %v1690 = vpop.f32.mrb[0].mxu0
        %v1691 = vadd.f32 0.0, %v1690
        %1692 = vmatprep.mubr.bf16.mxu0 0
        %1693 = vmatmul.mubr.bf16.gmra.mrb[0].mxu0 %v1509
        %v1694 = vpop.f32.mrb[0].mxu0
        %v1695 = vadd.f32 0.0, %v1694
        %v1696 = vpop.f32.mrb[0].mxu0
        %v1697 = vadd.f32 0.0, %v1696
        %v1698 = vpop.f32.mrb[0].mxu0
        %v1699 = vadd.f32 0.0, %v1698
        %v1700 = vpop.f32.mrb[0].mxu0
        %v1701 = vadd.f32 0.0, %v1700
        %1702 = vmatprep.mubr.bf16.mxu0 0
        %1703 = vmatmul.mubr.bf16.gmra.mrb[0].mxu0 %v1512
        %v1704 = vpop.f32.mrb[0].mxu0
        %v1705 = vadd.f32 0.0, %v1704
        %v1706 = vpop.f32.mrb[0].mxu0
        %v1707 = vadd.f32 0.0, %v1706
        %v1708 = vpop.f32.mrb[0].mxu0
        %v1709 = vadd.f32 0.0, %v1708
        %v1710 = vpop.f32.mrb[0].mxu0
        %v1711 = vadd.f32 0.0, %v1710
        %1712 = vdwg.mxu0
        %v1713 = vmax.f32 %v700, %v702
        %1714 = vmax.xlane.f32.xlu0 %v1713
        %v1715 = vpop.xlane.xlu0 %1714
        %v1716 = vmax.f32 %v704, %v706
        %1717 = vmax.xlane.f32.xlu0 %v1716
        %v1718 = vpop.xlane.xlu0 %1717
        %v1719 = vmax.f32 %v710, %v712
        %1720 = vmax.xlane.f32.xlu0 %v1719
        %v1721 = vpop.xlane.xlu0 %1720
        %v1722 = vmax.f32 %v714, %v716
        %1723 = vmax.xlane.f32.xlu0 %v1722
        %v1724 = vpop.xlane.xlu0 %1723
        %v1725 = vmax.f32 %v720, %v722
        %1726 = vmax.xlane.f32.xlu0 %v1725
        %v1727 = vpop.xlane.xlu0 %1726
        %v1728 = vmax.f32 %v724, %v726
        %1729 = vmax.xlane.f32.xlu0 %v1728
        %v1730 = vpop.xlane.xlu0 %1729
        %v1731 = vmax.f32 %v730, %v732
        %1732 = vmax.xlane.f32.xlu0 %v1731
        %v1733 = vpop.xlane.xlu0 %1732
        %v1734 = vmax.f32 %v734, %v736
        %1735 = vmax.xlane.f32.xlu0 %v1734
        %v1736 = vpop.xlane.xlu0 %1735
        %v1737 = vmax.f32 %v740, %v742
        %1738 = vmax.xlane.f32.xlu0 %v1737
        %v1739 = vpop.xlane.xlu0 %1738
        %v1740 = vmax.f32 %v744, %v746
        %1741 = vmax.xlane.f32.xlu0 %v1740
        %v1742 = vpop.xlane.xlu0 %1741
        %v1743 = vmax.f32 %v750, %v752
        %1744 = vmax.xlane.f32.xlu0 %v1743
        %v1745 = vpop.xlane.xlu0 %1744
        %v1746 = vmax.f32 %v754, %v756
        %1747 = vmax.xlane.f32.xlu0 %v1746
        %v1748 = vpop.xlane.xlu0 %1747
        %v1749 = vmax.f32 %v760, %v762
        %1750 = vmax.xlane.f32.xlu0 %v1749
        %v1751 = vpop.xlane.xlu0 %1750
        %v1752 = vmax.f32 %v764, %v766
        %1753 = vmax.xlane.f32.xlu0 %v1752
        %v1754 = vpop.xlane.xlu0 %1753
        %v1755 = vmax.f32 %v770, %v772
        %1756 = vmax.xlane.f32.xlu0 %v1755
        %v1757 = vpop.xlane.xlu0 %1756
        %v1758 = vmax.f32 %v774, %v776
        %1759 = vmax.xlane.f32.xlu0 %v1758
        %v1760 = vpop.xlane.xlu0 %1759
        %v1761 = vmax.f32 %v780, %v782
        %1762 = vmax.xlane.f32.xlu0 %v1761
        %v1763 = vpop.xlane.xlu0 %1762
        %v1764 = vmax.f32 %v784, %v786
        %1765 = vmax.xlane.f32.xlu0 %v1764
        %v1766 = vpop.xlane.xlu0 %1765
        %v1767 = vmax.f32 %v790, %v792
        %1768 = vmax.xlane.f32.xlu0 %v1767
        %v1769 = vpop.xlane.xlu0 %1768
        %v1770 = vmax.f32 %v794, %v796
        %1771 = vmax.xlane.f32.xlu0 %v1770
        %v1772 = vpop.xlane.xlu0 %1771
        %v1773 = vmax.f32 %v800, %v802
        %1774 = vmax.xlane.f32.xlu0 %v1773
        %v1775 = vpop.xlane.xlu0 %1774
        %v1776 = vmax.f32 %v804, %v806
        %1777 = vmax.xlane.f32.xlu0 %v1776
        %v1778 = vpop.xlane.xlu0 %1777
        %v1779 = vmax.f32 %v810, %v812
        %1780 = vmax.xlane.f32.xlu0 %v1779
        %v1781 = vpop.xlane.xlu0 %1780
        %v1782 = vmax.f32 %v814, %v816
        %1783 = vmax.xlane.f32.xlu0 %v1782
        %v1784 = vpop.xlane.xlu0 %1783
        %v1785 = vmax.f32 %v820, %v822
        %1786 = vmax.xlane.f32.xlu0 %v1785
        %v1787 = vpop.xlane.xlu0 %1786
        %v1788 = vmax.f32 %v824, %v826
        %1789 = vmax.xlane.f32.xlu0 %v1788
        %v1790 = vpop.xlane.xlu0 %1789
        %v1791 = vmax.f32 %v830, %v832
        %1792 = vmax.xlane.f32.xlu0 %v1791
        %v1793 = vpop.xlane.xlu0 %1792
        %v1794 = vmax.f32 %v834, %v836
        %1795 = vmax.xlane.f32.xlu0 %v1794
        %v1796 = vpop.xlane.xlu0 %1795
        %v1797 = vmax.f32 %v840, %v842
        %1798 = vmax.xlane.f32.xlu0 %v1797
        %v1799 = vpop.xlane.xlu0 %1798
        %v1800 = vmax.f32 %v844, %v846
        %1801 = vmax.xlane.f32.xlu0 %v1800
        %v1802 = vpop.xlane.xlu0 %1801
        %v1803 = vmax.f32 %v850, %v852
        %1804 = vmax.xlane.f32.xlu0 %v1803
        %v1805 = vpop.xlane.xlu0 %1804
        %v1806 = vmax.f32 %v854, %v856
        %1807 = vmax.xlane.f32.xlu0 %v1806
        %v1808 = vpop.xlane.xlu0 %1807
        %v1809 = vmax.f32 %v985, %v987
        %1810 = vmax.xlane.f32.xlu0 %v1809
        %v1811 = vpop.xlane.xlu0 %1810
        %v1812 = vmax.f32 %v989, %v991
        %1813 = vmax.xlane.f32.xlu0 %v1812
        %v1814 = vpop.xlane.xlu0 %1813
        %v1815 = vmax.f32 %v995, %v997
        %1816 = vmax.xlane.f32.xlu0 %v1815
        %v1817 = vpop.xlane.xlu0 %1816
        %v1818 = vmax.f32 %v999, %v1001
        %1819 = vmax.xlane.f32.xlu0 %v1818
        %v1820 = vpop.xlane.xlu0 %1819
        %v1821 = vmax.f32 %v1005, %v1007
        %1822 = vmax.xlane.f32.xlu0 %v1821
        %v1823 = vpop.xlane.xlu0 %1822
        %v1824 = vmax.f32 %v1009, %v1011
        %1825 = vmax.xlane.f32.xlu0 %v1824
        %v1826 = vpop.xlane.xlu0 %1825
        %v1827 = vmax.f32 %v1015, %v1017
        %1828 = vmax.xlane.f32.xlu0 %v1827
        %v1829 = vpop.xlane.xlu0 %1828
        %v1830 = vmax.f32 %v1019, %v1021
        %1831 = vmax.xlane.f32.xlu0 %v1830
        %v1832 = vpop.xlane.xlu0 %1831
        %v1833 = vmax.f32 %v1025, %v1027
        %1834 = vmax.xlane.f32.xlu0 %v1833
        %v1835 = vpop.xlane.xlu0 %1834
        %v1836 = vmax.f32 %v1029, %v1031
        %1837 = vmax.xlane.f32.xlu0 %v1836
        %v1838 = vpop.xlane.xlu0 %1837
        %v1839 = vmax.f32 %v1035, %v1037
        %1840 = vmax.xlane.f32.xlu0 %v1839
        %v1841 = vpop.xlane.xlu0 %1840
        %v1842 = vmax.f32 %v1039, %v1041
        %1843 = vmax.xlane.f32.xlu0 %v1842
        %v1844 = vpop.xlane.xlu0 %1843
        %v1845 = vmax.f32 %v1045, %v1047
        %1846 = vmax.xlane.f32.xlu0 %v1845
        %v1847 = vpop.xlane.xlu0 %1846
        %v1848 = vmax.f32 %v1049, %v1051
        %1849 = vmax.xlane.f32.xlu0 %v1848
        %v1850 = vpop.xlane.xlu0 %1849
        %v1851 = vmax.f32 %v1055, %v1057
        %1852 = vmax.xlane.f32.xlu0 %v1851
        %v1853 = vpop.xlane.xlu0 %1852
        %v1854 = vmax.f32 %v1059, %v1061
        %1855 = vmax.xlane.f32.xlu0 %v1854
        %v1856 = vpop.xlane.xlu0 %1855
        %v1857 = vmax.f32 %v1065, %v1067
        %1858 = vmax.xlane.f32.xlu0 %v1857
        %v1859 = vpop.xlane.xlu0 %1858
        %v1860 = vmax.f32 %v1069, %v1071
        %1861 = vmax.xlane.f32.xlu0 %v1860
        %v1862 = vpop.xlane.xlu0 %1861
        %v1863 = vmax.f32 %v1075, %v1077
        %1864 = vmax.xlane.f32.xlu0 %v1863
        %v1865 = vpop.xlane.xlu0 %1864
        %v1866 = vmax.f32 %v1079, %v1081
        %1867 = vmax.xlane.f32.xlu0 %v1866
        %v1868 = vpop.xlane.xlu0 %1867
        %v1869 = vmax.f32 %v1085, %v1087
        %1870 = vmax.xlane.f32.xlu0 %v1869
        %v1871 = vpop.xlane.xlu0 %1870
        %v1872 = vmax.f32 %v1089, %v1091
        %1873 = vmax.xlane.f32.xlu0 %v1872
        %v1874 = vpop.xlane.xlu0 %1873
        %v1875 = vmax.f32 %v1095, %v1097
        %1876 = vmax.xlane.f32.xlu0 %v1875
        %v1877 = vpop.xlane.xlu0 %1876
        %v1878 = vmax.f32 %v1099, %v1101
        %1879 = vmax.xlane.f32.xlu0 %v1878
        %v1880 = vpop.xlane.xlu0 %1879
        %v1881 = vmax.f32 %v1105, %v1107
        %1882 = vmax.xlane.f32.xlu0 %v1881
        %v1883 = vpop.xlane.xlu0 %1882
        %v1884 = vmax.f32 %v1109, %v1111
        %1885 = vmax.xlane.f32.xlu0 %v1884
        %v1886 = vpop.xlane.xlu0 %1885
        %v1887 = vmax.f32 %v1115, %v1117
        %1888 = vmax.xlane.f32.xlu0 %v1887
        %v1889 = vpop.xlane.xlu0 %1888
        %v1890 = vmax.f32 %v1119, %v1121
        %1891 = vmax.xlane.f32.xlu0 %v1890
        %v1892 = vpop.xlane.xlu0 %1891
        %v1893 = vmax.f32 %v1125, %v1127
        %1894 = vmax.xlane.f32.xlu0 %v1893
        %v1895 = vpop.xlane.xlu0 %1894
        %v1896 = vmax.f32 %v1129, %v1131
        %1897 = vmax.xlane.f32.xlu0 %v1896
        %v1898 = vpop.xlane.xlu0 %1897
        %v1899 = vmax.f32 %v1135, %v1137
        %1900 = vmax.xlane.f32.xlu0 %v1899
        %v1901 = vpop.xlane.xlu0 %1900
        %v1902 = vmax.f32 %v1139, %v1141
        %1903 = vmax.xlane.f32.xlu0 %v1902
        %v1904 = vpop.xlane.xlu0 %1903
        %v1905 = vmax.f32 %v1270, %v1272
        %1906 = vmax.xlane.f32.xlu0 %v1905
        %v1907 = vpop.xlane.xlu0 %1906
        %v1908 = vmax.f32 %v1274, %v1276
        %1909 = vmax.xlane.f32.xlu0 %v1908
        %v1910 = vpop.xlane.xlu0 %1909
        %v1911 = vmax.f32 %v1280, %v1282
        %1912 = vmax.xlane.f32.xlu0 %v1911
        %v1913 = vpop.xlane.xlu0 %1912
        %v1914 = vmax.f32 %v1284, %v1286
        %1915 = vmax.xlane.f32.xlu0 %v1914
        %v1916 = vpop.xlane.xlu0 %1915
        %v1917 = vmax.f32 %v1290, %v1292
        %1918 = vmax.xlane.f32.xlu0 %v1917
        %v1919 = vpop.xlane.xlu0 %1918
        %v1920 = vmax.f32 %v1294, %v1296
        %1921 = vmax.xlane.f32.xlu0 %v1920
        %v1922 = vpop.xlane.xlu0 %1921
        %v1923 = vmax.f32 %v1300, %v1302
        %1924 = vmax.xlane.f32.xlu0 %v1923
        %v1925 = vpop.xlane.xlu0 %1924
        %v1926 = vmax.f32 %v1304, %v1306
        %1927 = vmax.xlane.f32.xlu0 %v1926
        %v1928 = vpop.xlane.xlu0 %1927
        %v1929 = vmax.f32 %v1310, %v1312
        %1930 = vmax.xlane.f32.xlu0 %v1929
        %v1931 = vpop.xlane.xlu0 %1930
        %v1932 = vmax.f32 %v1314, %v1316
        %1933 = vmax.xlane.f32.xlu0 %v1932
        %v1934 = vpop.xlane.xlu0 %1933
        %v1935 = vmax.f32 %v1320, %v1322
        %1936 = vmax.xlane.f32.xlu0 %v1935
        %v1937 = vpop.xlane.xlu0 %1936
        %v1938 = vmax.f32 %v1324, %v1326
        %1939 = vmax.xlane.f32.xlu0 %v1938
        %v1940 = vpop.xlane.xlu0 %1939
        %v1941 = vmax.f32 %v1330, %v1332
        %1942 = vmax.xlane.f32.xlu0 %v1941
        %v1943 = vpop.xlane.xlu0 %1942
        %v1944 = vmax.f32 %v1334, %v1336
        %1945 = vmax.xlane.f32.xlu0 %v1944
        %v1946 = vpop.xlane.xlu0 %1945
        %v1947 = vmax.f32 %v1340, %v1342
        %1948 = vmax.xlane.f32.xlu0 %v1947
        %v1949 = vpop.xlane.xlu0 %1948
        %v1950 = vmax.f32 %v1344, %v1346
        %1951 = vmax.xlane.f32.xlu0 %v1950
        %v1952 = vpop.xlane.xlu0 %1951
        %v1953 = vmax.f32 %v1350, %v1352
        %1954 = vmax.xlane.f32.xlu0 %v1953
        %v1955 = vpop.xlane.xlu0 %1954
        %v1956 = vmax.f32 %v1354, %v1356
        %1957 = vmax.xlane.f32.xlu0 %v1956
        %v1958 = vpop.xlane.xlu0 %1957
        %v1959 = vmax.f32 %v1360, %v1362
        %1960 = vmax.xlane.f32.xlu0 %v1959
        %v1961 = vpop.xlane.xlu0 %1960
        %v1962 = vmax.f32 %v1364, %v1366
        %1963 = vmax.xlane.f32.xlu0 %v1962
        %v1964 = vpop.xlane.xlu0 %1963
        %v1965 = vmax.f32 %v1370, %v1372
        %1966 = vmax.xlane.f32.xlu0 %v1965
        %v1967 = vpop.xlane.xlu0 %1966
        %v1968 = vmax.f32 %v1374, %v1376
        %1969 = vmax.xlane.f32.xlu0 %v1968
        %v1970 = vpop.xlane.xlu0 %1969
        %v1971 = vmax.f32 %v1380, %v1382
        %1972 = vmax.xlane.f32.xlu0 %v1971
        %v1973 = vpop.xlane.xlu0 %1972
        %v1974 = vmax.f32 %v1384, %v1386
        %1975 = vmax.xlane.f32.xlu0 %v1974
        %v1976 = vpop.xlane.xlu0 %1975
        %v1977 = vmax.f32 %v1390, %v1392
        %1978 = vmax.xlane.f32.xlu0 %v1977
        %v1979 = vpop.xlane.xlu0 %1978
        %v1980 = vmax.f32 %v1394, %v1396
        %1981 = vmax.xlane.f32.xlu0 %v1980
        %v1982 = vpop.xlane.xlu0 %1981
        %v1983 = vmax.f32 %v1400, %v1402
        %1984 = vmax.xlane.f32.xlu0 %v1983
        %v1985 = vpop.xlane.xlu0 %1984
        %v1986 = vmax.f32 %v1404, %v1406
        %1987 = vmax.xlane.f32.xlu0 %v1986
        %v1988 = vpop.xlane.xlu0 %1987
        %v1989 = vmax.f32 %v1410, %v1412
        %1990 = vmax.xlane.f32.xlu0 %v1989
        %v1991 = vpop.xlane.xlu0 %1990
        %v1992 = vmax.f32 %v1414, %v1416
        %1993 = vmax.xlane.f32.xlu0 %v1992
        %v1994 = vpop.xlane.xlu0 %1993
        %v1995 = vmax.f32 %v1420, %v1422
        %1996 = vmax.xlane.f32.xlu0 %v1995
        %v1997 = vpop.xlane.xlu0 %1996
        %v1998 = vmax.f32 %v1424, %v1426
        %1999 = vmax.xlane.f32.xlu0 %v1998
        %v2000 = vpop.xlane.xlu0 %1999
        %v2001 = vmax.f32 %v1555, %v1557
        %2002 = vmax.xlane.f32.xlu0 %v2001
        %v2003 = vpop.xlane.xlu0 %2002
        %v2004 = vmax.f32 %v1559, %v1561
        %2005 = vmax.xlane.f32.xlu0 %v2004
        %v2006 = vpop.xlane.xlu0 %2005
        %v2007 = vmax.f32 %v1565, %v1567
        %2008 = vmax.xlane.f32.xlu0 %v2007
        %v2009 = vpop.xlane.xlu0 %2008
        %v2010 = vmax.f32 %v1569, %v1571
        %2011 = vmax.xlane.f32.xlu0 %v2010
        %v2012 = vpop.xlane.xlu0 %2011
        %v2013 = vmax.f32 %v1575, %v1577
        %2014 = vmax.xlane.f32.xlu0 %v2013
        %v2015 = vpop.xlane.xlu0 %2014
        %v2016 = vmax.f32 %v1579, %v1581
        %2017 = vmax.xlane.f32.xlu0 %v2016
        %v2018 = vpop.xlane.xlu0 %2017
        %v2019 = vmax.f32 %v1585, %v1587
        %2020 = vmax.xlane.f32.xlu0 %v2019
        %v2021 = vpop.xlane.xlu0 %2020
        %v2022 = vmax.f32 %v1589, %v1591
        %2023 = vmax.xlane.f32.xlu0 %v2022
        %v2024 = vpop.xlane.xlu0 %2023
        %v2025 = vmax.f32 %v1595, %v1597
        %2026 = vmax.xlane.f32.xlu0 %v2025
        %v2027 = vpop.xlane.xlu0 %2026
        %v2028 = vmax.f32 %v1599, %v1601
        %2029 = vmax.xlane.f32.xlu0 %v2028
        %v2030 = vpop.xlane.xlu0 %2029
        %v2031 = vmax.f32 %v1605, %v1607
        %2032 = vmax.xlane.f32.xlu0 %v2031
        %v2033 = vpop.xlane.xlu0 %2032
        %v2034 = vmax.f32 %v1609, %v1611
        %2035 = vmax.xlane.f32.xlu0 %v2034
        %v2036 = vpop.xlane.xlu0 %2035
        %v2037 = vmax.f32 %v1615, %v1617
        %2038 = vmax.xlane.f32.xlu0 %v2037
        %v2039 = vpop.xlane.xlu0 %2038
        %v2040 = vmax.f32 %v1619, %v1621
        %2041 = vmax.xlane.f32.xlu0 %v2040
        %v2042 = vpop.xlane.xlu0 %2041
        %v2043 = vmax.f32 %v1625, %v1627
        %2044 = vmax.xlane.f32.xlu0 %v2043
        %v2045 = vpop.xlane.xlu0 %2044
        %v2046 = vmax.f32 %v1629, %v1631
        %2047 = vmax.xlane.f32.xlu0 %v2046
        %v2048 = vpop.xlane.xlu0 %2047
        %v2049 = vmax.f32 %v1635, %v1637
        %2050 = vmax.xlane.f32.xlu0 %v2049
        %v2051 = vpop.xlane.xlu0 %2050
        %v2052 = vmax.f32 %v1639, %v1641
        %2053 = vmax.xlane.f32.xlu0 %v2052
        %v2054 = vpop.xlane.xlu0 %2053
        %v2055 = vmax.f32 %v1645, %v1647
        %2056 = vmax.xlane.f32.xlu0 %v2055
        %v2057 = vpop.xlane.xlu0 %2056
        %v2058 = vmax.f32 %v1649, %v1651
        %2059 = vmax.xlane.f32.xlu0 %v2058
        %v2060 = vpop.xlane.xlu0 %2059
        %v2061 = vmax.f32 %v1655, %v1657
        %2062 = vmax.xlane.f32.xlu0 %v2061
        %v2063 = vpop.xlane.xlu0 %2062
        %v2064 = vmax.f32 %v1659, %v1661
        %2065 = vmax.xlane.f32.xlu0 %v2064
        %v2066 = vpop.xlane.xlu0 %2065
        %v2067 = vmax.f32 %v1665, %v1667
        %2068 = vmax.xlane.f32.xlu0 %v2067
        %v2069 = vpop.xlane.xlu0 %2068
        %v2070 = vmax.f32 %v1669, %v1671
        %2071 = vmax.xlane.f32.xlu0 %v2070
        %v2072 = vpop.xlane.xlu0 %2071
        %v2073 = vmax.f32 %v1675, %v1677
        %2074 = vmax.xlane.f32.xlu0 %v2073
        %v2075 = vpop.xlane.xlu0 %2074
        %v2076 = vmax.f32 %v1679, %v1681
        %2077 = vmax.xlane.f32.xlu0 %v2076
        %v2078 = vpop.xlane.xlu0 %2077
        %v2079 = vmax.f32 %v1685, %v1687
        %2080 = vmax.xlane.f32.xlu0 %v2079
        %v2081 = vpop.xlane.xlu0 %2080
        %v2082 = vmax.f32 %v1689, %v1691
        %2083 = vmax.xlane.f32.xlu0 %v2082
        %v2084 = vpop.xlane.xlu0 %2083
        %v2085 = vmax.f32 %v1695, %v1697
        %2086 = vmax.xlane.f32.xlu0 %v2085
        %v2087 = vpop.xlane.xlu0 %2086
        %v2088 = vmax.f32 %v1699, %v1701
        %2089 = vmax.xlane.f32.xlu0 %v2088
        %v2090 = vpop.xlane.xlu0 %2089
        %v2091 = vmax.f32 %v1705, %v1707
        %2092 = vmax.xlane.f32.xlu0 %v2091
        %v2093 = vpop.xlane.xlu0 %2092
        %v2094 = vmax.f32 %v1709, %v1711
        %2095 = vmax.xlane.f32.xlu0 %v2094
        %v2096 = vpop.xlane.xlu0 %2095
        %v2097 = vsub.f32 %v700, %v1715
        %v2098 = vsub.f32 %v702, %v1715
        %v2099 = vsub.f32 %v704, %v1718
        %v2100 = vsub.f32 %v706, %v1718
        %v2101 = vsub.f32 %v710, %v1721
        %v2102 = vsub.f32 %v712, %v1721
        %v2103 = vsub.f32 %v714, %v1724
        %v2104 = vsub.f32 %v716, %v1724
        %v2105 = vsub.f32 %v720, %v1727
        %v2106 = vsub.f32 %v722, %v1727
        %v2107 = vsub.f32 %v724, %v1730
        %v2108 = vsub.f32 %v726, %v1730
        %v2109 = vsub.f32 %v730, %v1733
        %v2110 = vsub.f32 %v732, %v1733
        %v2111 = vsub.f32 %v734, %v1736
        %v2112 = vsub.f32 %v736, %v1736
        %v2113 = vsub.f32 %v740, %v1739
        %v2114 = vsub.f32 %v742, %v1739
        %v2115 = vsub.f32 %v744, %v1742
        %v2116 = vsub.f32 %v746, %v1742
        %v2117 = vsub.f32 %v750, %v1745
        %v2118 = vsub.f32 %v752, %v1745
        %v2119 = vsub.f32 %v754, %v1748
        %v2120 = vsub.f32 %v756, %v1748
        %v2121 = vsub.f32 %v760, %v1751
        %v2122 = vsub.f32 %v762, %v1751
        %v2123 = vsub.f32 %v764, %v1754
        %v2124 = vsub.f32 %v766, %v1754
        %v2125 = vsub.f32 %v770, %v1757
        %v2126 = vsub.f32 %v772, %v1757
        %v2127 = vsub.f32 %v774, %v1760
        %v2128 = vsub.f32 %v776, %v1760
        %v2129 = vsub.f32 %v780, %v1763
        %v2130 = vsub.f32 %v782, %v1763
        %v2131 = vsub.f32 %v784, %v1766
        %v2132 = vsub.f32 %v786, %v1766
        %v2133 = vsub.f32 %v790, %v1769
        %v2134 = vsub.f32 %v792, %v1769
        %v2135 = vsub.f32 %v794, %v1772
        %v2136 = vsub.f32 %v796, %v1772
        %v2137 = vsub.f32 %v800, %v1775
        %v2138 = vsub.f32 %v802, %v1775
        %v2139 = vsub.f32 %v804, %v1778
        %v2140 = vsub.f32 %v806, %v1778
        %v2141 = vsub.f32 %v810, %v1781
        %v2142 = vsub.f32 %v812, %v1781
        %v2143 = vsub.f32 %v814, %v1784
        %v2144 = vsub.f32 %v816, %v1784
        %v2145 = vsub.f32 %v820, %v1787
        %v2146 = vsub.f32 %v822, %v1787
        %v2147 = vsub.f32 %v824, %v1790
        %v2148 = vsub.f32 %v826, %v1790
        %v2149 = vsub.f32 %v830, %v1793
        %v2150 = vsub.f32 %v832, %v1793
        %v2151 = vsub.f32 %v834, %v1796
        %v2152 = vsub.f32 %v836, %v1796
        %v2153 = vsub.f32 %v840, %v1799
        %v2154 = vsub.f32 %v842, %v1799
        %v2155 = vsub.f32 %v844, %v1802
        %v2156 = vsub.f32 %v846, %v1802
        %v2157 = vsub.f32 %v850, %v1805
        %v2158 = vsub.f32 %v852, %v1805
        %v2159 = vsub.f32 %v854, %v1808
        %v2160 = vsub.f32 %v856, %v1808
        %v2161 = vsub.f32 %v985, %v1811
        %v2162 = vsub.f32 %v987, %v1811
        %v2163 = vsub.f32 %v989, %v1814
        %v2164 = vsub.f32 %v991, %v1814
        %v2165 = vsub.f32 %v995, %v1817
        %v2166 = vsub.f32 %v997, %v1817
        %v2167 = vsub.f32 %v999, %v1820
        %v2168 = vsub.f32 %v1001, %v1820
        %v2169 = vsub.f32 %v1005, %v1823
        %v2170 = vsub.f32 %v1007, %v1823
        %v2171 = vsub.f32 %v1009, %v1826
        %v2172 = vsub.f32 %v1011, %v1826
        %v2173 = vsub.f32 %v1015, %v1829
        %v2174 = vsub.f32 %v1017, %v1829
        %v2175 = vsub.f32 %v1019, %v1832
        %v2176 = vsub.f32 %v1021, %v1832
        %v2177 = vsub.f32 %v1025, %v1835
        %v2178 = vsub.f32 %v1027, %v1835
        %v2179 = vsub.f32 %v1029, %v1838
        %v2180 = vsub.f32 %v1031, %v1838
        %v2181 = vsub.f32 %v1035, %v1841
        %v2182 = vsub.f32 %v1037, %v1841
        %v2183 = vsub.f32 %v1039, %v1844
        %v2184 = vsub.f32 %v1041, %v1844
        %v2185 = vsub.f32 %v1045, %v1847
        %v2186 = vsub.f32 %v1047, %v1847
        %v2187 = vsub.f32 %v1049, %v1850
        %v2188 = vsub.f32 %v1051, %v1850
        %v2189 = vsub.f32 %v1055, %v1853
        %v2190 = vsub.f32 %v1057, %v1853
        %v2191 = vsub.f32 %v1059, %v1856
        %v2192 = vsub.f32 %v1061, %v1856
        %v2193 = vsub.f32 %v1065, %v1859
        %v2194 = vsub.f32 %v1067, %v1859
        %v2195 = vsub.f32 %v1069, %v1862
        %v2196 = vsub.f32 %v1071, %v1862
        %v2197 = vsub.f32 %v1075, %v1865
        %v2198 = vsub.f32 %v1077, %v1865
        %v2199 = vsub.f32 %v1079, %v1868
        %v2200 = vsub.f32 %v1081, %v1868
        %v2201 = vsub.f32 %v1085, %v1871
        %v2202 = vsub.f32 %v1087, %v1871
        %v2203 = vsub.f32 %v1089, %v1874
        %v2204 = vsub.f32 %v1091, %v1874
        %v2205 = vsub.f32 %v1095, %v1877
        %v2206 = vsub.f32 %v1097, %v1877
        %v2207 = vsub.f32 %v1099, %v1880
        %v2208 = vsub.f32 %v1101, %v1880
        %v2209 = vsub.f32 %v1105, %v1883
        %v2210 = vsub.f32 %v1107, %v1883
        %v2211 = vsub.f32 %v1109, %v1886
        %v2212 = vsub.f32 %v1111, %v1886
        %v2213 = vsub.f32 %v1115, %v1889
        %v2214 = vsub.f32 %v1117, %v1889
        %v2215 = vsub.f32 %v1119, %v1892
        %v2216 = vsub.f32 %v1121, %v1892
        %v2217 = vsub.f32 %v1125, %v1895
        %v2218 = vsub.f32 %v1127, %v1895
        %v2219 = vsub.f32 %v1129, %v1898
        %v2220 = vsub.f32 %v1131, %v1898
        %v2221 = vsub.f32 %v1135, %v1901
        %v2222 = vsub.f32 %v1137, %v1901
        %v2223 = vsub.f32 %v1139, %v1904
        %v2224 = vsub.f32 %v1141, %v1904
        %v2225 = vsub.f32 %v1270, %v1907
        %v2226 = vsub.f32 %v1272, %v1907
        %v2227 = vsub.f32 %v1274, %v1910
        %v2228 = vsub.f32 %v1276, %v1910
        %v2229 = vsub.f32 %v1280, %v1913
        %v2230 = vsub.f32 %v1282, %v1913
        %v2231 = vsub.f32 %v1284, %v1916
        %v2232 = vsub.f32 %v1286, %v1916
        %v2233 = vsub.f32 %v1290, %v1919
        %v2234 = vsub.f32 %v1292, %v1919
        %v2235 = vsub.f32 %v1294, %v1922
        %v2236 = vsub.f32 %v1296, %v1922
        %v2237 = vsub.f32 %v1300, %v1925
        %v2238 = vsub.f32 %v1302, %v1925
        %v2239 = vsub.f32 %v1304, %v1928
        %v2240 = vsub.f32 %v1306, %v1928
        %v2241 = vsub.f32 %v1310, %v1931
        %v2242 = vsub.f32 %v1312, %v1931
        %v2243 = vsub.f32 %v1314, %v1934
        %v2244 = vsub.f32 %v1316, %v1934
        %v2245 = vsub.f32 %v1320, %v1937
        %v2246 = vsub.f32 %v1322, %v1937
        %v2247 = vsub.f32 %v1324, %v1940
        %v2248 = vsub.f32 %v1326, %v1940
        %v2249 = vsub.f32 %v1330, %v1943
        %v2250 = vsub.f32 %v1332, %v1943
        %v2251 = vsub.f32 %v1334, %v1946
        %v2252 = vsub.f32 %v1336, %v1946
        %v2253 = vsub.f32 %v1340, %v1949
        %v2254 = vsub.f32 %v1342, %v1949
        %v2255 = vsub.f32 %v1344, %v1952
        %v2256 = vsub.f32 %v1346, %v1952
        %v2257 = vsub.f32 %v1350, %v1955
        %v2258 = vsub.f32 %v1352, %v1955
        %v2259 = vsub.f32 %v1354, %v1958
        %v2260 = vsub.f32 %v1356, %v1958
        %v2261 = vsub.f32 %v1360, %v1961
        %v2262 = vsub.f32 %v1362, %v1961
        %v2263 = vsub.f32 %v1364, %v1964
        %v2264 = vsub.f32 %v1366, %v1964
        %v2265 = vsub.f32 %v1370, %v1967
        %v2266 = vsub.f32 %v1372, %v1967
        %v2267 = vsub.f32 %v1374, %v1970
        %v2268 = vsub.f32 %v1376, %v1970
        %v2269 = vsub.f32 %v1380, %v1973
        %v2270 = vsub.f32 %v1382, %v1973
        %v2271 = vsub.f32 %v1384, %v1976
        %v2272 = vsub.f32 %v1386, %v1976
        %v2273 = vsub.f32 %v1390, %v1979
        %v2274 = vsub.f32 %v1392, %v1979
        %v2275 = vsub.f32 %v1394, %v1982
        %v2276 = vsub.f32 %v1396, %v1982
        %v2277 = vsub.f32 %v1400, %v1985
        %v2278 = vsub.f32 %v1402, %v1985
        %v2279 = vsub.f32 %v1404, %v1988
        %v2280 = vsub.f32 %v1406, %v1988
        %v2281 = vsub.f32 %v1410, %v1991
        %v2282 = vsub.f32 %v1412, %v1991
        %v2283 = vsub.f32 %v1414, %v1994
        %v2284 = vsub.f32 %v1416, %v1994
        %v2285 = vsub.f32 %v1420, %v1997
        %v2286 = vsub.f32 %v1422, %v1997
        %v2287 = vsub.f32 %v1424, %v2000
        %v2288 = vsub.f32 %v1426, %v2000
        %v2289 = vsub.f32 %v1555, %v2003
        %v2290 = vsub.f32 %v1557, %v2003
        %v2291 = vsub.f32 %v1559, %v2006
        %v2292 = vsub.f32 %v1561, %v2006
        %v2293 = vsub.f32 %v1565, %v2009
        %v2294 = vsub.f32 %v1567, %v2009
        %v2295 = vsub.f32 %v1569, %v2012
        %v2296 = vsub.f32 %v1571, %v2012
        %v2297 = vsub.f32 %v1575, %v2015
        %v2298 = vsub.f32 %v1577, %v2015
        %v2299 = vsub.f32 %v1579, %v2018
        %v2300 = vsub.f32 %v1581, %v2018
        %v2301 = vsub.f32 %v1585, %v2021
        %v2302 = vsub.f32 %v1587, %v2021
        %v2303 = vsub.f32 %v1589, %v2024
        %v2304 = vsub.f32 %v1591, %v2024
        %v2305 = vsub.f32 %v1595, %v2027
        %v2306 = vsub.f32 %v1597, %v2027
        %v2307 = vsub.f32 %v1599, %v2030
        %v2308 = vsub.f32 %v1601, %v2030
        %v2309 = vsub.f32 %v1605, %v2033
        %v2310 = vsub.f32 %v1607, %v2033
        %v2311 = vsub.f32 %v1609, %v2036
        %v2312 = vsub.f32 %v1611, %v2036
        %v2313 = vsub.f32 %v1615, %v2039
        %v2314 = vsub.f32 %v1617, %v2039
        %v2315 = vsub.f32 %v1619, %v2042
        %v2316 = vsub.f32 %v1621, %v2042
        %v2317 = vsub.f32 %v1625, %v2045
        %v2318 = vsub.f32 %v1627, %v2045
        %v2319 = vsub.f32 %v1629, %v2048
        %v2320 = vsub.f32 %v1631, %v2048
        %v2321 = vsub.f32 %v1635, %v2051
        %v2322 = vsub.f32 %v1637, %v2051
        %v2323 = vsub.f32 %v1639, %v2054
        %v2324 = vsub.f32 %v1641, %v2054
        %v2325 = vsub.f32 %v1645, %v2057
        %v2326 = vsub.f32 %v1647, %v2057
        %v2327 = vsub.f32 %v1649, %v2060
        %v2328 = vsub.f32 %v1651, %v2060
        %v2329 = vsub.f32 %v1655, %v2063
        %v2330 = vsub.f32 %v1657, %v2063
        %v2331 = vsub.f32 %v1659, %v2066
        %v2332 = vsub.f32 %v1661, %v2066
        %v2333 = vsub.f32 %v1665, %v2069
        %v2334 = vsub.f32 %v1667, %v2069
        %v2335 = vsub.f32 %v1669, %v2072
        %v2336 = vsub.f32 %v1671, %v2072
        %v2337 = vsub.f32 %v1675, %v2075
        %v2338 = vsub.f32 %v1677, %v2075
        %v2339 = vsub.f32 %v1679, %v2078
        %v2340 = vsub.f32 %v1681, %v2078
        %v2341 = vsub.f32 %v1685, %v2081
        %v2342 = vsub.f32 %v1687, %v2081
        %v2343 = vsub.f32 %v1689, %v2084
        %v2344 = vsub.f32 %v1691, %v2084
        %v2345 = vsub.f32 %v1695, %v2087
        %v2346 = vsub.f32 %v1697, %v2087
        %v2347 = vsub.f32 %v1699, %v2090
        %v2348 = vsub.f32 %v1701, %v2090
        %v2349 = vsub.f32 %v1705, %v2093
        %v2350 = vsub.f32 %v1707, %v2093
        %v2351 = vsub.f32 %v1709, %v2096
        %v2352 = vsub.f32 %v1711, %v2096
        %v2353 = vmul.f32 %v2097, 1.442695
        %v2354 = vpow.pop %v2353
        %v2355 = vmul.f32 %v2098, 1.442695
        %v2356 = vpow.pop %v2355
        %v2357 = vmul.f32 %v2099, 1.442695
        %v2358 = vpow.pop %v2357
        %v2359 = vmul.f32 %v2100, 1.442695
        %v2360 = vpow.pop %v2359
        %v2361 = vmul.f32 %v2101, 1.442695
        %v2362 = vpow.pop %v2361
        %v2363 = vmul.f32 %v2102, 1.442695
        %v2364 = vpow.pop %v2363
        %v2365 = vmul.f32 %v2103, 1.442695
        %v2366 = vpow.pop %v2365
        %v2367 = vmul.f32 %v2104, 1.442695
        %v2368 = vpow.pop %v2367
        %v2369 = vmul.f32 %v2105, 1.442695
        %v2370 = vpow.pop %v2369
        %v2371 = vmul.f32 %v2106, 1.442695
        %v2372 = vpow.pop %v2371
        %v2373 = vmul.f32 %v2107, 1.442695
        %v2374 = vpow.pop %v2373
        %v2375 = vmul.f32 %v2108, 1.442695
        %v2376 = vpow.pop %v2375
        %v2377 = vmul.f32 %v2109, 1.442695
        %v2378 = vpow.pop %v2377
        %v2379 = vmul.f32 %v2110, 1.442695
        %v2380 = vpow.pop %v2379
        %v2381 = vmul.f32 %v2111, 1.442695
        %v2382 = vpow.pop %v2381
        %v2383 = vmul.f32 %v2112, 1.442695
        %v2384 = vpow.pop %v2383
        %v2385 = vmul.f32 %v2113, 1.442695
        %v2386 = vpow.pop %v2385
        %v2387 = vmul.f32 %v2114, 1.442695
        %v2388 = vpow.pop %v2387
        %v2389 = vmul.f32 %v2115, 1.442695
        %v2390 = vpow.pop %v2389
        %v2391 = vmul.f32 %v2116, 1.442695
        %v2392 = vpow.pop %v2391
        %v2393 = vmul.f32 %v2117, 1.442695
        %v2394 = vpow.pop %v2393
        %v2395 = vmul.f32 %v2118, 1.442695
        %v2396 = vpow.pop %v2395
        %v2397 = vmul.f32 %v2119, 1.442695
        %v2398 = vpow.pop %v2397
        %v2399 = vmul.f32 %v2120, 1.442695
        %v2400 = vpow.pop %v2399
        %v2401 = vmul.f32 %v2121, 1.442695
        %v2402 = vpow.pop %v2401
        %v2403 = vmul.f32 %v2122, 1.442695
        %v2404 = vpow.pop %v2403
        %v2405 = vmul.f32 %v2123, 1.442695
        %v2406 = vpow.pop %v2405
        %v2407 = vmul.f32 %v2124, 1.442695
        %v2408 = vpow.pop %v2407
        %v2409 = vmul.f32 %v2125, 1.442695
        %v2410 = vpow.pop %v2409
        %v2411 = vmul.f32 %v2126, 1.442695
        %v2412 = vpow.pop %v2411
        %v2413 = vmul.f32 %v2127, 1.442695
        %v2414 = vpow.pop %v2413
        %v2415 = vmul.f32 %v2128, 1.442695
        %v2416 = vpow.pop %v2415
        %v2417 = vmul.f32 %v2129, 1.442695
        %v2418 = vpow.pop %v2417
        %v2419 = vmul.f32 %v2130, 1.442695
        %v2420 = vpow.pop %v2419
        %v2421 = vmul.f32 %v2131, 1.442695
        %v2422 = vpow.pop %v2421
        %v2423 = vmul.f32 %v2132, 1.442695
        %v2424 = vpow.pop %v2423
        %v2425 = vmul.f32 %v2133, 1.442695
        %v2426 = vpow.pop %v2425
        %v2427 = vmul.f32 %v2134, 1.442695
        %v2428 = vpow.pop %v2427
        %v2429 = vmul.f32 %v2135, 1.442695
        %v2430 = vpow.pop %v2429
        %v2431 = vmul.f32 %v2136, 1.442695
        %v2432 = vpow.pop %v2431
        %v2433 = vmul.f32 %v2137, 1.442695
        %v2434 = vpow.pop %v2433
        %v2435 = vmul.f32 %v2138, 1.442695
        %v2436 = vpow.pop %v2435
        %v2437 = vmul.f32 %v2139, 1.442695
        %v2438 = vpow.pop %v2437
        %v2439 = vmul.f32 %v2140, 1.442695
        %v2440 = vpow.pop %v2439
        %v2441 = vmul.f32 %v2141, 1.442695
        %v2442 = vpow.pop %v2441
        %v2443 = vmul.f32 %v2142, 1.442695
        %v2444 = vpow.pop %v2443
        %v2445 = vmul.f32 %v2143, 1.442695
        %v2446 = vpow.pop %v2445
        %v2447 = vmul.f32 %v2144, 1.442695
        %v2448 = vpow.pop %v2447
        %v2449 = vmul.f32 %v2145, 1.442695
        %v2450 = vpow.pop %v2449
        %v2451 = vmul.f32 %v2146, 1.442695
        %v2452 = vpow.pop %v2451
        %v2453 = vmul.f32 %v2147, 1.442695
        %v2454 = vpow.pop %v2453
        %v2455 = vmul.f32 %v2148, 1.442695
        %v2456 = vpow.pop %v2455
        %v2457 = vmul.f32 %v2149, 1.442695
        %v2458 = vpow.pop %v2457
        %v2459 = vmul.f32 %v2150, 1.442695
        %v2460 = vpow.pop %v2459
        %v2461 = vmul.f32 %v2151, 1.442695
        %v2462 = vpow.pop %v2461
        %v2463 = vmul.f32 %v2152, 1.442695
        %v2464 = vpow.pop %v2463
        %v2465 = vmul.f32 %v2153, 1.442695
        %v2466 = vpow.pop %v2465
        %v2467 = vmul.f32 %v2154, 1.442695
        %v2468 = vpow.pop %v2467
        %v2469 = vmul.f32 %v2155, 1.442695
        %v2470 = vpow.pop %v2469
        %v2471 = vmul.f32 %v2156, 1.442695
        %v2472 = vpow.pop %v2471
        %v2473 = vmul.f32 %v2157, 1.442695
        %v2474 = vpow.pop %v2473
        %v2475 = vmul.f32 %v2158, 1.442695
        %v2476 = vpow.pop %v2475
        %v2477 = vmul.f32 %v2159, 1.442695
        %v2478 = vpow.pop %v2477
        %v2479 = vmul.f32 %v2160, 1.442695
        %v2480 = vpow.pop %v2479
        %v2481 = vmul.f32 %v2161, 1.442695
        %v2482 = vpow.pop %v2481
        %v2483 = vmul.f32 %v2162, 1.442695
        %v2484 = vpow.pop %v2483
        %v2485 = vmul.f32 %v2163, 1.442695
        %v2486 = vpow.pop %v2485
        %v2487 = vmul.f32 %v2164, 1.442695
        %v2488 = vpow.pop %v2487
        %v2489 = vmul.f32 %v2165, 1.442695
        %v2490 = vpow.pop %v2489
        %v2491 = vmul.f32 %v2166, 1.442695
        %v2492 = vpow.pop %v2491
        %v2493 = vmul.f32 %v2167, 1.442695
        %v2494 = vpow.pop %v2493
        %v2495 = vmul.f32 %v2168, 1.442695
        %v2496 = vpow.pop %v2495
        %v2497 = vmul.f32 %v2169, 1.442695
        %v2498 = vpow.pop %v2497
        %v2499 = vmul.f32 %v2170, 1.442695
        %v2500 = vpow.pop %v2499
        %v2501 = vmul.f32 %v2171, 1.442695
        %v2502 = vpow.pop %v2501
        %v2503 = vmul.f32 %v2172, 1.442695
        %v2504 = vpow.pop %v2503
        %v2505 = vmul.f32 %v2173, 1.442695
        %v2506 = vpow.pop %v2505
        %v2507 = vmul.f32 %v2174, 1.442695
        %v2508 = vpow.pop %v2507
        %v2509 = vmul.f32 %v2175, 1.442695
        %v2510 = vpow.pop %v2509
        %v2511 = vmul.f32 %v2176, 1.442695
        %v2512 = vpow.pop %v2511
        %v2513 = vmul.f32 %v2177, 1.442695
        %v2514 = vpow.pop %v2513
        %v2515 = vmul.f32 %v2178, 1.442695
        %v2516 = vpow.pop %v2515
        %v2517 = vmul.f32 %v2179, 1.442695
        %v2518 = vpow.pop %v2517
        %v2519 = vmul.f32 %v2180, 1.442695
        %v2520 = vpow.pop %v2519
        %v2521 = vmul.f32 %v2181, 1.442695
        %v2522 = vpow.pop %v2521
        %v2523 = vmul.f32 %v2182, 1.442695
        %v2524 = vpow.pop %v2523
        %v2525 = vmul.f32 %v2183, 1.442695
        %v2526 = vpow.pop %v2525
        %v2527 = vmul.f32 %v2184, 1.442695
        %v2528 = vpow.pop %v2527
        %v2529 = vmul.f32 %v2185, 1.442695
        %v2530 = vpow.pop %v2529
        %v2531 = vmul.f32 %v2186, 1.442695
        %v2532 = vpow.pop %v2531
        %v2533 = vmul.f32 %v2187, 1.442695
        %v2534 = vpow.pop %v2533
        %v2535 = vmul.f32 %v2188, 1.442695
        %v2536 = vpow.pop %v2535
        %v2537 = vmul.f32 %v2189, 1.442695
        %v2538 = vpow.pop %v2537
        %v2539 = vmul.f32 %v2190, 1.442695
        %v2540 = vpow.pop %v2539
        %v2541 = vmul.f32 %v2191, 1.442695
        %v2542 = vpow.pop %v2541
        %v2543 = vmul.f32 %v2192, 1.442695
        %v2544 = vpow.pop %v2543
        %v2545 = vmul.f32 %v2193, 1.442695
        %v2546 = vpow.pop %v2545
        %v2547 = vmul.f32 %v2194, 1.442695
        %v2548 = vpow.pop %v2547
        %v2549 = vmul.f32 %v2195, 1.442695
        %v2550 = vpow.pop %v2549
        %v2551 = vmul.f32 %v2196, 1.442695
        %v2552 = vpow.pop %v2551
        %v2553 = vmul.f32 %v2197, 1.442695
        %v2554 = vpow.pop %v2553
        %v2555 = vmul.f32 %v2198, 1.442695
        %v2556 = vpow.pop %v2555
        %v2557 = vmul.f32 %v2199, 1.442695
        %v2558 = vpow.pop %v2557
        %v2559 = vmul.f32 %v2200, 1.442695
        %v2560 = vpow.pop %v2559
        %v2561 = vmul.f32 %v2201, 1.442695
        %v2562 = vpow.pop %v2561
        %v2563 = vmul.f32 %v2202, 1.442695
        %v2564 = vpow.pop %v2563
        %v2565 = vmul.f32 %v2203, 1.442695
        %v2566 = vpow.pop %v2565
        %v2567 = vmul.f32 %v2204, 1.442695
        %v2568 = vpow.pop %v2567
        %v2569 = vmul.f32 %v2205, 1.442695
        %v2570 = vpow.pop %v2569
        %v2571 = vmul.f32 %v2206, 1.442695
        %v2572 = vpow.pop %v2571
        %v2573 = vmul.f32 %v2207, 1.442695
        %v2574 = vpow.pop %v2573
        %v2575 = vmul.f32 %v2208, 1.442695
        %v2576 = vpow.pop %v2575
        %v2577 = vmul.f32 %v2209, 1.442695
        %v2578 = vpow.pop %v2577
        %v2579 = vmul.f32 %v2210, 1.442695
        %v2580 = vpow.pop %v2579
        %v2581 = vmul.f32 %v2211, 1.442695
        %v2582 = vpow.pop %v2581
        %v2583 = vmul.f32 %v2212, 1.442695
        %v2584 = vpow.pop %v2583
        %v2585 = vmul.f32 %v2213, 1.442695
        %v2586 = vpow.pop %v2585
        %v2587 = vmul.f32 %v2214, 1.442695
        %v2588 = vpow.pop %v2587
        %v2589 = vmul.f32 %v2215, 1.442695
        %v2590 = vpow.pop %v2589
        %v2591 = vmul.f32 %v2216, 1.442695
        %v2592 = vpow.pop %v2591
        %v2593 = vmul.f32 %v2217, 1.442695
        %v2594 = vpow.pop %v2593
        %v2595 = vmul.f32 %v2218, 1.442695
        %v2596 = vpow.pop %v2595
        %v2597 = vmul.f32 %v2219, 1.442695
        %v2598 = vpow.pop %v2597
        %v2599 = vmul.f32 %v2220, 1.442695
        %v2600 = vpow.pop %v2599
        %v2601 = vmul.f32 %v2221, 1.442695
        %v2602 = vpow.pop %v2601
        %v2603 = vmul.f32 %v2222, 1.442695
        %v2604 = vpow.pop %v2603
        %v2605 = vmul.f32 %v2223, 1.442695
        %v2606 = vpow.pop %v2605
        %v2607 = vmul.f32 %v2224, 1.442695
        %v2608 = vpow.pop %v2607
        %v2609 = vmul.f32 %v2225, 1.442695
        %v2610 = vpow.pop %v2609
        %v2611 = vmul.f32 %v2226, 1.442695
        %v2612 = vpow.pop %v2611
        %v2613 = vmul.f32 %v2227, 1.442695
        %v2614 = vpow.pop %v2613
        %v2615 = vmul.f32 %v2228, 1.442695
        %v2616 = vpow.pop %v2615
        %v2617 = vmul.f32 %v2229, 1.442695
        %v2618 = vpow.pop %v2617
        %v2619 = vmul.f32 %v2230, 1.442695
        %v2620 = vpow.pop %v2619
        %v2621 = vmul.f32 %v2231, 1.442695
        %v2622 = vpow.pop %v2621
        %v2623 = vmul.f32 %v2232, 1.442695
        %v2624 = vpow.pop %v2623
        %v2625 = vmul.f32 %v2233, 1.442695
        %v2626 = vpow.pop %v2625
        %v2627 = vmul.f32 %v2234, 1.442695
        %v2628 = vpow.pop %v2627
        %v2629 = vmul.f32 %v2235, 1.442695
        %v2630 = vpow.pop %v2629
        %v2631 = vmul.f32 %v2236, 1.442695
        %v2632 = vpow.pop %v2631
        %v2633 = vmul.f32 %v2237, 1.442695
        %v2634 = vpow.pop %v2633
        %v2635 = vmul.f32 %v2238, 1.442695
        %v2636 = vpow.pop %v2635
        %v2637 = vmul.f32 %v2239, 1.442695
        %v2638 = vpow.pop %v2637
        %v2639 = vmul.f32 %v2240, 1.442695
        %v2640 = vpow.pop %v2639
        %v2641 = vmul.f32 %v2241, 1.442695
        %v2642 = vpow.pop %v2641
        %v2643 = vmul.f32 %v2242, 1.442695
        %v2644 = vpow.pop %v2643
        %v2645 = vmul.f32 %v2243, 1.442695
        %v2646 = vpow.pop %v2645
        %v2647 = vmul.f32 %v2244, 1.442695
        %v2648 = vpow.pop %v2647
        %v2649 = vmul.f32 %v2245, 1.442695
        %v2650 = vpow.pop %v2649
        %v2651 = vmul.f32 %v2246, 1.442695
        %v2652 = vpow.pop %v2651
        %v2653 = vmul.f32 %v2247, 1.442695
        %v2654 = vpow.pop %v2653
        %v2655 = vmul.f32 %v2248, 1.442695
        %v2656 = vpow.pop %v2655
        %v2657 = vmul.f32 %v2249, 1.442695
        %v2658 = vpow.pop %v2657
        %v2659 = vmul.f32 %v2250, 1.442695
        %v2660 = vpow.pop %v2659
        %v2661 = vmul.f32 %v2251, 1.442695
        %v2662 = vpow.pop %v2661
        %v2663 = vmul.f32 %v2252, 1.442695
        %v2664 = vpow.pop %v2663
        %v2665 = vmul.f32 %v2253, 1.442695
        %v2666 = vpow.pop %v2665
        %v2667 = vmul.f32 %v2254, 1.442695
        %v2668 = vpow.pop %v2667
        %v2669 = vmul.f32 %v2255, 1.442695
        %v2670 = vpow.pop %v2669
        %v2671 = vmul.f32 %v2256, 1.442695
        %v2672 = vpow.pop %v2671
        %v2673 = vmul.f32 %v2257, 1.442695
        %v2674 = vpow.pop %v2673
        %v2675 = vmul.f32 %v2258, 1.442695
        %v2676 = vpow.pop %v2675
        %v2677 = vmul.f32 %v2259, 1.442695
        %v2678 = vpow.pop %v2677
        %v2679 = vmul.f32 %v2260, 1.442695
        %v2680 = vpow.pop %v2679
        %v2681 = vmul.f32 %v2261, 1.442695
        %v2682 = vpow.pop %v2681
        %v2683 = vmul.f32 %v2262, 1.442695
        %v2684 = vpow.pop %v2683
        %v2685 = vmul.f32 %v2263, 1.442695
        %v2686 = vpow.pop %v2685
        %v2687 = vmul.f32 %v2264, 1.442695
        %v2688 = vpow.pop %v2687
        %v2689 = vmul.f32 %v2265, 1.442695
        %v2690 = vpow.pop %v2689
        %v2691 = vmul.f32 %v2266, 1.442695
        %v2692 = vpow.pop %v2691
        %v2693 = vmul.f32 %v2267, 1.442695
        %v2694 = vpow.pop %v2693
        %v2695 = vmul.f32 %v2268, 1.442695
        %v2696 = vpow.pop %v2695
        %v2697 = vmul.f32 %v2269, 1.442695
        %v2698 = vpow.pop %v2697
        %v2699 = vmul.f32 %v2270, 1.442695
        %v2700 = vpow.pop %v2699
        %v2701 = vmul.f32 %v2271, 1.442695
        %v2702 = vpow.pop %v2701
        %v2703 = vmul.f32 %v2272, 1.442695
        %v2704 = vpow.pop %v2703
        %v2705 = vmul.f32 %v2273, 1.442695
        %v2706 = vpow.pop %v2705
        %v2707 = vmul.f32 %v2274, 1.442695
        %v2708 = vpow.pop %v2707
        %v2709 = vmul.f32 %v2275, 1.442695
        %v2710 = vpow.pop %v2709
        %v2711 = vmul.f32 %v2276, 1.442695
        %v2712 = vpow.pop %v2711
        %v2713 = vmul.f32 %v2277, 1.442695
        %v2714 = vpow.pop %v2713
        %v2715 = vmul.f32 %v2278, 1.442695
        %v2716 = vpow.pop %v2715
        %v2717 = vmul.f32 %v2279, 1.442695
        %v2718 = vpow.pop %v2717
        %v2719 = vmul.f32 %v2280, 1.442695
        %v2720 = vpow.pop %v2719
        %v2721 = vmul.f32 %v2281, 1.442695
        %v2722 = vpow.pop %v2721
        %v2723 = vmul.f32 %v2282, 1.442695
        %v2724 = vpow.pop %v2723
        %v2725 = vmul.f32 %v2283, 1.442695
        %v2726 = vpow.pop %v2725
        %v2727 = vmul.f32 %v2284, 1.442695
        %v2728 = vpow.pop %v2727
        %v2729 = vmul.f32 %v2285, 1.442695
        %v2730 = vpow.pop %v2729
        %v2731 = vmul.f32 %v2286, 1.442695
        %v2732 = vpow.pop %v2731
        %v2733 = vmul.f32 %v2287, 1.442695
        %v2734 = vpow.pop %v2733
        %v2735 = vmul.f32 %v2288, 1.442695
        %v2736 = vpow.pop %v2735
        %v2737 = vmul.f32 %v2289, 1.442695
        %v2738 = vpow.pop %v2737
        %v2739 = vmul.f32 %v2290, 1.442695
        %v2740 = vpow.pop %v2739
        %v2741 = vmul.f32 %v2291, 1.442695
        %v2742 = vpow.pop %v2741
        %v2743 = vmul.f32 %v2292, 1.442695
        %v2744 = vpow.pop %v2743
        %v2745 = vmul.f32 %v2293, 1.442695
        %v2746 = vpow.pop %v2745
        %v2747 = vmul.f32 %v2294, 1.442695
        %v2748 = vpow.pop %v2747
        %v2749 = vmul.f32 %v2295, 1.442695
        %v2750 = vpow.pop %v2749
        %v2751 = vmul.f32 %v2296, 1.442695
        %v2752 = vpow.pop %v2751
        %v2753 = vmul.f32 %v2297, 1.442695
        %v2754 = vpow.pop %v2753
        %v2755 = vmul.f32 %v2298, 1.442695
        %v2756 = vpow.pop %v2755
        %v2757 = vmul.f32 %v2299, 1.442695
        %v2758 = vpow.pop %v2757
        %v2759 = vmul.f32 %v2300, 1.442695
        %v2760 = vpow.pop %v2759
        %v2761 = vmul.f32 %v2301, 1.442695
        %v2762 = vpow.pop %v2761
        %v2763 = vmul.f32 %v2302, 1.442695
        %v2764 = vpow.pop %v2763
        %v2765 = vmul.f32 %v2303, 1.442695
        %v2766 = vpow.pop %v2765
        %v2767 = vmul.f32 %v2304, 1.442695
        %v2768 = vpow.pop %v2767
        %v2769 = vmul.f32 %v2305, 1.442695
        %v2770 = vpow.pop %v2769
        %v2771 = vmul.f32 %v2306, 1.442695
        %v2772 = vpow.pop %v2771
        %v2773 = vmul.f32 %v2307, 1.442695
        %v2774 = vpow.pop %v2773
        %v2775 = vmul.f32 %v2308, 1.442695
        %v2776 = vpow.pop %v2775
        %v2777 = vmul.f32 %v2309, 1.442695
        %v2778 = vpow.pop %v2777
        %v2779 = vmul.f32 %v2310, 1.442695
        %v2780 = vpow.pop %v2779
        %v2781 = vmul.f32 %v2311, 1.442695
        %v2782 = vpow.pop %v2781
        %v2783 = vmul.f32 %v2312, 1.442695
        %v2784 = vpow.pop %v2783
        %v2785 = vmul.f32 %v2313, 1.442695
        %v2786 = vpow.pop %v2785
        %v2787 = vmul.f32 %v2314, 1.442695
        %v2788 = vpow.pop %v2787
        %v2789 = vmul.f32 %v2315, 1.442695
        %v2790 = vpow.pop %v2789
        %v2791 = vmul.f32 %v2316, 1.442695
        %v2792 = vpow.pop %v2791
        %v2793 = vmul.f32 %v2317, 1.442695
        %v2794 = vpow.pop %v2793
        %v2795 = vmul.f32 %v2318, 1.442695
        %v2796 = vpow.pop %v2795
        %v2797 = vmul.f32 %v2319, 1.442695
        %v2798 = vpow.pop %v2797
        %v2799 = vmul.f32 %v2320, 1.442695
        %v2800 = vpow.pop %v2799
        %v2801 = vmul.f32 %v2321, 1.442695
        %v2802 = vpow.pop %v2801
        %v2803 = vmul.f32 %v2322, 1.442695
        %v2804 = vpow.pop %v2803
        %v2805 = vmul.f32 %v2323, 1.442695
        %v2806 = vpow.pop %v2805
        %v2807 = vmul.f32 %v2324, 1.442695
        %v2808 = vpow.pop %v2807
        %v2809 = vmul.f32 %v2325, 1.442695
        %v2810 = vpow.pop %v2809
        %v2811 = vmul.f32 %v2326, 1.442695
        %v2812 = vpow.pop %v2811
        %v2813 = vmul.f32 %v2327, 1.442695
        %v2814 = vpow.pop %v2813
        %v2815 = vmul.f32 %v2328, 1.442695
        %v2816 = vpow.pop %v2815
        %v2817 = vmul.f32 %v2329, 1.442695
        %v2818 = vpow.pop %v2817
        %v2819 = vmul.f32 %v2330, 1.442695
        %v2820 = vpow.pop %v2819
        %v2821 = vmul.f32 %v2331, 1.442695
        %v2822 = vpow.pop %v2821
        %v2823 = vmul.f32 %v2332, 1.442695
        %v2824 = vpow.pop %v2823
        %v2825 = vmul.f32 %v2333, 1.442695
        %v2826 = vpow.pop %v2825
        %v2827 = vmul.f32 %v2334, 1.442695
        %v2828 = vpow.pop %v2827
        %v2829 = vmul.f32 %v2335, 1.442695
        %v2830 = vpow.pop %v2829
        %v2831 = vmul.f32 %v2336, 1.442695
        %v2832 = vpow.pop %v2831
        %v2833 = vmul.f32 %v2337, 1.442695
        %v2834 = vpow.pop %v2833
        %v2835 = vmul.f32 %v2338, 1.442695
        %v2836 = vpow.pop %v2835
        %v2837 = vmul.f32 %v2339, 1.442695
        %v2838 = vpow.pop %v2837
        %v2839 = vmul.f32 %v2340, 1.442695
        %v2840 = vpow.pop %v2839
        %v2841 = vmul.f32 %v2341, 1.442695
        %v2842 = vpow.pop %v2841
        %v2843 = vmul.f32 %v2342, 1.442695
        %v2844 = vpow.pop %v2843
        %v2845 = vmul.f32 %v2343, 1.442695
        %v2846 = vpow.pop %v2845
        %v2847 = vmul.f32 %v2344, 1.442695
        %v2848 = vpow.pop %v2847
        %v2849 = vmul.f32 %v2345, 1.442695
        %v2850 = vpow.pop %v2849
        %v2851 = vmul.f32 %v2346, 1.442695
        %v2852 = vpow.pop %v2851
        %v2853 = vmul.f32 %v2347, 1.442695
        %v2854 = vpow.pop %v2853
        %v2855 = vmul.f32 %v2348, 1.442695
        %v2856 = vpow.pop %v2855
        %v2857 = vmul.f32 %v2349, 1.442695
        %v2858 = vpow.pop %v2857
        %v2859 = vmul.f32 %v2350, 1.442695
        %v2860 = vpow.pop %v2859
        %v2861 = vmul.f32 %v2351, 1.442695
        %v2862 = vpow.pop %v2861
        %v2863 = vmul.f32 %v2352, 1.442695
        %v2864 = vpow.pop %v2863
        %v2865 = vpack.c.bf16 %v2358, %v2354
        %v2866 = vpack.c.bf16 %v2360, %v2356
        %v2867 = vpack.c.bf16 %v2366, %v2362
        %v2868 = vpack.c.bf16 %v2368, %v2364
        %v2869 = vpack.c.bf16 %v2374, %v2370
        %v2870 = vpack.c.bf16 %v2376, %v2372
        %v2871 = vpack.c.bf16 %v2382, %v2378
        %v2872 = vpack.c.bf16 %v2384, %v2380
        %v2873 = vpack.c.bf16 %v2390, %v2386
        %v2874 = vpack.c.bf16 %v2392, %v2388
        %v2875 = vpack.c.bf16 %v2398, %v2394
        %v2876 = vpack.c.bf16 %v2400, %v2396
        %v2877 = vpack.c.bf16 %v2406, %v2402
        %v2878 = vpack.c.bf16 %v2408, %v2404
        %v2879 = vpack.c.bf16 %v2414, %v2410
        %v2880 = vpack.c.bf16 %v2416, %v2412
        %v2881 = vpack.c.bf16 %v2422, %v2418
        %v2882 = vpack.c.bf16 %v2424, %v2420
        %v2883 = vpack.c.bf16 %v2430, %v2426
        %v2884 = vpack.c.bf16 %v2432, %v2428
        %v2885 = vpack.c.bf16 %v2438, %v2434
        %v2886 = vpack.c.bf16 %v2440, %v2436
        %v2887 = vpack.c.bf16 %v2446, %v2442
        %v2888 = vpack.c.bf16 %v2448, %v2444
        %v2889 = vpack.c.bf16 %v2454, %v2450
        %v2890 = vpack.c.bf16 %v2456, %v2452
        %v2891 = vpack.c.bf16 %v2462, %v2458
        %v2892 = vpack.c.bf16 %v2464, %v2460
        %v2893 = vpack.c.bf16 %v2470, %v2466
        %v2894 = vpack.c.bf16 %v2472, %v2468
        %v2895 = vpack.c.bf16 %v2478, %v2474
        %v2896 = vpack.c.bf16 %v2480, %v2476
        %v2897 = vpack.c.bf16 %v2486, %v2482
        %v2898 = vpack.c.bf16 %v2488, %v2484
        %v2899 = vpack.c.bf16 %v2494, %v2490
        %v2900 = vpack.c.bf16 %v2496, %v2492
        %v2901 = vpack.c.bf16 %v2502, %v2498
        %v2902 = vpack.c.bf16 %v2504, %v2500
        %v2903 = vpack.c.bf16 %v2510, %v2506
        %v2904 = vpack.c.bf16 %v2512, %v2508
        %v2905 = vpack.c.bf16 %v2518, %v2514
        %v2906 = vpack.c.bf16 %v2520, %v2516
        %v2907 = vpack.c.bf16 %v2526, %v2522
        %v2908 = vpack.c.bf16 %v2528, %v2524
        %v2909 = vpack.c.bf16 %v2534, %v2530
        %v2910 = vpack.c.bf16 %v2536, %v2532
        %v2911 = vpack.c.bf16 %v2542, %v2538
        %v2912 = vpack.c.bf16 %v2544, %v2540
        %v2913 = vpack.c.bf16 %v2550, %v2546
        %v2914 = vpack.c.bf16 %v2552, %v2548
        %v2915 = vpack.c.bf16 %v2558, %v2554
        %v2916 = vpack.c.bf16 %v2560, %v2556
        %v2917 = vpack.c.bf16 %v2566, %v2562
        %v2918 = vpack.c.bf16 %v2568, %v2564
        %v2919 = vpack.c.bf16 %v2574, %v2570
        %v2920 = vpack.c.bf16 %v2576, %v2572
        %v2921 = vpack.c.bf16 %v2582, %v2578
        %v2922 = vpack.c.bf16 %v2584, %v2580
        %v2923 = vpack.c.bf16 %v2590, %v2586
        %v2924 = vpack.c.bf16 %v2592, %v2588
        %v2925 = vpack.c.bf16 %v2598, %v2594
        %v2926 = vpack.c.bf16 %v2600, %v2596
        %v2927 = vpack.c.bf16 %v2606, %v2602
        %v2928 = vpack.c.bf16 %v2608, %v2604
        %v2929 = vpack.c.bf16 %v2614, %v2610
        %v2930 = vpack.c.bf16 %v2616, %v2612
        %v2931 = vpack.c.bf16 %v2622, %v2618
        %v2932 = vpack.c.bf16 %v2624, %v2620
        %v2933 = vpack.c.bf16 %v2630, %v2626
        %v2934 = vpack.c.bf16 %v2632, %v2628
        %v2935 = vpack.c.bf16 %v2638, %v2634
        %v2936 = vpack.c.bf16 %v2640, %v2636
        %v2937 = vpack.c.bf16 %v2646, %v2642
        %v2938 = vpack.c.bf16 %v2648, %v2644
        %v2939 = vpack.c.bf16 %v2654, %v2650
        %v2940 = vpack.c.bf16 %v2656, %v2652
        %v2941 = vpack.c.bf16 %v2662, %v2658
        %v2942 = vpack.c.bf16 %v2664, %v2660
        %v2943 = vpack.c.bf16 %v2670, %v2666
        %v2944 = vpack.c.bf16 %v2672, %v2668
        %v2945 = vpack.c.bf16 %v2678, %v2674
        %v2946 = vpack.c.bf16 %v2680, %v2676
        %v2947 = vpack.c.bf16 %v2686, %v2682
        %v2948 = vpack.c.bf16 %v2688, %v2684
        %v2949 = vpack.c.bf16 %v2694, %v2690
        %v2950 = vpack.c.bf16 %v2696, %v2692
        %v2951 = vpack.c.bf16 %v2702, %v2698
        %v2952 = vpack.c.bf16 %v2704, %v2700
        %v2953 = vpack.c.bf16 %v2710, %v2706
        %v2954 = vpack.c.bf16 %v2712, %v2708
        %v2955 = vpack.c.bf16 %v2718, %v2714
        %v2956 = vpack.c.bf16 %v2720, %v2716
        %v2957 = vpack.c.bf16 %v2726, %v2722
        %v2958 = vpack.c.bf16 %v2728, %v2724
        %v2959 = vpack.c.bf16 %v2734, %v2730
        %v2960 = vpack.c.bf16 %v2736, %v2732
        %v2961 = vpack.c.bf16 %v2742, %v2738
        %v2962 = vpack.c.bf16 %v2744, %v2740
        %v2963 = vpack.c.bf16 %v2750, %v2746
        %v2964 = vpack.c.bf16 %v2752, %v2748
        %v2965 = vpack.c.bf16 %v2758, %v2754
        %v2966 = vpack.c.bf16 %v2760, %v2756
        %v2967 = vpack.c.bf16 %v2766, %v2762
        %v2968 = vpack.c.bf16 %v2768, %v2764
        %v2969 = vpack.c.bf16 %v2774, %v2770
        %v2970 = vpack.c.bf16 %v2776, %v2772
        %v2971 = vpack.c.bf16 %v2782, %v2778
        %v2972 = vpack.c.bf16 %v2784, %v2780
        %v2973 = vpack.c.bf16 %v2790, %v2786
        %v2974 = vpack.c.bf16 %v2792, %v2788
        %v2975 = vpack.c.bf16 %v2798, %v2794
        %v2976 = vpack.c.bf16 %v2800, %v2796
        %v2977 = vpack.c.bf16 %v2806, %v2802
        %v2978 = vpack.c.bf16 %v2808, %v2804
        %v2979 = vpack.c.bf16 %v2814, %v2810
        %v2980 = vpack.c.bf16 %v2816, %v2812
        %v2981 = vpack.c.bf16 %v2822, %v2818
        %v2982 = vpack.c.bf16 %v2824, %v2820
        %v2983 = vpack.c.bf16 %v2830, %v2826
        %v2984 = vpack.c.bf16 %v2832, %v2828
        %v2985 = vpack.c.bf16 %v2838, %v2834
        %v2986 = vpack.c.bf16 %v2840, %v2836
        %v2987 = vpack.c.bf16 %v2846, %v2842
        %v2988 = vpack.c.bf16 %v2848, %v2844
        %v2989 = vpack.c.bf16 %v2854, %v2850
        %v2990 = vpack.c.bf16 %v2856, %v2852
        %v2991 = vpack.c.bf16 %v2862, %v2858
        %v2992 = vpack.c.bf16 %v2864, %v2860
        %v2993 = vpack.c.b16 %v563, %v563
        %v2994 = vpack.c.b16 %v564, %v564
        %2997 = vmatprep.subr.bf16.mxu0 %v2866
        %2998 = vmatpush1.bf16.xpose.msra.mxu0 %v2865
        %2999 = vmatprep.subr.bf16.mxu0 %v2868
        %3000 = vmatpush1.bf16.xpose.msra.mxu0 %v2867
        %3001 = vmatprep.subr.bf16.mxu0 %v2870
        %3002 = vmatpush1.bf16.xpose.msra.mxu0 %v2869
        %3003 = vmatprep.subr.bf16.mxu0 %v2872
        %3004 = vmatpush1.bf16.xpose.msra.mxu0 %v2871
        %3005 = vmatprep.subr.bf16.mxu0 %v2874
        %3006 = vmatpush1.bf16.xpose.msra.mxu0 %v2873
        %3007 = vmatprep.subr.bf16.mxu0 %v2876
        %3008 = vmatpush1.bf16.xpose.msra.mxu0 %v2875
        %3009 = vmatprep.subr.bf16.mxu0 %v2878
        %3010 = vmatpush1.bf16.xpose.msra.mxu0 %v2877
        %3011 = vmatprep.subr.bf16.mxu0 %v2880
        %3012 = vmatpush1.bf16.xpose.msra.mxu0 %v2879
        %3013 = vmatprep.subr.bf16.mxu0 %v2882
        %3014 = vmatpush1.bf16.xpose.msra.mxu0 %v2881
        %3015 = vmatprep.subr.bf16.mxu0 %v2884
        %3016 = vmatpush1.bf16.xpose.msra.mxu0 %v2883
        %3017 = vmatprep.subr.bf16.mxu0 %v2886
        %3018 = vmatpush1.bf16.xpose.msra.mxu0 %v2885
        %3019 = vmatprep.subr.bf16.mxu0 %v2888
        %3020 = vmatpush1.bf16.xpose.msra.mxu0 %v2887
        %3021 = vmatprep.subr.bf16.mxu0 %v2890
        %3022 = vmatpush1.bf16.xpose.msra.mxu0 %v2889
        %3023 = vmatprep.subr.bf16.mxu0 %v2892
        %3024 = vmatpush1.bf16.xpose.msra.mxu0 %v2891
        %3025 = vmatprep.subr.bf16.mxu0 %v2894
        %3026 = vmatpush1.bf16.xpose.msra.mxu0 %v2893
        %3027 = vmatprep.subr.bf16.mxu0 %v2896
        %3028 = vmatpush1.bf16.xpose.msra.mxu0 %v2895
        %3029 = vmatprep.mubr.bf16.mxu0 %v2994
        %3030 = vmatmul.mubr.bf16.gmra.mrb[0].mxu0 %v2993
        %v3031 = vpop.f32.mrb[0].mxu0
        %v3032 = vadd.f32 0.0, %v3031
        %v3033 = vpop.f32.mrb[0].mxu0
        %v3034 = vadd.f32 0.0, %v3033
        %v3035 = vpop.f32.mrb[0].mxu0
        %v3036 = vpop.f32.mrb[0].mxu0
        %3037 = vdwg.mxu0
        %v3038 = vpack.c.b16 %v565, %v565
        %v3039 = vpack.c.b16 %v566, %v566
        %3042 = vmatprep.subr.bf16.mxu0 %v2898
        %3043 = vmatpush1.bf16.xpose.msra.mxu0 %v2897
        %3044 = vmatprep.subr.bf16.mxu0 %v2900
        %3045 = vmatpush1.bf16.xpose.msra.mxu0 %v2899
        %3046 = vmatprep.subr.bf16.mxu0 %v2902
        %3047 = vmatpush1.bf16.xpose.msra.mxu0 %v2901
        %3048 = vmatprep.subr.bf16.mxu0 %v2904
        %3049 = vmatpush1.bf16.xpose.msra.mxu0 %v2903
        %3050 = vmatprep.subr.bf16.mxu0 %v2906
        %3051 = vmatpush1.bf16.xpose.msra.mxu0 %v2905
        %3052 = vmatprep.subr.bf16.mxu0 %v2908
        %3053 = vmatpush1.bf16.xpose.msra.mxu0 %v2907
        %3054 = vmatprep.subr.bf16.mxu0 %v2910
        %3055 = vmatpush1.bf16.xpose.msra.mxu0 %v2909
        %3056 = vmatprep.subr.bf16.mxu0 %v2912
        %3057 = vmatpush1.bf16.xpose.msra.mxu0 %v2911
        %3058 = vmatprep.subr.bf16.mxu0 %v2914
        %3059 = vmatpush1.bf16.xpose.msra.mxu0 %v2913
        %3060 = vmatprep.subr.bf16.mxu0 %v2916
        %3061 = vmatpush1.bf16.xpose.msra.mxu0 %v2915
        %3062 = vmatprep.subr.bf16.mxu0 %v2918
        %3063 = vmatpush1.bf16.xpose.msra.mxu0 %v2917
        %3064 = vmatprep.subr.bf16.mxu0 %v2920
        %3065 = vmatpush1.bf16.xpose.msra.mxu0 %v2919
        %3066 = vmatprep.subr.bf16.mxu0 %v2922
        %3067 = vmatpush1.bf16.xpose.msra.mxu0 %v2921
        %3068 = vmatprep.subr.bf16.mxu0 %v2924
        %3069 = vmatpush1.bf16.xpose.msra.mxu0 %v2923
        %3070 = vmatprep.subr.bf16.mxu0 %v2926
        %3071 = vmatpush1.bf16.xpose.msra.mxu0 %v2925
        %3072 = vmatprep.subr.bf16.mxu0 %v2928
        %3073 = vmatpush1.bf16.xpose.msra.mxu0 %v2927
        %3074 = vmatprep.mubr.bf16.mxu0 %v3039
        %3075 = vmatmul.mubr.bf16.gmra.mrb[0].mxu0 %v3038
        %v3076 = vpop.f32.mrb[0].mxu0
        %v3077 = vadd.f32 0.0, %v3076
        %v3078 = vpop.f32.mrb[0].mxu0
        %v3079 = vadd.f32 0.0, %v3078
        %v3080 = vpop.f32.mrb[0].mxu0
        %v3081 = vpop.f32.mrb[0].mxu0
        %3082 = vdwg.mxu0
        %v3083 = vpack.c.b16 %v567, %v567
        %v3084 = vpack.c.b16 %v568, %v568
        %3087 = vmatprep.subr.bf16.mxu0 %v2930
        %3088 = vmatpush1.bf16.xpose.msra.mxu0 %v2929
        %3089 = vmatprep.subr.bf16.mxu0 %v2932
        %3090 = vmatpush1.bf16.xpose.msra.mxu0 %v2931
        %3091 = vmatprep.subr.bf16.mxu0 %v2934
        %3092 = vmatpush1.bf16.xpose.msra.mxu0 %v2933
        %3093 = vmatprep.subr.bf16.mxu0 %v2936
        %3094 = vmatpush1.bf16.xpose.msra.mxu0 %v2935
        %3095 = vmatprep.subr.bf16.mxu0 %v2938
        %3096 = vmatpush1.bf16.xpose.msra.mxu0 %v2937
        %3097 = vmatprep.subr.bf16.mxu0 %v2940
        %3098 = vmatpush1.bf16.xpose.msra.mxu0 %v2939
        %3099 = vmatprep.subr.bf16.mxu0 %v2942
        %3100 = vmatpush1.bf16.xpose.msra.mxu0 %v2941
        %3101 = vmatprep.subr.bf16.mxu0 %v2944
        %3102 = vmatpush1.bf16.xpose.msra.mxu0 %v2943
        %3103 = vmatprep.subr.bf16.mxu0 %v2946
        %3104 = vmatpush1.bf16.xpose.msra.mxu0 %v2945
        %3105 = vmatprep.subr.bf16.mxu0 %v2948
        %3106 = vmatpush1.bf16.xpose.msra.mxu0 %v2947
        %3107 = vmatprep.subr.bf16.mxu0 %v2950
        %3108 = vmatpush1.bf16.xpose.msra.mxu0 %v2949
        %3109 = vmatprep.subr.bf16.mxu0 %v2952
        %3110 = vmatpush1.bf16.xpose.msra.mxu0 %v2951
        %3111 = vmatprep.subr.bf16.mxu0 %v2954
        %3112 = vmatpush1.bf16.xpose.msra.mxu0 %v2953
        %3113 = vmatprep.subr.bf16.mxu0 %v2956
        %3114 = vmatpush1.bf16.xpose.msra.mxu0 %v2955
        %3115 = vmatprep.subr.bf16.mxu0 %v2958
        %3116 = vmatpush1.bf16.xpose.msra.mxu0 %v2957
        %3117 = vmatprep.subr.bf16.mxu0 %v2960
        %3118 = vmatpush1.bf16.xpose.msra.mxu0 %v2959
        %3119 = vmatprep.mubr.bf16.mxu0 %v3084
        %3120 = vmatmul.mubr.bf16.gmra.mrb[0].mxu0 %v3083
        %v3121 = vpop.f32.mrb[0].mxu0
        %v3122 = vadd.f32 0.0, %v3121
        %v3123 = vpop.f32.mrb[0].mxu0
        %v3124 = vadd.f32 0.0, %v3123
        %v3125 = vpop.f32.mrb[0].mxu0
        %v3126 = vpop.f32.mrb[0].mxu0
        %3127 = vdwg.mxu0
        %v3128 = vpack.c.b16 %v569, %v569
        %v3129 = vpack.c.b16 %v570, %v570
        %3132 = vmatprep.subr.bf16.mxu0 %v2962
        %3133 = vmatpush1.bf16.xpose.msra.mxu0 %v2961
        %3134 = vmatprep.subr.bf16.mxu0 %v2964
        %3135 = vmatpush1.bf16.xpose.msra.mxu0 %v2963
        %3136 = vmatprep.subr.bf16.mxu0 %v2966
        %3137 = vmatpush1.bf16.xpose.msra.mxu0 %v2965
        %3138 = vmatprep.subr.bf16.mxu0 %v2968
        %3139 = vmatpush1.bf16.xpose.msra.mxu0 %v2967
        %3140 = vmatprep.subr.bf16.mxu0 %v2970
        %3141 = vmatpush1.bf16.xpose.msra.mxu0 %v2969
        %3142 = vmatprep.subr.bf16.mxu0 %v2972
        %3143 = vmatpush1.bf16.xpose.msra.mxu0 %v2971
        %3144 = vmatprep.subr.bf16.mxu0 %v2974
        %3145 = vmatpush1.bf16.xpose.msra.mxu0 %v2973
        %3146 = vmatprep.subr.bf16.mxu0 %v2976
        %3147 = vmatpush1.bf16.xpose.msra.mxu0 %v2975
        %3148 = vmatprep.subr.bf16.mxu0 %v2978
        %3149 = vmatpush1.bf16.xpose.msra.mxu0 %v2977
        %3150 = vmatprep.subr.bf16.mxu0 %v2980
        %3151 = vmatpush1.bf16.xpose.msra.mxu0 %v2979
        %3152 = vmatprep.subr.bf16.mxu0 %v2982
        %3153 = vmatpush1.bf16.xpose.msra.mxu0 %v2981
        %3154 = vmatprep.subr.bf16.mxu0 %v2984
        %3155 = vmatpush1.bf16.xpose.msra.mxu0 %v2983
        %3156 = vmatprep.subr.bf16.mxu0 %v2986
        %3157 = vmatpush1.bf16.xpose.msra.mxu0 %v2985
        %3158 = vmatprep.subr.bf16.mxu0 %v2988
        %3159 = vmatpush1.bf16.xpose.msra.mxu0 %v2987
        %3160 = vmatprep.subr.bf16.mxu0 %v2990
        %3161 = vmatpush1.bf16.xpose.msra.mxu0 %v2989
        %3162 = vmatprep.subr.bf16.mxu0 %v2992
        %3163 = vmatpush1.bf16.xpose.msra.mxu0 %v2991
        %3164 = vmatprep.mubr.bf16.mxu0 %v3129
        %3165 = vmatmul.mubr.bf16.gmra.mrb[0].mxu0 %v3128
        %v3166 = vpop.f32.mrb[0].mxu0
        %v3167 = vadd.f32 0.0, %v3166
        %v3168 = vpop.f32.mrb[0].mxu0
        %v3169 = vadd.f32 0.0, %v3168
        %v3170 = vpop.f32.mrb[0].mxu0
        %v3171 = vpop.f32.mrb[0].mxu0
        %3172 = vdwg.mxu0
        %3173 = vmatprep.subr.bf16.mxu0 %v2866
        %3174 = vmatpush1.bf16.xpose.msra.mxu0 %v2865
        %3175 = vmatprep.subr.bf16.mxu0 %v2868
        %3176 = vmatpush1.bf16.xpose.msra.mxu0 %v2867
        %3177 = vmatprep.subr.bf16.mxu0 %v2870
        %3178 = vmatpush1.bf16.xpose.msra.mxu0 %v2869
        %3179 = vmatprep.subr.bf16.mxu0 %v2872
        %3180 = vmatpush1.bf16.xpose.msra.mxu0 %v2871
        %3181 = vmatprep.subr.bf16.mxu0 %v2874
        %3182 = vmatpush1.bf16.xpose.msra.mxu0 %v2873
        %3183 = vmatprep.subr.bf16.mxu0 %v2876
        %3184 = vmatpush1.bf16.xpose.msra.mxu0 %v2875
        %3185 = vmatprep.subr.bf16.mxu0 %v2878
        %3186 = vmatpush1.bf16.xpose.msra.mxu0 %v2877
        %3187 = vmatprep.subr.bf16.mxu0 %v2880
        %3188 = vmatpush1.bf16.xpose.msra.mxu0 %v2879
        %3189 = vmatprep.subr.bf16.mxu0 %v2882
        %3190 = vmatpush1.bf16.xpose.msra.mxu0 %v2881
        %3191 = vmatprep.subr.bf16.mxu0 %v2884
        %3192 = vmatpush1.bf16.xpose.msra.mxu0 %v2883
        %3193 = vmatprep.subr.bf16.mxu0 %v2886
        %3194 = vmatpush1.bf16.xpose.msra.mxu0 %v2885
        %3195 = vmatprep.subr.bf16.mxu0 %v2888
        %3196 = vmatpush1.bf16.xpose.msra.mxu0 %v2887
        %3197 = vmatprep.subr.bf16.mxu0 %v2890
        %3198 = vmatpush1.bf16.xpose.msra.mxu0 %v2889
        %3199 = vmatprep.subr.bf16.mxu0 %v2892
        %3200 = vmatpush1.bf16.xpose.msra.mxu0 %v2891
        %3201 = vmatprep.subr.bf16.mxu0 %v2894
        %3202 = vmatpush1.bf16.xpose.msra.mxu0 %v2893
        %3203 = vmatprep.subr.bf16.mxu0 %v2896
        %3204 = vmatpush1.bf16.xpose.msra.mxu0 %v2895
        %3205 = vmatprep.mubr.bf16.mxu0 1065369472
        %3206 = vmatmul.mubr.bf16.gmra.mrb[0].mxu0 1065369472
        %v3207 = vpop.f32.mrb[0].mxu0
        %v3208 = vadd.f32 0.0, %v3207
        %v3209 = vpop.f32.mrb[0].mxu0
        %v3210 = vadd.f32 0.0, %v3209
        %v3211 = vpop.f32.mrb[0].mxu0
        %v3212 = vpop.f32.mrb[0].mxu0
        %3213 = vdwg.mxu0
        %3214 = vmatprep.subr.bf16.mxu0 %v2898
        %3215 = vmatpush1.bf16.xpose.msra.mxu0 %v2897
        %3216 = vmatprep.subr.bf16.mxu0 %v2900
        %3217 = vmatpush1.bf16.xpose.msra.mxu0 %v2899
        %3218 = vmatprep.subr.bf16.mxu0 %v2902
        %3219 = vmatpush1.bf16.xpose.msra.mxu0 %v2901
        %3220 = vmatprep.subr.bf16.mxu0 %v2904
        %3221 = vmatpush1.bf16.xpose.msra.mxu0 %v2903
        %3222 = vmatprep.subr.bf16.mxu0 %v2906
        %3223 = vmatpush1.bf16.xpose.msra.mxu0 %v2905
        %3224 = vmatprep.subr.bf16.mxu0 %v2908
        %3225 = vmatpush1.bf16.xpose.msra.mxu0 %v2907
        %3226 = vmatprep.subr.bf16.mxu0 %v2910
        %3227 = vmatpush1.bf16.xpose.msra.mxu0 %v2909
        %3228 = vmatprep.subr.bf16.mxu0 %v2912
        %3229 = vmatpush1.bf16.xpose.msra.mxu0 %v2911
        %3230 = vmatprep.subr.bf16.mxu0 %v2914
        %3231 = vmatpush1.bf16.xpose.msra.mxu0 %v2913
        %3232 = vmatprep.subr.bf16.mxu0 %v2916
        %3233 = vmatpush1.bf16.xpose.msra.mxu0 %v2915
        %3234 = vmatprep.subr.bf16.mxu0 %v2918
        %3235 = vmatpush1.bf16.xpose.msra.mxu0 %v2917
        %3236 = vmatprep.subr.bf16.mxu0 %v2920
        %3237 = vmatpush1.bf16.xpose.msra.mxu0 %v2919
        %3238 = vmatprep.subr.bf16.mxu0 %v2922
        %3239 = vmatpush1.bf16.xpose.msra.mxu0 %v2921
        %3240 = vmatprep.subr.bf16.mxu0 %v2924
        %3241 = vmatpush1.bf16.xpose.msra.mxu0 %v2923
        %3242 = vmatprep.subr.bf16.mxu0 %v2926
        %3243 = vmatpush1.bf16.xpose.msra.mxu0 %v2925
        %3244 = vmatprep.subr.bf16.mxu0 %v2928
        %3245 = vmatpush1.bf16.xpose.msra.mxu0 %v2927
        %3246 = vmatprep.mubr.bf16.mxu0 1065369472
        %3247 = vmatmul.mubr.bf16.gmra.mrb[0].mxu0 1065369472
        %v3248 = vpop.f32.mrb[0].mxu0
        %v3249 = vadd.f32 0.0, %v3248
        %v3250 = vpop.f32.mrb[0].mxu0
        %v3251 = vadd.f32 0.0, %v3250
        %v3252 = vpop.f32.mrb[0].mxu0
        %v3253 = vpop.f32.mrb[0].mxu0
        %3254 = vdwg.mxu0
        %3255 = vmatprep.subr.bf16.mxu0 %v2930
        %3256 = vmatpush1.bf16.xpose.msra.mxu0 %v2929
        %3257 = vmatprep.subr.bf16.mxu0 %v2932
        %3258 = vmatpush1.bf16.xpose.msra.mxu0 %v2931
        %3259 = vmatprep.subr.bf16.mxu0 %v2934
        %3260 = vmatpush1.bf16.xpose.msra.mxu0 %v2933
        %3261 = vmatprep.subr.bf16.mxu0 %v2936
        %3262 = vmatpush1.bf16.xpose.msra.mxu0 %v2935
        %3263 = vmatprep.subr.bf16.mxu0 %v2938
        %3264 = vmatpush1.bf16.xpose.msra.mxu0 %v2937
        %3265 = vmatprep.subr.bf16.mxu0 %v2940
        %3266 = vmatpush1.bf16.xpose.msra.mxu0 %v2939
        %3267 = vmatprep.subr.bf16.mxu0 %v2942
        %3268 = vmatpush1.bf16.xpose.msra.mxu0 %v2941
        %3269 = vmatprep.subr.bf16.mxu0 %v2944
        %3270 = vmatpush1.bf16.xpose.msra.mxu0 %v2943
        %3271 = vmatprep.subr.bf16.mxu0 %v2946
        %3272 = vmatpush1.bf16.xpose.msra.mxu0 %v2945
        %3273 = vmatprep.subr.bf16.mxu0 %v2948
        %3274 = vmatpush1.bf16.xpose.msra.mxu0 %v2947
        %3275 = vmatprep.subr.bf16.mxu0 %v2950
        %3276 = vmatpush1.bf16.xpose.msra.mxu0 %v2949
        %3277 = vmatprep.subr.bf16.mxu0 %v2952
        %3278 = vmatpush1.bf16.xpose.msra.mxu0 %v2951
        %3279 = vmatprep.subr.bf16.mxu0 %v2954
        %3280 = vmatpush1.bf16.xpose.msra.mxu0 %v2953
        %3281 = vmatprep.subr.bf16.mxu0 %v2956
        %3282 = vmatpush1.bf16.xpose.msra.mxu0 %v2955
        %3283 = vmatprep.subr.bf16.mxu0 %v2958
        %3284 = vmatpush1.bf16.xpose.msra.mxu0 %v2957
        %3285 = vmatprep.subr.bf16.mxu0 %v2960
        %3286 = vmatpush1.bf16.xpose.msra.mxu0 %v2959
        %3287 = vmatprep.mubr.bf16.mxu0 1065369472
        %3288 = vmatmul.mubr.bf16.gmra.mrb[0].mxu0 1065369472
        %v3289 = vpop.f32.mrb[0].mxu0
        %v3290 = vadd.f32 0.0, %v3289
        %v3291 = vpop.f32.mrb[0].mxu0
        %v3292 = vadd.f32 0.0, %v3291
        %v3293 = vpop.f32.mrb[0].mxu0
        %v3294 = vpop.f32.mrb[0].mxu0
        %3295 = vdwg.mxu0
        %3296 = vmatprep.subr.bf16.mxu0 %v2962
        %3297 = vmatpush1.bf16.xpose.msra.mxu0 %v2961
        %3298 = vmatprep.subr.bf16.mxu0 %v2964
        %3299 = vmatpush1.bf16.xpose.msra.mxu0 %v2963
        %3300 = vmatprep.subr.bf16.mxu0 %v2966
        %3301 = vmatpush1.bf16.xpose.msra.mxu0 %v2965
        %3302 = vmatprep.subr.bf16.mxu0 %v2968
        %3303 = vmatpush1.bf16.xpose.msra.mxu0 %v2967
        %3304 = vmatprep.subr.bf16.mxu0 %v2970
        %3305 = vmatpush1.bf16.xpose.msra.mxu0 %v2969
        %3306 = vmatprep.subr.bf16.mxu0 %v2972
        %3307 = vmatpush1.bf16.xpose.msra.mxu0 %v2971
        %3308 = vmatprep.subr.bf16.mxu0 %v2974
        %3309 = vmatpush1.bf16.xpose.msra.mxu0 %v2973
        %3310 = vmatprep.subr.bf16.mxu0 %v2976
        %3311 = vmatpush1.bf16.xpose.msra.mxu0 %v2975
        %3312 = vmatprep.subr.bf16.mxu0 %v2978
        %3313 = vmatpush1.bf16.xpose.msra.mxu0 %v2977
        %3314 = vmatprep.subr.bf16.mxu0 %v2980
        %3315 = vmatpush1.bf16.xpose.msra.mxu0 %v2979
        %3316 = vmatprep.subr.bf16.mxu0 %v2982
        %3317 = vmatpush1.bf16.xpose.msra.mxu0 %v2981
        %3318 = vmatprep.subr.bf16.mxu0 %v2984
        %3319 = vmatpush1.bf16.xpose.msra.mxu0 %v2983
        %3320 = vmatprep.subr.bf16.mxu0 %v2986
        %3321 = vmatpush1.bf16.xpose.msra.mxu0 %v2985
        %3322 = vmatprep.subr.bf16.mxu0 %v2988
        %3323 = vmatpush1.bf16.xpose.msra.mxu0 %v2987
        %3324 = vmatprep.subr.bf16.mxu0 %v2990
        %3325 = vmatpush1.bf16.xpose.msra.mxu0 %v2989
        %3326 = vmatprep.subr.bf16.mxu0 %v2992
        %3327 = vmatpush1.bf16.xpose.msra.mxu0 %v2991
        %3328 = vmatprep.mubr.bf16.mxu0 1065369472
        %3329 = vmatmul.mubr.bf16.gmra.mrb[0].mxu0 1065369472
        %v3330 = vpop.f32.mrb[0].mxu0
        %v3331 = vadd.f32 0.0, %v3330
        %v3332 = vpop.f32.mrb[0].mxu0
        %v3333 = vadd.f32 0.0, %v3332
        %v3334 = vpop.f32.mrb[0].mxu0
        %v3335 = vpop.f32.mrb[0].mxu0
        %3336 = vdwg.mxu0
        %v3337 = vrcp.pop %v3208
        %v3338 = vrcp.pop %v3210
        %v3339 = vrcp.pop %v3249
        %v3340 = vrcp.pop %v3251
        %v3341 = vrcp.pop %v3290
        %v3342 = vrcp.pop %v3292
        %v3343 = vrcp.pop %v3331
        %v3344 = vrcp.pop %v3333
        %v3345 = vlaneseq
        %v3346 = vshrl.u32 %v3345, 7
        %v3347 = vsub.s32 0, %v3346
        %v3348 = vrot.slane %v3337, %v3347
        %v3349 = vlaneseq
        %v3350 = vshrl.u32 %v3349, 7
        %v3351 = vsub.s32 0, %v3350
        %v3352 = vrot.slane %v3338, %v3351
        %v3353 = vlaneseq
        %v3354 = vshrl.u32 %v3353, 7
        %v3355 = vsub.s32 0, %v3354
        %v3356 = vrot.slane %v3339, %v3355
        %v3357 = vlaneseq
        %v3358 = vshrl.u32 %v3357, 7
        %v3359 = vsub.s32 0, %v3358
        %v3360 = vrot.slane %v3340, %v3359
        %v3361 = vlaneseq
        %v3362 = vshrl.u32 %v3361, 7
        %v3363 = vsub.s32 0, %v3362
        %v3364 = vrot.slane %v3341, %v3363
        %v3365 = vlaneseq
        %v3366 = vshrl.u32 %v3365, 7
        %v3367 = vsub.s32 0, %v3366
        %v3368 = vrot.slane %v3342, %v3367
        %v3369 = vlaneseq
        %v3370 = vshrl.u32 %v3369, 7
        %v3371 = vsub.s32 0, %v3370
        %v3372 = vrot.slane %v3343, %v3371
        %v3373 = vlaneseq
        %v3374 = vshrl.u32 %v3373, 7
        %v3375 = vsub.s32 0, %v3374
        %v3376 = vrot.slane %v3344, %v3375
        %v3377 = vmul.f32 %v3032, %v3348
        %v3378 = vmul.f32 %v3034, %v3352
        %v3379 = vmul.f32 %v3077, %v3356
        %v3380 = vmul.f32 %v3079, %v3360
        %v3381 = vmul.f32 %v3122, %v3364
        %v3382 = vmul.f32 %v3124, %v3368
        %v3383 = vmul.f32 %v3167, %v3372
        %v3384 = vmul.f32 %v3169, %v3376
        %v3385 = vpack.c.bf16 %v3379, %v3377
        %v3386 = vpack.c.bf16 %v3380, %v3378
        %v3387 = vpack.c.bf16 %v3383, %v3381
        %v3388 = vpack.c.bf16 %v3384, %v3382
        %3390 = vset.pattern.permute.xlu0 0
        %3391 = vperm.xlu0 %3390, %v304
        %v3392 = vpop.permute.xlu0 %3391
        %3395 = vset.pattern.permute.xlu0 0
        %3396 = vperm.xlu0 %3395, %v305
        %v3397 = vpop.permute.xlu0 %3396
        %3400 = vset.pattern.permute.xlu0 0
        %3401 = vperm.xlu0 %3400, %v306
        %v3402 = vpop.permute.xlu0 %3401
        %3405 = vset.pattern.permute.xlu0 0
        %3406 = vperm.xlu0 %3405, %v307
        %v3407 = vpop.permute.xlu0 %3406
        %v3413 = vunpack.c.l.b16 %v300
        %v3414 = vunpack.c.l.b16 %v301
        %v3415 = vunpack.c.l.b16 %v302
        %v3416 = vunpack.c.l.b16 %v303
        %v3417 = vpack.c.b16 %v3414, %v3413
        %v3418 = vpack.c.b16 %v3416, %v3415
        %v3420 = vsel %vm411, %v3417, 0
        %v3423 = vsel %vm411, %v3418, 0
        %3425 = vmatprep.subr.bf16.mxu0 %v3386
        %3426 = vmatpush1.bf16.msra.mxu0 %v3385
        %3427 = vmatprep.subr.bf16.mxu0 %v3388
        %3428 = vmatpush1.bf16.msra.mxu0 %v3387
        %3429 = vmatprep.subr.bf16.mxu0 0
        %3430 = vmatpush1.bf16.msra.mxu0 0
        %3431 = vmatprep.subr.bf16.mxu0 0
        %3432 = vmatpush1.bf16.msra.mxu0 0
        %3433 = vmatprep.subr.bf16.mxu0 0
        %3434 = vmatpush1.bf16.msra.mxu0 0
        %3435 = vmatprep.subr.bf16.mxu0 0
        %3436 = vmatpush1.bf16.msra.mxu0 0
        %3437 = vmatprep.subr.bf16.mxu0 0
        %3438 = vmatpush1.bf16.msra.mxu0 0
        %3439 = vmatprep.subr.bf16.mxu0 0
        %3440 = vmatpush1.bf16.msra.mxu0 0
        %3441 = vmatprep.subr.bf16.mxu0 0
        %3442 = vmatpush1.bf16.msra.mxu0 0
        %3443 = vmatprep.subr.bf16.mxu0 0
        %3444 = vmatpush1.bf16.msra.mxu0 0
        %3445 = vmatprep.subr.bf16.mxu0 0
        %3446 = vmatpush1.bf16.msra.mxu0 0
        %3447 = vmatprep.subr.bf16.mxu0 0
        %3448 = vmatpush1.bf16.msra.mxu0 0
        %3449 = vmatprep.subr.bf16.mxu0 0
        %3450 = vmatpush1.bf16.msra.mxu0 0
        %3451 = vmatprep.subr.bf16.mxu0 0
        %3452 = vmatpush1.bf16.msra.mxu0 0
        %3453 = vmatprep.subr.bf16.mxu0 0
        %3454 = vmatpush1.bf16.msra.mxu0 0
        %3455 = vmatprep.subr.bf16.mxu0 0
        %3456 = vmatpush1.bf16.msra.mxu0 0
        %3457 = vmatprep.mubr.bf16.mxu0 0
        %3458 = vmatmul.mubr.bf16.gmra.mrb[0].mxu0 %v3420
        %v3459 = vpop.f32.mrb[0].mxu0
        %v3460 = vadd.f32 %v3392, %v3459
        %v3461 = vpop.f32.mrb[0].mxu0
        %v3462 = vadd.f32 %v3392, %v3461
        %v3463 = vpop.f32.mrb[0].mxu0
        %v3464 = vadd.f32 %v3397, %v3463
        %v3465 = vpop.f32.mrb[0].mxu0
        %v3466 = vadd.f32 %v3397, %v3465
        %3467 = vmatprep.mubr.bf16.mxu0 0
        %3468 = vmatmul.mubr.bf16.gmra.mrb[0].mxu0 %v3423
        %v3469 = vpop.f32.mrb[0].mxu0
        %v3470 = vadd.f32 %v3402, %v3469
        %v3471 = vpop.f32.mrb[0].mxu0
        %v3472 = vadd.f32 %v3402, %v3471
        %v3473 = vpop.f32.mrb[0].mxu0
        %v3474 = vadd.f32 %v3407, %v3473
        %v3475 = vpop.f32.mrb[0].mxu0
        %v3476 = vadd.f32 %v3407, %v3475
        %3477 = vdwg.mxu0
        %v3478 = vstv %s308
        %v3479 = vmul.f32 %v3478, %v3460
        %v3480 = vmul.f32 %v3478, %v3462
        %v3481 = vmul.f32 %v3478, %v3464
        %v3482 = vmul.f32 %v3478, %v3466
        %v3483 = vmul.f32 %v3478, %v3470
        %v3484 = vmul.f32 %v3478, %v3472
        %v3485 = vmul.f32 %v3478, %v3474
        %v3486 = vmul.f32 %v3478, %v3476
        %v3487 = vadd.f32 %v3479, %v309
        %v3488 = vadd.f32 %v3480, %v310
        %v3489 = vadd.f32 %v3481, %v311
        %v3490 = vadd.f32 %v3482, %v312
        %v3491 = vadd.f32 %v3483, %v313
        %v3492 = vadd.f32 %v3484, %v314
        %v3493 = vadd.f32 %v3485, %v315
        %v3494 = vadd.f32 %v3486, %v316
        %3495 = vst [vmem:[%s271] sm:$0xff] %v3487
        %3496 = vst [vmem:[%s271 + $0x8] sm:$0xff] %v3488
        %3497 = vst [vmem:[%s271 + $0x10] sm:$0xff] %v3489
        %3498 = vst [vmem:[%s271 + $0x18] sm:$0xff] %v3490
        %3499 = vst [vmem:[%s271 + $0x20] sm:$0xff] %v3491
        %3500 = vst [vmem:[%s271 + $0x28] sm:$0xff] %v3492
        %3501 = vst [vmem:[%s271 + $0x30] sm:$0xff] %v3493
        %3502 = vst [vmem:[%s271 + $0x38] sm:$0xff] %v3494
        %s3503 = scalar_lea.vmem %s243, 64 [#allocation3]
        %v3504 = vld [vmem:[%s3503] sm:$0xff]
        %v3505 = vld [vmem:[%s3503 + $0x8] sm:$0xff]
        %v3506 = vld [vmem:[%s3503 + $0x10] sm:$0xff]
        %v3507 = vld [vmem:[%s3503 + $0x18] sm:$0xff]
        %v3508 = vld [vmem:[%s3503 + $0x20] sm:$0xff]
        %v3509 = vld [vmem:[%s3503 + $0x28] sm:$0xff]
        %v3510 = vld [vmem:[%s3503 + $0x30] sm:$0xff]
        %v3511 = vld [vmem:[%s3503 + $0x38] sm:$0xff]
        %v3512 = vpack.c.bf16 %v3506, %v3504
        %v3513 = vpack.c.bf16 %v3507, %v3505
        %v3514 = vpack.c.bf16 %v3510, %v3508
        %v3515 = vpack.c.bf16 %v3511, %v3509
        %3516 = vmatprep.subr.bf16.mxu0 %v3513
        %3517 = vmatpush1.bf16.msra.mxu0 %v3512
        %3518 = vmatprep.subr.bf16.mxu0 %v3515
        %3519 = vmatpush1.bf16.msra.mxu0 %v3514
        %3520 = vmatprep.subr.bf16.mxu0 0
        %3521 = vmatpush1.bf16.msra.mxu0 0
        %3522 = vmatprep.subr.bf16.mxu0 0
        %3523 = vmatpush1.bf16.msra.mxu0 0
        %3524 = vmatprep.subr.bf16.mxu0 0
        %3525 = vmatpush1.bf16.msra.mxu0 0
        %3526 = vmatprep.subr.bf16.mxu0 0
        %3527 = vmatpush1.bf16.msra.mxu0 0
        %3528 = vmatprep.subr.bf16.mxu0 0
        %3529 = vmatpush1.bf16.msra.mxu0 0
        %3530 = vmatprep.subr.bf16.mxu0 0
        %3531 = vmatpush1.bf16.msra.mxu0 0
        %3532 = vmatprep.subr.bf16.mxu0 0
        %3533 = vmatpush1.bf16.msra.mxu0 0
        %3534 = vmatprep.subr.bf16.mxu0 0
        %3535 = vmatpush1.bf16.msra.mxu0 0
        %3536 = vmatprep.subr.bf16.mxu0 0
        %3537 = vmatpush1.bf16.msra.mxu0 0
        %3538 = vmatprep.subr.bf16.mxu0 0
        %3539 = vmatpush1.bf16.msra.mxu0 0
        %3540 = vmatprep.subr.bf16.mxu0 0
        %3541 = vmatpush1.bf16.msra.mxu0 0
        %3542 = vmatprep.subr.bf16.mxu0 0
        %3543 = vmatpush1.bf16.msra.mxu0 0
        %3544 = vmatprep.subr.bf16.mxu0 0
        %3545 = vmatpush1.bf16.msra.mxu0 0
        %3546 = vmatprep.subr.bf16.mxu0 0
        %3547 = vmatpush1.bf16.msra.mxu0 0
        %3548 = vmatprep.mubr.bf16.mxu0 0
        %3549 = vmatmul.mubr.bf16.gmra.mrb[0].mxu0 %v413
        %v3550 = vpop.f32.mrb[0].mxu0
        %v3551 = vadd.f32 %v324, %v3550
        %v3552 = vpop.f32.mrb[0].mxu0
        %v3553 = vadd.f32 %v324, %v3552
        %v3554 = vpop.f32.mrb[0].mxu0
        %v3555 = vadd.f32 %v329, %v3554
        %v3556 = vpop.f32.mrb[0].mxu0
        %v3557 = vadd.f32 %v329, %v3556
        %3558 = vmatprep.mubr.bf16.mxu0 0
        %3559 = vmatmul.mubr.bf16.gmra.mrb[0].mxu0 %v416
        %v3560 = vpop.f32.mrb[0].mxu0
        %v3561 = vadd.f32 %v334, %v3560
        %v3562 = vpop.f32.mrb[0].mxu0
        %v3563 = vadd.f32 %v334, %v3562
        %v3564 = vpop.f32.mrb[0].mxu0
        %v3565 = vadd.f32 %v339, %v3564
        %v3566 = vpop.f32.mrb[0].mxu0
        %v3567 = vadd.f32 %v339, %v3566
        %3568 = vmatprep.mubr.bf16.mxu0 0
        %3569 = vmatmul.mubr.bf16.gmra.mrb[0].mxu0 %v419
        %v3570 = vpop.f32.mrb[0].mxu0
        %v3571 = vadd.f32 %v344, %v3570
        %v3572 = vpop.f32.mrb[0].mxu0
        %v3573 = vadd.f32 %v344, %v3572
        %v3574 = vpop.f32.mrb[0].mxu0
        %v3575 = vadd.f32 %v349, %v3574
        %v3576 = vpop.f32.mrb[0].mxu0
        %v3577 = vadd.f32 %v349, %v3576
        %3578 = vmatprep.mubr.bf16.mxu0 0
        %3579 = vmatmul.mubr.bf16.gmra.mrb[0].mxu0 %v422
        %v3580 = vpop.f32.mrb[0].mxu0
        %v3581 = vadd.f32 %v354, %v3580
        %v3582 = vpop.f32.mrb[0].mxu0
        %v3583 = vadd.f32 %v354, %v3582
        %v3584 = vpop.f32.mrb[0].mxu0
        %v3585 = vadd.f32 %v359, %v3584
        %v3586 = vpop.f32.mrb[0].mxu0
        %v3587 = vadd.f32 %v359, %v3586
        %3588 = vmatprep.mubr.bf16.mxu0 0
        %3589 = vmatmul.mubr.bf16.gmra.mrb[0].mxu0 %v425
        %v3590 = vpop.f32.mrb[0].mxu0
        %v3591 = vadd.f32 %v364, %v3590
        %v3592 = vpop.f32.mrb[0].mxu0
        %v3593 = vadd.f32 %v364, %v3592
        %v3594 = vpop.f32.mrb[0].mxu0
        %v3595 = vadd.f32 %v369, %v3594
        %v3596 = vpop.f32.mrb[0].mxu0
        %v3597 = vadd.f32 %v369, %v3596
        %3598 = vmatprep.mubr.bf16.mxu0 0
        %3599 = vmatmul.mubr.bf16.gmra.mrb[0].mxu0 %v428
        %v3600 = vpop.f32.mrb[0].mxu0
        %v3601 = vadd.f32 %v374, %v3600
        %v3602 = vpop.f32.mrb[0].mxu0
        %v3603 = vadd.f32 %v374, %v3602
        %v3604 = vpop.f32.mrb[0].mxu0
        %v3605 = vadd.f32 %v379, %v3604
        %v3606 = vpop.f32.mrb[0].mxu0
        %v3607 = vadd.f32 %v379, %v3606
        %3608 = vdwg.mxu0
        %v3609 = vpack.c.bf16 %v3555, %v3551
        %v3610 = vpack.c.bf16 %v3557, %v3553
        %v3611 = vpack.c.bf16 %v3565, %v3561
        %v3612 = vpack.c.bf16 %v3567, %v3563
        %v3613 = vpack.c.bf16 %v3575, %v3571
        %v3614 = vpack.c.bf16 %v3577, %v3573
        %v3615 = vpack.c.bf16 %v3585, %v3581
        %v3616 = vpack.c.bf16 %v3587, %v3583
        %v3617 = vpack.c.bf16 %v3595, %v3591
        %v3618 = vpack.c.bf16 %v3597, %v3593
        %v3619 = vpack.c.bf16 %v3605, %v3601
        %v3620 = vpack.c.bf16 %v3607, %v3603
        %v3625 = vunpack.c.l.b16 %v3609
        %v3626 = vunpack.c.l.b16 %v3610
        %v3627 = vunpack.c.h.b16 %v3609
        %v3628 = vunpack.c.h.b16 %v3610
        %v3629 = vunpack.c.l.b16 %v3611
        %v3630 = vunpack.c.l.b16 %v3612
        %v3631 = vunpack.c.h.b16 %v3611
        %v3632 = vunpack.c.h.b16 %v3612
        %v3637 = vunpack.c.l.b16 %v3613
        %v3638 = vunpack.c.l.b16 %v3614
        %v3639 = vunpack.c.h.b16 %v3613
        %v3640 = vunpack.c.h.b16 %v3614
        %v3641 = vunpack.c.l.b16 %v3615
        %v3642 = vunpack.c.l.b16 %v3616
        %v3643 = vunpack.c.h.b16 %v3615
        %v3644 = vunpack.c.h.b16 %v3616
        %v3649 = vunpack.c.l.b16 %v3617
        %v3650 = vunpack.c.l.b16 %v3618
        %v3651 = vunpack.c.h.b16 %v3617
        %v3652 = vunpack.c.h.b16 %v3618
        %v3653 = vunpack.c.l.b16 %v3619
        %v3654 = vunpack.c.l.b16 %v3620
        %v3655 = vunpack.c.h.b16 %v3619
        %v3656 = vunpack.c.h.b16 %v3620
        %v3657 = vpack.c.b16 %v3625, %v3625
        %v3658 = vpack.c.b16 %v3626, %v3626
        %3661 = vxpose.xlu0.c.b16.start [1/8] %v3657, 128
        %3662 = vxpose.xlu0.c.b16.cont [2/8] 0, 128
        %3663 = vxpose.xlu0.c.b16.cont [3/8] 0, 128
        %3664 = vxpose.xlu0.c.b16.cont [4/8] 0, 128
        %3665 = vxpose.xlu0.c.b16.cont [5/8] 0, 128
        %3666 = vxpose.xlu0.c.b16.cont [6/8] 0, 128
        %3667 = vxpose.xlu0.c.b16.cont [7/8] 0, 128
        %3668 = vxpose.xlu0.c.b16.end [8/8] 0, 128
        %v3669 = vpop.trf.xlu0
        %v3670 = vpop.trf.xlu0
        %v3671 = vpop.trf.xlu0
        %v3672 = vpop.trf.xlu0
        %v3673 = vpop.trf.xlu0
        %v3674 = vpop.trf.xlu0
        %v3675 = vpop.trf.xlu0
        %v3676 = vpop.trf.xlu0
        %3677 = vxpose.xlu0.c.b16.start [1/8] %v3658, 128
        %3678 = vxpose.xlu0.c.b16.cont [2/8] 0, 128
        %3679 = vxpose.xlu0.c.b16.cont [3/8] 0, 128
        %3680 = vxpose.xlu0.c.b16.cont [4/8] 0, 128
        %3681 = vxpose.xlu0.c.b16.cont [5/8] 0, 128
        %3682 = vxpose.xlu0.c.b16.cont [6/8] 0, 128
        %3683 = vxpose.xlu0.c.b16.cont [7/8] 0, 128
        %3684 = vxpose.xlu0.c.b16.end [8/8] 0, 128
        %v3685 = vpop.trf.xlu0
        %v3686 = vpop.trf.xlu0
        %v3687 = vpop.trf.xlu0
        %v3688 = vpop.trf.xlu0
        %v3689 = vpop.trf.xlu0
        %v3690 = vpop.trf.xlu0
        %v3691 = vpop.trf.xlu0
        %v3692 = vpop.trf.xlu0
        %v3693 = vpack.c.b16 %v3637, %v3637
        %v3694 = vpack.c.b16 %v3638, %v3638
        %v3696 = vsel %vm609, %v3669, 0
        %v3699 = vsel %vm609, %v3670, 0
        %v3702 = vsel %vm609, %v3671, 0
        %v3705 = vsel %vm609, %v3672, 0
        %v3708 = vsel %vm609, %v3673, 0
        %v3711 = vsel %vm609, %v3674, 0
        %v3714 = vsel %vm609, %v3675, 0
        %v3717 = vsel %vm609, %v3676, 0
        %v3720 = vsel %vm609, %v3685, 0
        %v3723 = vsel %vm609, %v3686, 0
        %v3726 = vsel %vm609, %v3687, 0
        %v3729 = vsel %vm609, %v3688, 0
        %v3732 = vsel %vm609, %v3689, 0
        %v3735 = vsel %vm609, %v3690, 0
        %v3738 = vsel %vm609, %v3691, 0
        %v3741 = vsel %vm609, %v3692, 0
        %v3744 = vsel %vm658, %v3693, 0
        %v3747 = vsel %vm658, %v3694, 0
        %3749 = vmatprep.subr.bf16.mxu0 %v3747
        %3750 = vmatpush1.bf16.msra.mxu0 %v3744
        %3751 = vmatprep.subr.bf16.mxu0 0
        %3752 = vmatpush1.bf16.msra.mxu0 0
        %3753 = vmatprep.subr.bf16.mxu0 0
        %3754 = vmatpush1.bf16.msra.mxu0 0
        %3755 = vmatprep.subr.bf16.mxu0 0
        %3756 = vmatpush1.bf16.msra.mxu0 0
        %3757 = vmatprep.subr.bf16.mxu0 0
        %3758 = vmatpush1.bf16.msra.mxu0 0
        %3759 = vmatprep.subr.bf16.mxu0 0
        %3760 = vmatpush1.bf16.msra.mxu0 0
        %3761 = vmatprep.subr.bf16.mxu0 0
        %3762 = vmatpush1.bf16.msra.mxu0 0
        %3763 = vmatprep.subr.bf16.mxu0 0
        %3764 = vmatpush1.bf16.msra.mxu0 0
        %3765 = vmatprep.subr.bf16.mxu0 0
        %3766 = vmatpush1.bf16.msra.mxu0 0
        %3767 = vmatprep.subr.bf16.mxu0 0
        %3768 = vmatpush1.bf16.msra.mxu0 0
        %3769 = vmatprep.subr.bf16.mxu0 0
        %3770 = vmatpush1.bf16.msra.mxu0 0
        %3771 = vmatprep.subr.bf16.mxu0 0
        %3772 = vmatpush1.bf16.msra.mxu0 0
        %3773 = vmatprep.subr.bf16.mxu0 0
        %3774 = vmatpush1.bf16.msra.mxu0 0
        %3775 = vmatprep.subr.bf16.mxu0 0
        %3776 = vmatpush1.bf16.msra.mxu0 0
        %3777 = vmatprep.subr.bf16.mxu0 0
        %3778 = vmatpush1.bf16.msra.mxu0 0
        %3779 = vmatprep.subr.bf16.mxu0 0
        %3780 = vmatpush1.bf16.msra.mxu0 0
        %3781 = vmatprep.mubr.bf16.mxu0 0
        %3782 = vmatmul.mubr.bf16.gmra.mrb[0].mxu0 %v3696
        %v3783 = vpop.f32.mrb[0].mxu0
        %v3784 = vadd.f32 0.0, %v3783
        %v3785 = vpop.f32.mrb[0].mxu0
        %v3786 = vadd.f32 0.0, %v3785
        %v3787 = vpop.f32.mrb[0].mxu0
        %v3788 = vadd.f32 0.0, %v3787
        %v3789 = vpop.f32.mrb[0].mxu0
        %v3790 = vadd.f32 0.0, %v3789
        %3791 = vmatprep.mubr.bf16.mxu0 0
        %3792 = vmatmul.mubr.bf16.gmra.mrb[0].mxu0 %v3699
        %v3793 = vpop.f32.mrb[0].mxu0
        %v3794 = vadd.f32 0.0, %v3793
        %v3795 = vpop.f32.mrb[0].mxu0
        %v3796 = vadd.f32 0.0, %v3795
        %v3797 = vpop.f32.mrb[0].mxu0
        %v3798 = vadd.f32 0.0, %v3797
        %v3799 = vpop.f32.mrb[0].mxu0
        %v3800 = vadd.f32 0.0, %v3799
        %3801 = vmatprep.mubr.bf16.mxu0 0
        %3802 = vmatmul.mubr.bf16.gmra.mrb[0].mxu0 %v3702
        %v3803 = vpop.f32.mrb[0].mxu0
        %v3804 = vadd.f32 0.0, %v3803
        %v3805 = vpop.f32.mrb[0].mxu0
        %v3806 = vadd.f32 0.0, %v3805
        %v3807 = vpop.f32.mrb[0].mxu0
        %v3808 = vadd.f32 0.0, %v3807
        %v3809 = vpop.f32.mrb[0].mxu0
        %v3810 = vadd.f32 0.0, %v3809
        %3811 = vmatprep.mubr.bf16.mxu0 0
        %3812 = vmatmul.mubr.bf16.gmra.mrb[0].mxu0 %v3705
        %v3813 = vpop.f32.mrb[0].mxu0
        %v3814 = vadd.f32 0.0, %v3813
        %v3815 = vpop.f32.mrb[0].mxu0
        %v3816 = vadd.f32 0.0, %v3815
        %v3817 = vpop.f32.mrb[0].mxu0
        %v3818 = vadd.f32 0.0, %v3817
        %v3819 = vpop.f32.mrb[0].mxu0
        %v3820 = vadd.f32 0.0, %v3819
        %3821 = vmatprep.mubr.bf16.mxu0 0
        %3822 = vmatmul.mubr.bf16.gmra.mrb[0].mxu0 %v3708
        %v3823 = vpop.f32.mrb[0].mxu0
        %v3824 = vadd.f32 0.0, %v3823
        %v3825 = vpop.f32.mrb[0].mxu0
        %v3826 = vadd.f32 0.0, %v3825
        %v3827 = vpop.f32.mrb[0].mxu0
        %v3828 = vadd.f32 0.0, %v3827
        %v3829 = vpop.f32.mrb[0].mxu0
        %v3830 = vadd.f32 0.0, %v3829
        %3831 = vmatprep.mubr.bf16.mxu0 0
        %3832 = vmatmul.mubr.bf16.gmra.mrb[0].mxu0 %v3711
        %v3833 = vpop.f32.mrb[0].mxu0
        %v3834 = vadd.f32 0.0, %v3833
        %v3835 = vpop.f32.mrb[0].mxu0
        %v3836 = vadd.f32 0.0, %v3835
        %v3837 = vpop.f32.mrb[0].mxu0
        %v3838 = vadd.f32 0.0, %v3837
        %v3839 = vpop.f32.mrb[0].mxu0
        %v3840 = vadd.f32 0.0, %v3839
        %3841 = vmatprep.mubr.bf16.mxu0 0
        %3842 = vmatmul.mubr.bf16.gmra.mrb[0].mxu0 %v3714
        %v3843 = vpop.f32.mrb[0].mxu0
        %v3844 = vadd.f32 0.0, %v3843
        %v3845 = vpop.f32.mrb[0].mxu0
        %v3846 = vadd.f32 0.0, %v3845
        %v3847 = vpop.f32.mrb[0].mxu0
        %v3848 = vadd.f32 0.0, %v3847
        %v3849 = vpop.f32.mrb[0].mxu0
        %v3850 = vadd.f32 0.0, %v3849
        %3851 = vmatprep.mubr.bf16.mxu0 0
        %3852 = vmatmul.mubr.bf16.gmra.mrb[0].mxu0 %v3717
        %v3853 = vpop.f32.mrb[0].mxu0
        %v3854 = vadd.f32 0.0, %v3853
        %v3855 = vpop.f32.mrb[0].mxu0
        %v3856 = vadd.f32 0.0, %v3855
        %v3857 = vpop.f32.mrb[0].mxu0
        %v3858 = vadd.f32 0.0, %v3857
        %v3859 = vpop.f32.mrb[0].mxu0
        %v3860 = vadd.f32 0.0, %v3859
        %3861 = vmatprep.mubr.bf16.mxu0 0
        %3862 = vmatmul.mubr.bf16.gmra.mrb[0].mxu0 %v3720
        %v3863 = vpop.f32.mrb[0].mxu0
        %v3864 = vadd.f32 0.0, %v3863
        %v3865 = vpop.f32.mrb[0].mxu0
        %v3866 = vadd.f32 0.0, %v3865
        %v3867 = vpop.f32.mrb[0].mxu0
        %v3868 = vadd.f32 0.0, %v3867
        %v3869 = vpop.f32.mrb[0].mxu0
        %v3870 = vadd.f32 0.0, %v3869
        %3871 = vmatprep.mubr.bf16.mxu0 0
        %3872 = vmatmul.mubr.bf16.gmra.mrb[0].mxu0 %v3723
        %v3873 = vpop.f32.mrb[0].mxu0
        %v3874 = vadd.f32 0.0, %v3873
        %v3875 = vpop.f32.mrb[0].mxu0
        %v3876 = vadd.f32 0.0, %v3875
        %v3877 = vpop.f32.mrb[0].mxu0
        %v3878 = vadd.f32 0.0, %v3877
        %v3879 = vpop.f32.mrb[0].mxu0
        %v3880 = vadd.f32 0.0, %v3879
        %3881 = vmatprep.mubr.bf16.mxu0 0
        %3882 = vmatmul.mubr.bf16.gmra.mrb[0].mxu0 %v3726
        %v3883 = vpop.f32.mrb[0].mxu0
        %v3884 = vadd.f32 0.0, %v3883
        %v3885 = vpop.f32.mrb[0].mxu0
        %v3886 = vadd.f32 0.0, %v3885
        %v3887 = vpop.f32.mrb[0].mxu0
        %v3888 = vadd.f32 0.0, %v3887
        %v3889 = vpop.f32.mrb[0].mxu0
        %v3890 = vadd.f32 0.0, %v3889
        %3891 = vmatprep.mubr.bf16.mxu0 0
        %3892 = vmatmul.mubr.bf16.gmra.mrb[0].mxu0 %v3729
        %v3893 = vpop.f32.mrb[0].mxu0
        %v3894 = vadd.f32 0.0, %v3893
        %v3895 = vpop.f32.mrb[0].mxu0
        %v3896 = vadd.f32 0.0, %v3895
        %v3897 = vpop.f32.mrb[0].mxu0
        %v3898 = vadd.f32 0.0, %v3897
        %v3899 = vpop.f32.mrb[0].mxu0
        %v3900 = vadd.f32 0.0, %v3899
        %3901 = vmatprep.mubr.bf16.mxu0 0
        %3902 = vmatmul.mubr.bf16.gmra.mrb[0].mxu0 %v3732
        %v3903 = vpop.f32.mrb[0].mxu0
        %v3904 = vadd.f32 0.0, %v3903
        %v3905 = vpop.f32.mrb[0].mxu0
        %v3906 = vadd.f32 0.0, %v3905
        %v3907 = vpop.f32.mrb[0].mxu0
        %v3908 = vadd.f32 0.0, %v3907
        %v3909 = vpop.f32.mrb[0].mxu0
        %v3910 = vadd.f32 0.0, %v3909
        %3911 = vmatprep.mubr.bf16.mxu0 0
        %3912 = vmatmul.mubr.bf16.gmra.mrb[0].mxu0 %v3735
        %v3913 = vpop.f32.mrb[0].mxu0
        %v3914 = vadd.f32 0.0, %v3913
        %v3915 = vpop.f32.mrb[0].mxu0
        %v3916 = vadd.f32 0.0, %v3915
        %v3917 = vpop.f32.mrb[0].mxu0
        %v3918 = vadd.f32 0.0, %v3917
        %v3919 = vpop.f32.mrb[0].mxu0
        %v3920 = vadd.f32 0.0, %v3919
        %3921 = vmatprep.mubr.bf16.mxu0 0
        %3922 = vmatmul.mubr.bf16.gmra.mrb[0].mxu0 %v3738
        %v3923 = vpop.f32.mrb[0].mxu0
        %v3924 = vadd.f32 0.0, %v3923
        %v3925 = vpop.f32.mrb[0].mxu0
        %v3926 = vadd.f32 0.0, %v3925
        %v3927 = vpop.f32.mrb[0].mxu0
        %v3928 = vadd.f32 0.0, %v3927
        %v3929 = vpop.f32.mrb[0].mxu0
        %v3930 = vadd.f32 0.0, %v3929
        %3931 = vmatprep.mubr.bf16.mxu0 0
        %3932 = vmatmul.mubr.bf16.gmra.mrb[0].mxu0 %v3741
        %v3933 = vpop.f32.mrb[0].mxu0
        %v3934 = vadd.f32 0.0, %v3933
        %v3935 = vpop.f32.mrb[0].mxu0
        %v3936 = vadd.f32 0.0, %v3935
        %v3937 = vpop.f32.mrb[0].mxu0
        %v3938 = vadd.f32 0.0, %v3937
        %v3939 = vpop.f32.mrb[0].mxu0
        %v3940 = vadd.f32 0.0, %v3939
        %3941 = vdwg.mxu0
        %v3942 = vpack.c.b16 %v3627, %v3627
        %v3943 = vpack.c.b16 %v3628, %v3628
        %3946 = vxpose.xlu0.c.b16.start [1/8] %v3942, 128
        %3947 = vxpose.xlu0.c.b16.cont [2/8] 0, 128
        %3948 = vxpose.xlu0.c.b16.cont [3/8] 0, 128
        %3949 = vxpose.xlu0.c.b16.cont [4/8] 0, 128
        %3950 = vxpose.xlu0.c.b16.cont [5/8] 0, 128
        %3951 = vxpose.xlu0.c.b16.cont [6/8] 0, 128
        %3952 = vxpose.xlu0.c.b16.cont [7/8] 0, 128
        %3953 = vxpose.xlu0.c.b16.end [8/8] 0, 128
        %v3954 = vpop.trf.xlu0
        %v3955 = vpop.trf.xlu0
        %v3956 = vpop.trf.xlu0
        %v3957 = vpop.trf.xlu0
        %v3958 = vpop.trf.xlu0
        %v3959 = vpop.trf.xlu0
        %v3960 = vpop.trf.xlu0
        %v3961 = vpop.trf.xlu0
        %3962 = vxpose.xlu0.c.b16.start [1/8] %v3943, 128
        %3963 = vxpose.xlu0.c.b16.cont [2/8] 0, 128
        %3964 = vxpose.xlu0.c.b16.cont [3/8] 0, 128
        %3965 = vxpose.xlu0.c.b16.cont [4/8] 0, 128
        %3966 = vxpose.xlu0.c.b16.cont [5/8] 0, 128
        %3967 = vxpose.xlu0.c.b16.cont [6/8] 0, 128
        %3968 = vxpose.xlu0.c.b16.cont [7/8] 0, 128
        %3969 = vxpose.xlu0.c.b16.end [8/8] 0, 128
        %v3970 = vpop.trf.xlu0
        %v3971 = vpop.trf.xlu0
        %v3972 = vpop.trf.xlu0
        %v3973 = vpop.trf.xlu0
        %v3974 = vpop.trf.xlu0
        %v3975 = vpop.trf.xlu0
        %v3976 = vpop.trf.xlu0
        %v3977 = vpop.trf.xlu0
        %v3978 = vpack.c.b16 %v3639, %v3639
        %v3979 = vpack.c.b16 %v3640, %v3640
        %v3981 = vsel %vm609, %v3954, 0
        %v3984 = vsel %vm609, %v3955, 0
        %v3987 = vsel %vm609, %v3956, 0
        %v3990 = vsel %vm609, %v3957, 0
        %v3993 = vsel %vm609, %v3958, 0
        %v3996 = vsel %vm609, %v3959, 0
        %v3999 = vsel %vm609, %v3960, 0
        %v4002 = vsel %vm609, %v3961, 0
        %v4005 = vsel %vm609, %v3970, 0
        %v4008 = vsel %vm609, %v3971, 0
        %v4011 = vsel %vm609, %v3972, 0
        %v4014 = vsel %vm609, %v3973, 0
        %v4017 = vsel %vm609, %v3974, 0
        %v4020 = vsel %vm609, %v3975, 0
        %v4023 = vsel %vm609, %v3976, 0
        %v4026 = vsel %vm609, %v3977, 0
        %v4029 = vsel %vm658, %v3978, 0
        %v4032 = vsel %vm658, %v3979, 0
        %4034 = vmatprep.subr.bf16.mxu0 %v4032
        %4035 = vmatpush1.bf16.msra.mxu0 %v4029
        %4036 = vmatprep.subr.bf16.mxu0 0
        %4037 = vmatpush1.bf16.msra.mxu0 0
        %4038 = vmatprep.subr.bf16.mxu0 0
        %4039 = vmatpush1.bf16.msra.mxu0 0
        %4040 = vmatprep.subr.bf16.mxu0 0
        %4041 = vmatpush1.bf16.msra.mxu0 0
        %4042 = vmatprep.subr.bf16.mxu0 0
        %4043 = vmatpush1.bf16.msra.mxu0 0
        %4044 = vmatprep.subr.bf16.mxu0 0
        %4045 = vmatpush1.bf16.msra.mxu0 0
        %4046 = vmatprep.subr.bf16.mxu0 0
        %4047 = vmatpush1.bf16.msra.mxu0 0
        %4048 = vmatprep.subr.bf16.mxu0 0
        %4049 = vmatpush1.bf16.msra.mxu0 0
        %4050 = vmatprep.subr.bf16.mxu0 0
        %4051 = vmatpush1.bf16.msra.mxu0 0
        %4052 = vmatprep.subr.bf16.mxu0 0
        %4053 = vmatpush1.bf16.msra.mxu0 0
        %4054 = vmatprep.subr.bf16.mxu0 0
        %4055 = vmatpush1.bf16.msra.mxu0 0
        %4056 = vmatprep.subr.bf16.mxu0 0
        %4057 = vmatpush1.bf16.msra.mxu0 0
        %4058 = vmatprep.subr.bf16.mxu0 0
        %4059 = vmatpush1.bf16.msra.mxu0 0
        %4060 = vmatprep.subr.bf16.mxu0 0
        %4061 = vmatpush1.bf16.msra.mxu0 0
        %4062 = vmatprep.subr.bf16.mxu0 0
        %4063 = vmatpush1.bf16.msra.mxu0 0
        %4064 = vmatprep.subr.bf16.mxu0 0
        %4065 = vmatpush1.bf16.msra.mxu0 0
        %4066 = vmatprep.mubr.bf16.mxu0 0
        %4067 = vmatmul.mubr.bf16.gmra.mrb[0].mxu0 %v3981
        %v4068 = vpop.f32.mrb[0].mxu0
        %v4069 = vadd.f32 0.0, %v4068
        %v4070 = vpop.f32.mrb[0].mxu0
        %v4071 = vadd.f32 0.0, %v4070
        %v4072 = vpop.f32.mrb[0].mxu0
        %v4073 = vadd.f32 0.0, %v4072
        %v4074 = vpop.f32.mrb[0].mxu0
        %v4075 = vadd.f32 0.0, %v4074
        %4076 = vmatprep.mubr.bf16.mxu0 0
        %4077 = vmatmul.mubr.bf16.gmra.mrb[0].mxu0 %v3984
        %v4078 = vpop.f32.mrb[0].mxu0
        %v4079 = vadd.f32 0.0, %v4078
        %v4080 = vpop.f32.mrb[0].mxu0
        %v4081 = vadd.f32 0.0, %v4080
        %v4082 = vpop.f32.mrb[0].mxu0
        %v4083 = vadd.f32 0.0, %v4082
        %v4084 = vpop.f32.mrb[0].mxu0
        %v4085 = vadd.f32 0.0, %v4084
        %4086 = vmatprep.mubr.bf16.mxu0 0
        %4087 = vmatmul.mubr.bf16.gmra.mrb[0].mxu0 %v3987
        %v4088 = vpop.f32.mrb[0].mxu0
        %v4089 = vadd.f32 0.0, %v4088
        %v4090 = vpop.f32.mrb[0].mxu0
        %v4091 = vadd.f32 0.0, %v4090
        %v4092 = vpop.f32.mrb[0].mxu0
        %v4093 = vadd.f32 0.0, %v4092
        %v4094 = vpop.f32.mrb[0].mxu0
        %v4095 = vadd.f32 0.0, %v4094
        %4096 = vmatprep.mubr.bf16.mxu0 0
        %4097 = vmatmul.mubr.bf16.gmra.mrb[0].mxu0 %v3990
        %v4098 = vpop.f32.mrb[0].mxu0
        %v4099 = vadd.f32 0.0, %v4098
        %v4100 = vpop.f32.mrb[0].mxu0
        %v4101 = vadd.f32 0.0, %v4100
        %v4102 = vpop.f32.mrb[0].mxu0
        %v4103 = vadd.f32 0.0, %v4102
        %v4104 = vpop.f32.mrb[0].mxu0
        %v4105 = vadd.f32 0.0, %v4104
        %4106 = vmatprep.mubr.bf16.mxu0 0
        %4107 = vmatmul.mubr.bf16.gmra.mrb[0].mxu0 %v3993
        %v4108 = vpop.f32.mrb[0].mxu0
        %v4109 = vadd.f32 0.0, %v4108
        %v4110 = vpop.f32.mrb[0].mxu0
        %v4111 = vadd.f32 0.0, %v4110
        %v4112 = vpop.f32.mrb[0].mxu0
        %v4113 = vadd.f32 0.0, %v4112
        %v4114 = vpop.f32.mrb[0].mxu0
        %v4115 = vadd.f32 0.0, %v4114
        %4116 = vmatprep.mubr.bf16.mxu0 0
        %4117 = vmatmul.mubr.bf16.gmra.mrb[0].mxu0 %v3996
        %v4118 = vpop.f32.mrb[0].mxu0
        %v4119 = vadd.f32 0.0, %v4118
        %v4120 = vpop.f32.mrb[0].mxu0
        %v4121 = vadd.f32 0.0, %v4120
        %v4122 = vpop.f32.mrb[0].mxu0
        %v4123 = vadd.f32 0.0, %v4122
        %v4124 = vpop.f32.mrb[0].mxu0
        %v4125 = vadd.f32 0.0, %v4124
        %4126 = vmatprep.mubr.bf16.mxu0 0
        %4127 = vmatmul.mubr.bf16.gmra.mrb[0].mxu0 %v3999
        %v4128 = vpop.f32.mrb[0].mxu0
        %v4129 = vadd.f32 0.0, %v4128
        %v4130 = vpop.f32.mrb[0].mxu0
        %v4131 = vadd.f32 0.0, %v4130
        %v4132 = vpop.f32.mrb[0].mxu0
        %v4133 = vadd.f32 0.0, %v4132
        %v4134 = vpop.f32.mrb[0].mxu0
        %v4135 = vadd.f32 0.0, %v4134
        %4136 = vmatprep.mubr.bf16.mxu0 0
        %4137 = vmatmul.mubr.bf16.gmra.mrb[0].mxu0 %v4002
        %v4138 = vpop.f32.mrb[0].mxu0
        %v4139 = vadd.f32 0.0, %v4138
        %v4140 = vpop.f32.mrb[0].mxu0
        %v4141 = vadd.f32 0.0, %v4140
        %v4142 = vpop.f32.mrb[0].mxu0
        %v4143 = vadd.f32 0.0, %v4142
        %v4144 = vpop.f32.mrb[0].mxu0
        %v4145 = vadd.f32 0.0, %v4144
        %4146 = vmatprep.mubr.bf16.mxu0 0
        %4147 = vmatmul.mubr.bf16.gmra.mrb[0].mxu0 %v4005
        %v4148 = vpop.f32.mrb[0].mxu0
        %v4149 = vadd.f32 0.0, %v4148
        %v4150 = vpop.f32.mrb[0].mxu0
        %v4151 = vadd.f32 0.0, %v4150
        %v4152 = vpop.f32.mrb[0].mxu0
        %v4153 = vadd.f32 0.0, %v4152
        %v4154 = vpop.f32.mrb[0].mxu0
        %v4155 = vadd.f32 0.0, %v4154
        %4156 = vmatprep.mubr.bf16.mxu0 0
        %4157 = vmatmul.mubr.bf16.gmra.mrb[0].mxu0 %v4008
        %v4158 = vpop.f32.mrb[0].mxu0
        %v4159 = vadd.f32 0.0, %v4158
        %v4160 = vpop.f32.mrb[0].mxu0
        %v4161 = vadd.f32 0.0, %v4160
        %v4162 = vpop.f32.mrb[0].mxu0
        %v4163 = vadd.f32 0.0, %v4162
        %v4164 = vpop.f32.mrb[0].mxu0
        %v4165 = vadd.f32 0.0, %v4164
        %4166 = vmatprep.mubr.bf16.mxu0 0
        %4167 = vmatmul.mubr.bf16.gmra.mrb[0].mxu0 %v4011
        %v4168 = vpop.f32.mrb[0].mxu0
        %v4169 = vadd.f32 0.0, %v4168
        %v4170 = vpop.f32.mrb[0].mxu0
        %v4171 = vadd.f32 0.0, %v4170
        %v4172 = vpop.f32.mrb[0].mxu0
        %v4173 = vadd.f32 0.0, %v4172
        %v4174 = vpop.f32.mrb[0].mxu0
        %v4175 = vadd.f32 0.0, %v4174
        %4176 = vmatprep.mubr.bf16.mxu0 0
        %4177 = vmatmul.mubr.bf16.gmra.mrb[0].mxu0 %v4014
        %v4178 = vpop.f32.mrb[0].mxu0
        %v4179 = vadd.f32 0.0, %v4178
        %v4180 = vpop.f32.mrb[0].mxu0
        %v4181 = vadd.f32 0.0, %v4180
        %v4182 = vpop.f32.mrb[0].mxu0
        %v4183 = vadd.f32 0.0, %v4182
        %v4184 = vpop.f32.mrb[0].mxu0
        %v4185 = vadd.f32 0.0, %v4184
        %4186 = vmatprep.mubr.bf16.mxu0 0
        %4187 = vmatmul.mubr.bf16.gmra.mrb[0].mxu0 %v4017
        %v4188 = vpop.f32.mrb[0].mxu0
        %v4189 = vadd.f32 0.0, %v4188
        %v4190 = vpop.f32.mrb[0].mxu0
        %v4191 = vadd.f32 0.0, %v4190
        %v4192 = vpop.f32.mrb[0].mxu0
        %v4193 = vadd.f32 0.0, %v4192
        %v4194 = vpop.f32.mrb[0].mxu0
        %v4195 = vadd.f32 0.0, %v4194
        %4196 = vmatprep.mubr.bf16.mxu0 0
        %4197 = vmatmul.mubr.bf16.gmra.mrb[0].mxu0 %v4020
        %v4198 = vpop.f32.mrb[0].mxu0
        %v4199 = vadd.f32 0.0, %v4198
        %v4200 = vpop.f32.mrb[0].mxu0
        %v4201 = vadd.f32 0.0, %v4200
        %v4202 = vpop.f32.mrb[0].mxu0
        %v4203 = vadd.f32 0.0, %v4202
        %v4204 = vpop.f32.mrb[0].mxu0
        %v4205 = vadd.f32 0.0, %v4204
        %4206 = vmatprep.mubr.bf16.mxu0 0
        %4207 = vmatmul.mubr.bf16.gmra.mrb[0].mxu0 %v4023
        %v4208 = vpop.f32.mrb[0].mxu0
        %v4209 = vadd.f32 0.0, %v4208
        %v4210 = vpop.f32.mrb[0].mxu0
        %v4211 = vadd.f32 0.0, %v4210
        %v4212 = vpop.f32.mrb[0].mxu0
        %v4213 = vadd.f32 0.0, %v4212
        %v4214 = vpop.f32.mrb[0].mxu0
        %v4215 = vadd.f32 0.0, %v4214
        %4216 = vmatprep.mubr.bf16.mxu0 0
        %4217 = vmatmul.mubr.bf16.gmra.mrb[0].mxu0 %v4026
        %v4218 = vpop.f32.mrb[0].mxu0
        %v4219 = vadd.f32 0.0, %v4218
        %v4220 = vpop.f32.mrb[0].mxu0
        %v4221 = vadd.f32 0.0, %v4220
        %v4222 = vpop.f32.mrb[0].mxu0
        %v4223 = vadd.f32 0.0, %v4222
        %v4224 = vpop.f32.mrb[0].mxu0
        %v4225 = vadd.f32 0.0, %v4224
        %4226 = vdwg.mxu0
        %v4227 = vpack.c.b16 %v3629, %v3629
        %v4228 = vpack.c.b16 %v3630, %v3630
        %4231 = vxpose.xlu0.c.b16.start [1/8] %v4227, 128
        %4232 = vxpose.xlu0.c.b16.cont [2/8] 0, 128
        %4233 = vxpose.xlu0.c.b16.cont [3/8] 0, 128
        %4234 = vxpose.xlu0.c.b16.cont [4/8] 0, 128
        %4235 = vxpose.xlu0.c.b16.cont [5/8] 0, 128
        %4236 = vxpose.xlu0.c.b16.cont [6/8] 0, 128
        %4237 = vxpose.xlu0.c.b16.cont [7/8] 0, 128
        %4238 = vxpose.xlu0.c.b16.end [8/8] 0, 128
        %v4239 = vpop.trf.xlu0
        %v4240 = vpop.trf.xlu0
        %v4241 = vpop.trf.xlu0
        %v4242 = vpop.trf.xlu0
        %v4243 = vpop.trf.xlu0
        %v4244 = vpop.trf.xlu0
        %v4245 = vpop.trf.xlu0
        %v4246 = vpop.trf.xlu0
        %4247 = vxpose.xlu0.c.b16.start [1/8] %v4228, 128
        %4248 = vxpose.xlu0.c.b16.cont [2/8] 0, 128
        %4249 = vxpose.xlu0.c.b16.cont [3/8] 0, 128
        %4250 = vxpose.xlu0.c.b16.cont [4/8] 0, 128
        %4251 = vxpose.xlu0.c.b16.cont [5/8] 0, 128
        %4252 = vxpose.xlu0.c.b16.cont [6/8] 0, 128
        %4253 = vxpose.xlu0.c.b16.cont [7/8] 0, 128
        %4254 = vxpose.xlu0.c.b16.end [8/8] 0, 128
        %v4255 = vpop.trf.xlu0
        %v4256 = vpop.trf.xlu0
        %v4257 = vpop.trf.xlu0
        %v4258 = vpop.trf.xlu0
        %v4259 = vpop.trf.xlu0
        %v4260 = vpop.trf.xlu0
        %v4261 = vpop.trf.xlu0
        %v4262 = vpop.trf.xlu0
        %v4263 = vpack.c.b16 %v3641, %v3641
        %v4264 = vpack.c.b16 %v3642, %v3642
        %v4266 = vsel %vm609, %v4239, 0
        %v4269 = vsel %vm609, %v4240, 0
        %v4272 = vsel %vm609, %v4241, 0
        %v4275 = vsel %vm609, %v4242, 0
        %v4278 = vsel %vm609, %v4243, 0
        %v4281 = vsel %vm609, %v4244, 0
        %v4284 = vsel %vm609, %v4245, 0
        %v4287 = vsel %vm609, %v4246, 0
        %v4290 = vsel %vm609, %v4255, 0
        %v4293 = vsel %vm609, %v4256, 0
        %v4296 = vsel %vm609, %v4257, 0
        %v4299 = vsel %vm609, %v4258, 0
        %v4302 = vsel %vm609, %v4259, 0
        %v4305 = vsel %vm609, %v4260, 0
        %v4308 = vsel %vm609, %v4261, 0
        %v4311 = vsel %vm609, %v4262, 0
        %v4314 = vsel %vm658, %v4263, 0
        %v4317 = vsel %vm658, %v4264, 0
        %4319 = vmatprep.subr.bf16.mxu0 %v4317
        %4320 = vmatpush1.bf16.msra.mxu0 %v4314
        %4321 = vmatprep.subr.bf16.mxu0 0
        %4322 = vmatpush1.bf16.msra.mxu0 0
        %4323 = vmatprep.subr.bf16.mxu0 0
        %4324 = vmatpush1.bf16.msra.mxu0 0
        %4325 = vmatprep.subr.bf16.mxu0 0
        %4326 = vmatpush1.bf16.msra.mxu0 0
        %4327 = vmatprep.subr.bf16.mxu0 0
        %4328 = vmatpush1.bf16.msra.mxu0 0
        %4329 = vmatprep.subr.bf16.mxu0 0
        %4330 = vmatpush1.bf16.msra.mxu0 0
        %4331 = vmatprep.subr.bf16.mxu0 0
        %4332 = vmatpush1.bf16.msra.mxu0 0
        %4333 = vmatprep.subr.bf16.mxu0 0
        %4334 = vmatpush1.bf16.msra.mxu0 0
        %4335 = vmatprep.subr.bf16.mxu0 0
        %4336 = vmatpush1.bf16.msra.mxu0 0
        %4337 = vmatprep.subr.bf16.mxu0 0
        %4338 = vmatpush1.bf16.msra.mxu0 0
        %4339 = vmatprep.subr.bf16.mxu0 0
        %4340 = vmatpush1.bf16.msra.mxu0 0
        %4341 = vmatprep.subr.bf16.mxu0 0
        %4342 = vmatpush1.bf16.msra.mxu0 0
        %4343 = vmatprep.subr.bf16.mxu0 0
        %4344 = vmatpush1.bf16.msra.mxu0 0
        %4345 = vmatprep.subr.bf16.mxu0 0
        %4346 = vmatpush1.bf16.msra.mxu0 0
        %4347 = vmatprep.subr.bf16.mxu0 0
        %4348 = vmatpush1.bf16.msra.mxu0 0
        %4349 = vmatprep.subr.bf16.mxu0 0
        %4350 = vmatpush1.bf16.msra.mxu0 0
        %4351 = vmatprep.mubr.bf16.mxu0 0
        %4352 = vmatmul.mubr.bf16.gmra.mrb[0].mxu0 %v4266
        %v4353 = vpop.f32.mrb[0].mxu0
        %v4354 = vadd.f32 0.0, %v4353
        %v4355 = vpop.f32.mrb[0].mxu0
        %v4356 = vadd.f32 0.0, %v4355
        %v4357 = vpop.f32.mrb[0].mxu0
        %v4358 = vadd.f32 0.0, %v4357
        %v4359 = vpop.f32.mrb[0].mxu0
        %v4360 = vadd.f32 0.0, %v4359
        %4361 = vmatprep.mubr.bf16.mxu0 0
        %4362 = vmatmul.mubr.bf16.gmra.mrb[0].mxu0 %v4269
        %v4363 = vpop.f32.mrb[0].mxu0
        %v4364 = vadd.f32 0.0, %v4363
        %v4365 = vpop.f32.mrb[0].mxu0
        %v4366 = vadd.f32 0.0, %v4365
        %v4367 = vpop.f32.mrb[0].mxu0
        %v4368 = vadd.f32 0.0, %v4367
        %v4369 = vpop.f32.mrb[0].mxu0
        %v4370 = vadd.f32 0.0, %v4369
        %4371 = vmatprep.mubr.bf16.mxu0 0
        %4372 = vmatmul.mubr.bf16.gmra.mrb[0].mxu0 %v4272
        %v4373 = vpop.f32.mrb[0].mxu0
        %v4374 = vadd.f32 0.0, %v4373
        %v4375 = vpop.f32.mrb[0].mxu0
        %v4376 = vadd.f32 0.0, %v4375
        %v4377 = vpop.f32.mrb[0].mxu0
        %v4378 = vadd.f32 0.0, %v4377
        %v4379 = vpop.f32.mrb[0].mxu0
        %v4380 = vadd.f32 0.0, %v4379
        %4381 = vmatprep.mubr.bf16.mxu0 0
        %4382 = vmatmul.mubr.bf16.gmra.mrb[0].mxu0 %v4275
        %v4383 = vpop.f32.mrb[0].mxu0
        %v4384 = vadd.f32 0.0, %v4383
        %v4385 = vpop.f32.mrb[0].mxu0
        %v4386 = vadd.f32 0.0, %v4385
        %v4387 = vpop.f32.mrb[0].mxu0
        %v4388 = vadd.f32 0.0, %v4387
        %v4389 = vpop.f32.mrb[0].mxu0
        %v4390 = vadd.f32 0.0, %v4389
        %4391 = vmatprep.mubr.bf16.mxu0 0
        %4392 = vmatmul.mubr.bf16.gmra.mrb[0].mxu0 %v4278
        %v4393 = vpop.f32.mrb[0].mxu0
        %v4394 = vadd.f32 0.0, %v4393
        %v4395 = vpop.f32.mrb[0].mxu0
        %v4396 = vadd.f32 0.0, %v4395
        %v4397 = vpop.f32.mrb[0].mxu0
        %v4398 = vadd.f32 0.0, %v4397
        %v4399 = vpop.f32.mrb[0].mxu0
        %v4400 = vadd.f32 0.0, %v4399
        %4401 = vmatprep.mubr.bf16.mxu0 0
        %4402 = vmatmul.mubr.bf16.gmra.mrb[0].mxu0 %v4281
        %v4403 = vpop.f32.mrb[0].mxu0
        %v4404 = vadd.f32 0.0, %v4403
        %v4405 = vpop.f32.mrb[0].mxu0
        %v4406 = vadd.f32 0.0, %v4405
        %v4407 = vpop.f32.mrb[0].mxu0
        %v4408 = vadd.f32 0.0, %v4407
        %v4409 = vpop.f32.mrb[0].mxu0
        %v4410 = vadd.f32 0.0, %v4409
        %4411 = vmatprep.mubr.bf16.mxu0 0
        %4412 = vmatmul.mubr.bf16.gmra.mrb[0].mxu0 %v4284
        %v4413 = vpop.f32.mrb[0].mxu0
        %v4414 = vadd.f32 0.0, %v4413
        %v4415 = vpop.f32.mrb[0].mxu0
        %v4416 = vadd.f32 0.0, %v4415
        %v4417 = vpop.f32.mrb[0].mxu0
        %v4418 = vadd.f32 0.0, %v4417
        %v4419 = vpop.f32.mrb[0].mxu0
        %v4420 = vadd.f32 0.0, %v4419
        %4421 = vmatprep.mubr.bf16.mxu0 0
        %4422 = vmatmul.mubr.bf16.gmra.mrb[0].mxu0 %v4287
        %v4423 = vpop.f32.mrb[0].mxu0
        %v4424 = vadd.f32 0.0, %v4423
        %v4425 = vpop.f32.mrb[0].mxu0
        %v4426 = vadd.f32 0.0, %v4425
        %v4427 = vpop.f32.mrb[0].mxu0
        %v4428 = vadd.f32 0.0, %v4427
        %v4429 = vpop.f32.mrb[0].mxu0
        %v4430 = vadd.f32 0.0, %v4429
        %4431 = vmatprep.mubr.bf16.mxu0 0
        %4432 = vmatmul.mubr.bf16.gmra.mrb[0].mxu0 %v4290
        %v4433 = vpop.f32.mrb[0].mxu0
        %v4434 = vadd.f32 0.0, %v4433
        %v4435 = vpop.f32.mrb[0].mxu0
        %v4436 = vadd.f32 0.0, %v4435
        %v4437 = vpop.f32.mrb[0].mxu0
        %v4438 = vadd.f32 0.0, %v4437
        %v4439 = vpop.f32.mrb[0].mxu0
        %v4440 = vadd.f32 0.0, %v4439
        %4441 = vmatprep.mubr.bf16.mxu0 0
        %4442 = vmatmul.mubr.bf16.gmra.mrb[0].mxu0 %v4293
        %v4443 = vpop.f32.mrb[0].mxu0
        %v4444 = vadd.f32 0.0, %v4443
        %v4445 = vpop.f32.mrb[0].mxu0
        %v4446 = vadd.f32 0.0, %v4445
        %v4447 = vpop.f32.mrb[0].mxu0
        %v4448 = vadd.f32 0.0, %v4447
        %v4449 = vpop.f32.mrb[0].mxu0
        %v4450 = vadd.f32 0.0, %v4449
        %4451 = vmatprep.mubr.bf16.mxu0 0
        %4452 = vmatmul.mubr.bf16.gmra.mrb[0].mxu0 %v4296
        %v4453 = vpop.f32.mrb[0].mxu0
        %v4454 = vadd.f32 0.0, %v4453
        %v4455 = vpop.f32.mrb[0].mxu0
        %v4456 = vadd.f32 0.0, %v4455
        %v4457 = vpop.f32.mrb[0].mxu0
        %v4458 = vadd.f32 0.0, %v4457
        %v4459 = vpop.f32.mrb[0].mxu0
        %v4460 = vadd.f32 0.0, %v4459
        %4461 = vmatprep.mubr.bf16.mxu0 0
        %4462 = vmatmul.mubr.bf16.gmra.mrb[0].mxu0 %v4299
        %v4463 = vpop.f32.mrb[0].mxu0
        %v4464 = vadd.f32 0.0, %v4463
        %v4465 = vpop.f32.mrb[0].mxu0
        %v4466 = vadd.f32 0.0, %v4465
        %v4467 = vpop.f32.mrb[0].mxu0
        %v4468 = vadd.f32 0.0, %v4467
        %v4469 = vpop.f32.mrb[0].mxu0
        %v4470 = vadd.f32 0.0, %v4469
        %4471 = vmatprep.mubr.bf16.mxu0 0
        %4472 = vmatmul.mubr.bf16.gmra.mrb[0].mxu0 %v4302
        %v4473 = vpop.f32.mrb[0].mxu0
        %v4474 = vadd.f32 0.0, %v4473
        %v4475 = vpop.f32.mrb[0].mxu0
        %v4476 = vadd.f32 0.0, %v4475
        %v4477 = vpop.f32.mrb[0].mxu0
        %v4478 = vadd.f32 0.0, %v4477
        %v4479 = vpop.f32.mrb[0].mxu0
        %v4480 = vadd.f32 0.0, %v4479
        %4481 = vmatprep.mubr.bf16.mxu0 0
        %4482 = vmatmul.mubr.bf16.gmra.mrb[0].mxu0 %v4305
        %v4483 = vpop.f32.mrb[0].mxu0
        %v4484 = vadd.f32 0.0, %v4483
        %v4485 = vpop.f32.mrb[0].mxu0
        %v4486 = vadd.f32 0.0, %v4485
        %v4487 = vpop.f32.mrb[0].mxu0
        %v4488 = vadd.f32 0.0, %v4487
        %v4489 = vpop.f32.mrb[0].mxu0
        %v4490 = vadd.f32 0.0, %v4489
        %4491 = vmatprep.mubr.bf16.mxu0 0
        %4492 = vmatmul.mubr.bf16.gmra.mrb[0].mxu0 %v4308
        %v4493 = vpop.f32.mrb[0].mxu0
        %v4494 = vadd.f32 0.0, %v4493
        %v4495 = vpop.f32.mrb[0].mxu0
        %v4496 = vadd.f32 0.0, %v4495
        %v4497 = vpop.f32.mrb[0].mxu0
        %v4498 = vadd.f32 0.0, %v4497
        %v4499 = vpop.f32.mrb[0].mxu0
        %v4500 = vadd.f32 0.0, %v4499
        %4501 = vmatprep.mubr.bf16.mxu0 0
        %4502 = vmatmul.mubr.bf16.gmra.mrb[0].mxu0 %v4311
        %v4503 = vpop.f32.mrb[0].mxu0
        %v4504 = vadd.f32 0.0, %v4503
        %v4505 = vpop.f32.mrb[0].mxu0
        %v4506 = vadd.f32 0.0, %v4505
        %v4507 = vpop.f32.mrb[0].mxu0
        %v4508 = vadd.f32 0.0, %v4507
        %v4509 = vpop.f32.mrb[0].mxu0
        %v4510 = vadd.f32 0.0, %v4509
        %4511 = vdwg.mxu0
        %v4512 = vpack.c.b16 %v3631, %v3631
        %v4513 = vpack.c.b16 %v3632, %v3632
        %4516 = vxpose.xlu0.c.b16.start [1/8] %v4512, 128
        %4517 = vxpose.xlu0.c.b16.cont [2/8] 0, 128
        %4518 = vxpose.xlu0.c.b16.cont [3/8] 0, 128
        %4519 = vxpose.xlu0.c.b16.cont [4/8] 0, 128
        %4520 = vxpose.xlu0.c.b16.cont [5/8] 0, 128
        %4521 = vxpose.xlu0.c.b16.cont [6/8] 0, 128
        %4522 = vxpose.xlu0.c.b16.cont [7/8] 0, 128
        %4523 = vxpose.xlu0.c.b16.end [8/8] 0, 128
        %v4524 = vpop.trf.xlu0
        %v4525 = vpop.trf.xlu0
        %v4526 = vpop.trf.xlu0
        %v4527 = vpop.trf.xlu0
        %v4528 = vpop.trf.xlu0
        %v4529 = vpop.trf.xlu0
        %v4530 = vpop.trf.xlu0
        %v4531 = vpop.trf.xlu0
        %4532 = vxpose.xlu0.c.b16.start [1/8] %v4513, 128
        %4533 = vxpose.xlu0.c.b16.cont [2/8] 0, 128
        %4534 = vxpose.xlu0.c.b16.cont [3/8] 0, 128
        %4535 = vxpose.xlu0.c.b16.cont [4/8] 0, 128
        %4536 = vxpose.xlu0.c.b16.cont [5/8] 0, 128
        %4537 = vxpose.xlu0.c.b16.cont [6/8] 0, 128
        %4538 = vxpose.xlu0.c.b16.cont [7/8] 0, 128
        %4539 = vxpose.xlu0.c.b16.end [8/8] 0, 128
        %v4540 = vpop.trf.xlu0
        %v4541 = vpop.trf.xlu0
        %v4542 = vpop.trf.xlu0
        %v4543 = vpop.trf.xlu0
        %v4544 = vpop.trf.xlu0
        %v4545 = vpop.trf.xlu0
        %v4546 = vpop.trf.xlu0
        %v4547 = vpop.trf.xlu0
        %v4548 = vpack.c.b16 %v3643, %v3643
        %v4549 = vpack.c.b16 %v3644, %v3644
        %v4551 = vsel %vm609, %v4524, 0
        %v4554 = vsel %vm609, %v4525, 0
        %v4557 = vsel %vm609, %v4526, 0
        %v4560 = vsel %vm609, %v4527, 0
        %v4563 = vsel %vm609, %v4528, 0
        %v4566 = vsel %vm609, %v4529, 0
        %v4569 = vsel %vm609, %v4530, 0
        %v4572 = vsel %vm609, %v4531, 0
        %v4575 = vsel %vm609, %v4540, 0
        %v4578 = vsel %vm609, %v4541, 0
        %v4581 = vsel %vm609, %v4542, 0
        %v4584 = vsel %vm609, %v4543, 0
        %v4587 = vsel %vm609, %v4544, 0
        %v4590 = vsel %vm609, %v4545, 0
        %v4593 = vsel %vm609, %v4546, 0
        %v4596 = vsel %vm609, %v4547, 0
        %v4599 = vsel %vm658, %v4548, 0
        %v4602 = vsel %vm658, %v4549, 0
        %4604 = vmatprep.subr.bf16.mxu0 %v4602
        %4605 = vmatpush1.bf16.msra.mxu0 %v4599
        %4606 = vmatprep.subr.bf16.mxu0 0
        %4607 = vmatpush1.bf16.msra.mxu0 0
        %4608 = vmatprep.subr.bf16.mxu0 0
        %4609 = vmatpush1.bf16.msra.mxu0 0
        %4610 = vmatprep.subr.bf16.mxu0 0
        %4611 = vmatpush1.bf16.msra.mxu0 0
        %4612 = vmatprep.subr.bf16.mxu0 0
        %4613 = vmatpush1.bf16.msra.mxu0 0
        %4614 = vmatprep.subr.bf16.mxu0 0
        %4615 = vmatpush1.bf16.msra.mxu0 0
        %4616 = vmatprep.subr.bf16.mxu0 0
        %4617 = vmatpush1.bf16.msra.mxu0 0
        %4618 = vmatprep.subr.bf16.mxu0 0
        %4619 = vmatpush1.bf16.msra.mxu0 0
        %4620 = vmatprep.subr.bf16.mxu0 0
        %4621 = vmatpush1.bf16.msra.mxu0 0
        %4622 = vmatprep.subr.bf16.mxu0 0
        %4623 = vmatpush1.bf16.msra.mxu0 0
        %4624 = vmatprep.subr.bf16.mxu0 0
        %4625 = vmatpush1.bf16.msra.mxu0 0
        %4626 = vmatprep.subr.bf16.mxu0 0
        %4627 = vmatpush1.bf16.msra.mxu0 0
        %4628 = vmatprep.subr.bf16.mxu0 0
        %4629 = vmatpush1.bf16.msra.mxu0 0
        %4630 = vmatprep.subr.bf16.mxu0 0
        %4631 = vmatpush1.bf16.msra.mxu0 0
        %4632 = vmatprep.subr.bf16.mxu0 0
        %4633 = vmatpush1.bf16.msra.mxu0 0
        %4634 = vmatprep.subr.bf16.mxu0 0
        %4635 = vmatpush1.bf16.msra.mxu0 0
        %4636 = vmatprep.mubr.bf16.mxu0 0
        %4637 = vmatmul.mubr.bf16.gmra.mrb[0].mxu0 %v4551
        %v4638 = vpop.f32.mrb[0].mxu0
        %v4639 = vadd.f32 0.0, %v4638
        %v4640 = vpop.f32.mrb[0].mxu0
        %v4641 = vadd.f32 0.0, %v4640
        %v4642 = vpop.f32.mrb[0].mxu0
        %v4643 = vadd.f32 0.0, %v4642
        %v4644 = vpop.f32.mrb[0].mxu0
        %v4645 = vadd.f32 0.0, %v4644
        %4646 = vmatprep.mubr.bf16.mxu0 0
        %4647 = vmatmul.mubr.bf16.gmra.mrb[0].mxu0 %v4554
        %v4648 = vpop.f32.mrb[0].mxu0
        %v4649 = vadd.f32 0.0, %v4648
        %v4650 = vpop.f32.mrb[0].mxu0
        %v4651 = vadd.f32 0.0, %v4650
        %v4652 = vpop.f32.mrb[0].mxu0
        %v4653 = vadd.f32 0.0, %v4652
        %v4654 = vpop.f32.mrb[0].mxu0
        %v4655 = vadd.f32 0.0, %v4654
        %4656 = vmatprep.mubr.bf16.mxu0 0
        %4657 = vmatmul.mubr.bf16.gmra.mrb[0].mxu0 %v4557
        %v4658 = vpop.f32.mrb[0].mxu0
        %v4659 = vadd.f32 0.0, %v4658
        %v4660 = vpop.f32.mrb[0].mxu0
        %v4661 = vadd.f32 0.0, %v4660
        %v4662 = vpop.f32.mrb[0].mxu0
        %v4663 = vadd.f32 0.0, %v4662
        %v4664 = vpop.f32.mrb[0].mxu0
        %v4665 = vadd.f32 0.0, %v4664
        %4666 = vmatprep.mubr.bf16.mxu0 0
        %4667 = vmatmul.mubr.bf16.gmra.mrb[0].mxu0 %v4560
        %v4668 = vpop.f32.mrb[0].mxu0
        %v4669 = vadd.f32 0.0, %v4668
        %v4670 = vpop.f32.mrb[0].mxu0
        %v4671 = vadd.f32 0.0, %v4670
        %v4672 = vpop.f32.mrb[0].mxu0
        %v4673 = vadd.f32 0.0, %v4672
        %v4674 = vpop.f32.mrb[0].mxu0
        %v4675 = vadd.f32 0.0, %v4674
        %4676 = vmatprep.mubr.bf16.mxu0 0
        %4677 = vmatmul.mubr.bf16.gmra.mrb[0].mxu0 %v4563
        %v4678 = vpop.f32.mrb[0].mxu0
        %v4679 = vadd.f32 0.0, %v4678
        %v4680 = vpop.f32.mrb[0].mxu0
        %v4681 = vadd.f32 0.0, %v4680
        %v4682 = vpop.f32.mrb[0].mxu0
        %v4683 = vadd.f32 0.0, %v4682
        %v4684 = vpop.f32.mrb[0].mxu0
        %v4685 = vadd.f32 0.0, %v4684
        %4686 = vmatprep.mubr.bf16.mxu0 0
        %4687 = vmatmul.mubr.bf16.gmra.mrb[0].mxu0 %v4566
        %v4688 = vpop.f32.mrb[0].mxu0
        %v4689 = vadd.f32 0.0, %v4688
        %v4690 = vpop.f32.mrb[0].mxu0
        %v4691 = vadd.f32 0.0, %v4690
        %v4692 = vpop.f32.mrb[0].mxu0
        %v4693 = vadd.f32 0.0, %v4692
        %v4694 = vpop.f32.mrb[0].mxu0
        %v4695 = vadd.f32 0.0, %v4694
        %4696 = vmatprep.mubr.bf16.mxu0 0
        %4697 = vmatmul.mubr.bf16.gmra.mrb[0].mxu0 %v4569
        %v4698 = vpop.f32.mrb[0].mxu0
        %v4699 = vadd.f32 0.0, %v4698
        %v4700 = vpop.f32.mrb[0].mxu0
        %v4701 = vadd.f32 0.0, %v4700
        %v4702 = vpop.f32.mrb[0].mxu0
        %v4703 = vadd.f32 0.0, %v4702
        %v4704 = vpop.f32.mrb[0].mxu0
        %v4705 = vadd.f32 0.0, %v4704
        %4706 = vmatprep.mubr.bf16.mxu0 0
        %4707 = vmatmul.mubr.bf16.gmra.mrb[0].mxu0 %v4572
        %v4708 = vpop.f32.mrb[0].mxu0
        %v4709 = vadd.f32 0.0, %v4708
        %v4710 = vpop.f32.mrb[0].mxu0
        %v4711 = vadd.f32 0.0, %v4710
        %v4712 = vpop.f32.mrb[0].mxu0
        %v4713 = vadd.f32 0.0, %v4712
        %v4714 = vpop.f32.mrb[0].mxu0
        %v4715 = vadd.f32 0.0, %v4714
        %4716 = vmatprep.mubr.bf16.mxu0 0
        %4717 = vmatmul.mubr.bf16.gmra.mrb[0].mxu0 %v4575
        %v4718 = vpop.f32.mrb[0].mxu0
        %v4719 = vadd.f32 0.0, %v4718
        %v4720 = vpop.f32.mrb[0].mxu0
        %v4721 = vadd.f32 0.0, %v4720
        %v4722 = vpop.f32.mrb[0].mxu0
        %v4723 = vadd.f32 0.0, %v4722
        %v4724 = vpop.f32.mrb[0].mxu0
        %v4725 = vadd.f32 0.0, %v4724
        %4726 = vmatprep.mubr.bf16.mxu0 0
        %4727 = vmatmul.mubr.bf16.gmra.mrb[0].mxu0 %v4578
        %v4728 = vpop.f32.mrb[0].mxu0
        %v4729 = vadd.f32 0.0, %v4728
        %v4730 = vpop.f32.mrb[0].mxu0
        %v4731 = vadd.f32 0.0, %v4730
        %v4732 = vpop.f32.mrb[0].mxu0
        %v4733 = vadd.f32 0.0, %v4732
        %v4734 = vpop.f32.mrb[0].mxu0
        %v4735 = vadd.f32 0.0, %v4734
        %4736 = vmatprep.mubr.bf16.mxu0 0
        %4737 = vmatmul.mubr.bf16.gmra.mrb[0].mxu0 %v4581
        %v4738 = vpop.f32.mrb[0].mxu0
        %v4739 = vadd.f32 0.0, %v4738
        %v4740 = vpop.f32.mrb[0].mxu0
        %v4741 = vadd.f32 0.0, %v4740
        %v4742 = vpop.f32.mrb[0].mxu0
        %v4743 = vadd.f32 0.0, %v4742
        %v4744 = vpop.f32.mrb[0].mxu0
        %v4745 = vadd.f32 0.0, %v4744
        %4746 = vmatprep.mubr.bf16.mxu0 0
        %4747 = vmatmul.mubr.bf16.gmra.mrb[0].mxu0 %v4584
        %v4748 = vpop.f32.mrb[0].mxu0
        %v4749 = vadd.f32 0.0, %v4748
        %v4750 = vpop.f32.mrb[0].mxu0
        %v4751 = vadd.f32 0.0, %v4750
        %v4752 = vpop.f32.mrb[0].mxu0
        %v4753 = vadd.f32 0.0, %v4752
        %v4754 = vpop.f32.mrb[0].mxu0
        %v4755 = vadd.f32 0.0, %v4754
        %4756 = vmatprep.mubr.bf16.mxu0 0
        %4757 = vmatmul.mubr.bf16.gmra.mrb[0].mxu0 %v4587
        %v4758 = vpop.f32.mrb[0].mxu0
        %v4759 = vadd.f32 0.0, %v4758
        %v4760 = vpop.f32.mrb[0].mxu0
        %v4761 = vadd.f32 0.0, %v4760
        %v4762 = vpop.f32.mrb[0].mxu0
        %v4763 = vadd.f32 0.0, %v4762
        %v4764 = vpop.f32.mrb[0].mxu0
        %v4765 = vadd.f32 0.0, %v4764
        %4766 = vmatprep.mubr.bf16.mxu0 0
        %4767 = vmatmul.mubr.bf16.gmra.mrb[0].mxu0 %v4590
        %v4768 = vpop.f32.mrb[0].mxu0
        %v4769 = vadd.f32 0.0, %v4768
        %v4770 = vpop.f32.mrb[0].mxu0
        %v4771 = vadd.f32 0.0, %v4770
        %v4772 = vpop.f32.mrb[0].mxu0
        %v4773 = vadd.f32 0.0, %v4772
        %v4774 = vpop.f32.mrb[0].mxu0
        %v4775 = vadd.f32 0.0, %v4774
        %4776 = vmatprep.mubr.bf16.mxu0 0
        %4777 = vmatmul.mubr.bf16.gmra.mrb[0].mxu0 %v4593
        %v4778 = vpop.f32.mrb[0].mxu0
        %v4779 = vadd.f32 0.0, %v4778
        %v4780 = vpop.f32.mrb[0].mxu0
        %v4781 = vadd.f32 0.0, %v4780
        %v4782 = vpop.f32.mrb[0].mxu0
        %v4783 = vadd.f32 0.0, %v4782
        %v4784 = vpop.f32.mrb[0].mxu0
        %v4785 = vadd.f32 0.0, %v4784
        %4786 = vmatprep.mubr.bf16.mxu0 0
        %4787 = vmatmul.mubr.bf16.gmra.mrb[0].mxu0 %v4596
        %v4788 = vpop.f32.mrb[0].mxu0
        %v4789 = vadd.f32 0.0, %v4788
        %v4790 = vpop.f32.mrb[0].mxu0
        %v4791 = vadd.f32 0.0, %v4790
        %v4792 = vpop.f32.mrb[0].mxu0
        %v4793 = vadd.f32 0.0, %v4792
        %v4794 = vpop.f32.mrb[0].mxu0
        %v4795 = vadd.f32 0.0, %v4794
        %4796 = vdwg.mxu0
        %v4797 = vmax.f32 %v3784, %v3786
        %4798 = vmax.xlane.f32.xlu0 %v4797
        %v4799 = vpop.xlane.xlu0 %4798
        %v4800 = vmax.f32 %v3788, %v3790
        %4801 = vmax.xlane.f32.xlu0 %v4800
        %v4802 = vpop.xlane.xlu0 %4801
        %v4803 = vmax.f32 %v3794, %v3796
        %4804 = vmax.xlane.f32.xlu0 %v4803
        %v4805 = vpop.xlane.xlu0 %4804
        %v4806 = vmax.f32 %v3798, %v3800
        %4807 = vmax.xlane.f32.xlu0 %v4806
        %v4808 = vpop.xlane.xlu0 %4807
        %v4809 = vmax.f32 %v3804, %v3806
        %4810 = vmax.xlane.f32.xlu0 %v4809
        %v4811 = vpop.xlane.xlu0 %4810
        %v4812 = vmax.f32 %v3808, %v3810
        %4813 = vmax.xlane.f32.xlu0 %v4812
        %v4814 = vpop.xlane.xlu0 %4813
        %v4815 = vmax.f32 %v3814, %v3816
        %4816 = vmax.xlane.f32.xlu0 %v4815
        %v4817 = vpop.xlane.xlu0 %4816
        %v4818 = vmax.f32 %v3818, %v3820
        %4819 = vmax.xlane.f32.xlu0 %v4818
        %v4820 = vpop.xlane.xlu0 %4819
        %v4821 = vmax.f32 %v3824, %v3826
        %4822 = vmax.xlane.f32.xlu0 %v4821
        %v4823 = vpop.xlane.xlu0 %4822
        %v4824 = vmax.f32 %v3828, %v3830
        %4825 = vmax.xlane.f32.xlu0 %v4824
        %v4826 = vpop.xlane.xlu0 %4825
        %v4827 = vmax.f32 %v3834, %v3836
        %4828 = vmax.xlane.f32.xlu0 %v4827
        %v4829 = vpop.xlane.xlu0 %4828
        %v4830 = vmax.f32 %v3838, %v3840
        %4831 = vmax.xlane.f32.xlu0 %v4830
        %v4832 = vpop.xlane.xlu0 %4831
        %v4833 = vmax.f32 %v3844, %v3846
        %4834 = vmax.xlane.f32.xlu0 %v4833
        %v4835 = vpop.xlane.xlu0 %4834
        %v4836 = vmax.f32 %v3848, %v3850
        %4837 = vmax.xlane.f32.xlu0 %v4836
        %v4838 = vpop.xlane.xlu0 %4837
        %v4839 = vmax.f32 %v3854, %v3856
        %4840 = vmax.xlane.f32.xlu0 %v4839
        %v4841 = vpop.xlane.xlu0 %4840
        %v4842 = vmax.f32 %v3858, %v3860
        %4843 = vmax.xlane.f32.xlu0 %v4842
        %v4844 = vpop.xlane.xlu0 %4843
        %v4845 = vmax.f32 %v3864, %v3866
        %4846 = vmax.xlane.f32.xlu0 %v4845
        %v4847 = vpop.xlane.xlu0 %4846
        %v4848 = vmax.f32 %v3868, %v3870
        %4849 = vmax.xlane.f32.xlu0 %v4848
        %v4850 = vpop.xlane.xlu0 %4849
        %v4851 = vmax.f32 %v3874, %v3876
        %4852 = vmax.xlane.f32.xlu0 %v4851
        %v4853 = vpop.xlane.xlu0 %4852
        %v4854 = vmax.f32 %v3878, %v3880
        %4855 = vmax.xlane.f32.xlu0 %v4854
        %v4856 = vpop.xlane.xlu0 %4855
        %v4857 = vmax.f32 %v3884, %v3886
        %4858 = vmax.xlane.f32.xlu0 %v4857
        %v4859 = vpop.xlane.xlu0 %4858
        %v4860 = vmax.f32 %v3888, %v3890
        %4861 = vmax.xlane.f32.xlu0 %v4860
        %v4862 = vpop.xlane.xlu0 %4861
        %v4863 = vmax.f32 %v3894, %v3896
        %4864 = vmax.xlane.f32.xlu0 %v4863
        %v4865 = vpop.xlane.xlu0 %4864
        %v4866 = vmax.f32 %v3898, %v3900
        %4867 = vmax.xlane.f32.xlu0 %v4866
        %v4868 = vpop.xlane.xlu0 %4867
        %v4869 = vmax.f32 %v3904, %v3906
        %4870 = vmax.xlane.f32.xlu0 %v4869
        %v4871 = vpop.xlane.xlu0 %4870
        %v4872 = vmax.f32 %v3908, %v3910
        %4873 = vmax.xlane.f32.xlu0 %v4872
        %v4874 = vpop.xlane.xlu0 %4873
        %v4875 = vmax.f32 %v3914, %v3916
        %4876 = vmax.xlane.f32.xlu0 %v4875
        %v4877 = vpop.xlane.xlu0 %4876
        %v4878 = vmax.f32 %v3918, %v3920
        %4879 = vmax.xlane.f32.xlu0 %v4878
        %v4880 = vpop.xlane.xlu0 %4879
        %v4881 = vmax.f32 %v3924, %v3926
        %4882 = vmax.xlane.f32.xlu0 %v4881
        %v4883 = vpop.xlane.xlu0 %4882
        %v4884 = vmax.f32 %v3928, %v3930
        %4885 = vmax.xlane.f32.xlu0 %v4884
        %v4886 = vpop.xlane.xlu0 %4885
        %v4887 = vmax.f32 %v3934, %v3936
        %4888 = vmax.xlane.f32.xlu0 %v4887
        %v4889 = vpop.xlane.xlu0 %4888
        %v4890 = vmax.f32 %v3938, %v3940
        %4891 = vmax.xlane.f32.xlu0 %v4890
        %v4892 = vpop.xlane.xlu0 %4891
        %v4893 = vmax.f32 %v4069, %v4071
        %4894 = vmax.xlane.f32.xlu0 %v4893
        %v4895 = vpop.xlane.xlu0 %4894
        %v4896 = vmax.f32 %v4073, %v4075
        %4897 = vmax.xlane.f32.xlu0 %v4896
        %v4898 = vpop.xlane.xlu0 %4897
        %v4899 = vmax.f32 %v4079, %v4081
        %4900 = vmax.xlane.f32.xlu0 %v4899
        %v4901 = vpop.xlane.xlu0 %4900
        %v4902 = vmax.f32 %v4083, %v4085
        %4903 = vmax.xlane.f32.xlu0 %v4902
        %v4904 = vpop.xlane.xlu0 %4903
        %v4905 = vmax.f32 %v4089, %v4091
        %4906 = vmax.xlane.f32.xlu0 %v4905
        %v4907 = vpop.xlane.xlu0 %4906
        %v4908 = vmax.f32 %v4093, %v4095
        %4909 = vmax.xlane.f32.xlu0 %v4908
        %v4910 = vpop.xlane.xlu0 %4909
        %v4911 = vmax.f32 %v4099, %v4101
        %4912 = vmax.xlane.f32.xlu0 %v4911
        %v4913 = vpop.xlane.xlu0 %4912
        %v4914 = vmax.f32 %v4103, %v4105
        %4915 = vmax.xlane.f32.xlu0 %v4914
        %v4916 = vpop.xlane.xlu0 %4915
        %v4917 = vmax.f32 %v4109, %v4111
        %4918 = vmax.xlane.f32.xlu0 %v4917
        %v4919 = vpop.xlane.xlu0 %4918
        %v4920 = vmax.f32 %v4113, %v4115
        %4921 = vmax.xlane.f32.xlu0 %v4920
        %v4922 = vpop.xlane.xlu0 %4921
        %v4923 = vmax.f32 %v4119, %v4121
        %4924 = vmax.xlane.f32.xlu0 %v4923
        %v4925 = vpop.xlane.xlu0 %4924
        %v4926 = vmax.f32 %v4123, %v4125
        %4927 = vmax.xlane.f32.xlu0 %v4926
        %v4928 = vpop.xlane.xlu0 %4927
        %v4929 = vmax.f32 %v4129, %v4131
        %4930 = vmax.xlane.f32.xlu0 %v4929
        %v4931 = vpop.xlane.xlu0 %4930
        %v4932 = vmax.f32 %v4133, %v4135
        %4933 = vmax.xlane.f32.xlu0 %v4932
        %v4934 = vpop.xlane.xlu0 %4933
        %v4935 = vmax.f32 %v4139, %v4141
        %4936 = vmax.xlane.f32.xlu0 %v4935
        %v4937 = vpop.xlane.xlu0 %4936
        %v4938 = vmax.f32 %v4143, %v4145
        %4939 = vmax.xlane.f32.xlu0 %v4938
        %v4940 = vpop.xlane.xlu0 %4939
        %v4941 = vmax.f32 %v4149, %v4151
        %4942 = vmax.xlane.f32.xlu0 %v4941
        %v4943 = vpop.xlane.xlu0 %4942
        %v4944 = vmax.f32 %v4153, %v4155
        %4945 = vmax.xlane.f32.xlu0 %v4944
        %v4946 = vpop.xlane.xlu0 %4945
        %v4947 = vmax.f32 %v4159, %v4161
        %4948 = vmax.xlane.f32.xlu0 %v4947
        %v4949 = vpop.xlane.xlu0 %4948
        %v4950 = vmax.f32 %v4163, %v4165
        %4951 = vmax.xlane.f32.xlu0 %v4950
        %v4952 = vpop.xlane.xlu0 %4951
        %v4953 = vmax.f32 %v4169, %v4171
        %4954 = vmax.xlane.f32.xlu0 %v4953
        %v4955 = vpop.xlane.xlu0 %4954
        %v4956 = vmax.f32 %v4173, %v4175
        %4957 = vmax.xlane.f32.xlu0 %v4956
        %v4958 = vpop.xlane.xlu0 %4957
        %v4959 = vmax.f32 %v4179, %v4181
        %4960 = vmax.xlane.f32.xlu0 %v4959
        %v4961 = vpop.xlane.xlu0 %4960
        %v4962 = vmax.f32 %v4183, %v4185
        %4963 = vmax.xlane.f32.xlu0 %v4962
        %v4964 = vpop.xlane.xlu0 %4963
        %v4965 = vmax.f32 %v4189, %v4191
        %4966 = vmax.xlane.f32.xlu0 %v4965
        %v4967 = vpop.xlane.xlu0 %4966
        %v4968 = vmax.f32 %v4193, %v4195
        %4969 = vmax.xlane.f32.xlu0 %v4968
        %v4970 = vpop.xlane.xlu0 %4969
        %v4971 = vmax.f32 %v4199, %v4201
        %4972 = vmax.xlane.f32.xlu0 %v4971
        %v4973 = vpop.xlane.xlu0 %4972
        %v4974 = vmax.f32 %v4203, %v4205
        %4975 = vmax.xlane.f32.xlu0 %v4974
        %v4976 = vpop.xlane.xlu0 %4975
        %v4977 = vmax.f32 %v4209, %v4211
        %4978 = vmax.xlane.f32.xlu0 %v4977
        %v4979 = vpop.xlane.xlu0 %4978
        %v4980 = vmax.f32 %v4213, %v4215
        %4981 = vmax.xlane.f32.xlu0 %v4980
        %v4982 = vpop.xlane.xlu0 %4981
        %v4983 = vmax.f32 %v4219, %v4221
        %4984 = vmax.xlane.f32.xlu0 %v4983
        %v4985 = vpop.xlane.xlu0 %4984
        %v4986 = vmax.f32 %v4223, %v4225
        %4987 = vmax.xlane.f32.xlu0 %v4986
        %v4988 = vpop.xlane.xlu0 %4987
        %v4989 = vmax.f32 %v4354, %v4356
        %4990 = vmax.xlane.f32.xlu0 %v4989
        %v4991 = vpop.xlane.xlu0 %4990
        %v4992 = vmax.f32 %v4358, %v4360
        %4993 = vmax.xlane.f32.xlu0 %v4992
        %v4994 = vpop.xlane.xlu0 %4993
        %v4995 = vmax.f32 %v4364, %v4366
        %4996 = vmax.xlane.f32.xlu0 %v4995
        %v4997 = vpop.xlane.xlu0 %4996
        %v4998 = vmax.f32 %v4368, %v4370
        %4999 = vmax.xlane.f32.xlu0 %v4998
        %v5000 = vpop.xlane.xlu0 %4999
        %v5001 = vmax.f32 %v4374, %v4376
        %5002 = vmax.xlane.f32.xlu0 %v5001
        %v5003 = vpop.xlane.xlu0 %5002
        %v5004 = vmax.f32 %v4378, %v4380
        %5005 = vmax.xlane.f32.xlu0 %v5004
        %v5006 = vpop.xlane.xlu0 %5005
        %v5007 = vmax.f32 %v4384, %v4386
        %5008 = vmax.xlane.f32.xlu0 %v5007
        %v5009 = vpop.xlane.xlu0 %5008
        %v5010 = vmax.f32 %v4388, %v4390
        %5011 = vmax.xlane.f32.xlu0 %v5010
        %v5012 = vpop.xlane.xlu0 %5011
        %v5013 = vmax.f32 %v4394, %v4396
        %5014 = vmax.xlane.f32.xlu0 %v5013
        %v5015 = vpop.xlane.xlu0 %5014
        %v5016 = vmax.f32 %v4398, %v4400
        %5017 = vmax.xlane.f32.xlu0 %v5016
        %v5018 = vpop.xlane.xlu0 %5017
        %v5019 = vmax.f32 %v4404, %v4406
        %5020 = vmax.xlane.f32.xlu0 %v5019
        %v5021 = vpop.xlane.xlu0 %5020
        %v5022 = vmax.f32 %v4408, %v4410
        %5023 = vmax.xlane.f32.xlu0 %v5022
        %v5024 = vpop.xlane.xlu0 %5023
        %v5025 = vmax.f32 %v4414, %v4416
        %5026 = vmax.xlane.f32.xlu0 %v5025
        %v5027 = vpop.xlane.xlu0 %5026
        %v5028 = vmax.f32 %v4418, %v4420
        %5029 = vmax.xlane.f32.xlu0 %v5028
        %v5030 = vpop.xlane.xlu0 %5029
        %v5031 = vmax.f32 %v4424, %v4426
        %5032 = vmax.xlane.f32.xlu0 %v5031
        %v5033 = vpop.xlane.xlu0 %5032
        %v5034 = vmax.f32 %v4428, %v4430
        %5035 = vmax.xlane.f32.xlu0 %v5034
        %v5036 = vpop.xlane.xlu0 %5035
        %v5037 = vmax.f32 %v4434, %v4436
        %5038 = vmax.xlane.f32.xlu0 %v5037
        %v5039 = vpop.xlane.xlu0 %5038
        %v5040 = vmax.f32 %v4438, %v4440
        %5041 = vmax.xlane.f32.xlu0 %v5040
        %v5042 = vpop.xlane.xlu0 %5041
        %v5043 = vmax.f32 %v4444, %v4446
        %5044 = vmax.xlane.f32.xlu0 %v5043
        %v5045 = vpop.xlane.xlu0 %5044
        %v5046 = vmax.f32 %v4448, %v4450
        %5047 = vmax.xlane.f32.xlu0 %v5046
        %v5048 = vpop.xlane.xlu0 %5047
        %v5049 = vmax.f32 %v4454, %v4456
        %5050 = vmax.xlane.f32.xlu0 %v5049
        %v5051 = vpop.xlane.xlu0 %5050
        %v5052 = vmax.f32 %v4458, %v4460
        %5053 = vmax.xlane.f32.xlu0 %v5052
        %v5054 = vpop.xlane.xlu0 %5053
        %v5055 = vmax.f32 %v4464, %v4466
        %5056 = vmax.xlane.f32.xlu0 %v5055
        %v5057 = vpop.xlane.xlu0 %5056
        %v5058 = vmax.f32 %v4468, %v4470
        %5059 = vmax.xlane.f32.xlu0 %v5058
        %v5060 = vpop.xlane.xlu0 %5059
        %v5061 = vmax.f32 %v4474, %v4476
        %5062 = vmax.xlane.f32.xlu0 %v5061
        %v5063 = vpop.xlane.xlu0 %5062
        %v5064 = vmax.f32 %v4478, %v4480
        %5065 = vmax.xlane.f32.xlu0 %v5064
        %v5066 = vpop.xlane.xlu0 %5065
        %v5067 = vmax.f32 %v4484, %v4486
        %5068 = vmax.xlane.f32.xlu0 %v5067
        %v5069 = vpop.xlane.xlu0 %5068
        %v5070 = vmax.f32 %v4488, %v4490
        %5071 = vmax.xlane.f32.xlu0 %v5070
        %v5072 = vpop.xlane.xlu0 %5071
        %v5073 = vmax.f32 %v4494, %v4496
        %5074 = vmax.xlane.f32.xlu0 %v5073
        %v5075 = vpop.xlane.xlu0 %5074
        %v5076 = vmax.f32 %v4498, %v4500
        %5077 = vmax.xlane.f32.xlu0 %v5076
        %v5078 = vpop.xlane.xlu0 %5077
        %v5079 = vmax.f32 %v4504, %v4506
        %5080 = vmax.xlane.f32.xlu0 %v5079
        %v5081 = vpop.xlane.xlu0 %5080
        %v5082 = vmax.f32 %v4508, %v4510
        %5083 = vmax.xlane.f32.xlu0 %v5082
        %v5084 = vpop.xlane.xlu0 %5083
        %v5085 = vmax.f32 %v4639, %v4641
        %5086 = vmax.xlane.f32.xlu0 %v5085
        %v5087 = vpop.xlane.xlu0 %5086
        %v5088 = vmax.f32 %v4643, %v4645
        %5089 = vmax.xlane.f32.xlu0 %v5088
        %v5090 = vpop.xlane.xlu0 %5089
        %v5091 = vmax.f32 %v4649, %v4651
        %5092 = vmax.xlane.f32.xlu0 %v5091
        %v5093 = vpop.xlane.xlu0 %5092
        %v5094 = vmax.f32 %v4653, %v4655
        %5095 = vmax.xlane.f32.xlu0 %v5094
        %v5096 = vpop.xlane.xlu0 %5095
        %v5097 = vmax.f32 %v4659, %v4661
        %5098 = vmax.xlane.f32.xlu0 %v5097
        %v5099 = vpop.xlane.xlu0 %5098
        %v5100 = vmax.f32 %v4663, %v4665
        %5101 = vmax.xlane.f32.xlu0 %v5100
        %v5102 = vpop.xlane.xlu0 %5101
        %v5103 = vmax.f32 %v4669, %v4671
        %5104 = vmax.xlane.f32.xlu0 %v5103
        %v5105 = vpop.xlane.xlu0 %5104
        %v5106 = vmax.f32 %v4673, %v4675
        %5107 = vmax.xlane.f32.xlu0 %v5106
        %v5108 = vpop.xlane.xlu0 %5107
        %v5109 = vmax.f32 %v4679, %v4681
        %5110 = vmax.xlane.f32.xlu0 %v5109
        %v5111 = vpop.xlane.xlu0 %5110
        %v5112 = vmax.f32 %v4683, %v4685
        %5113 = vmax.xlane.f32.xlu0 %v5112
        %v5114 = vpop.xlane.xlu0 %5113
        %v5115 = vmax.f32 %v4689, %v4691
        %5116 = vmax.xlane.f32.xlu0 %v5115
        %v5117 = vpop.xlane.xlu0 %5116
        %v5118 = vmax.f32 %v4693, %v4695
        %5119 = vmax.xlane.f32.xlu0 %v5118
        %v5120 = vpop.xlane.xlu0 %5119
        %v5121 = vmax.f32 %v4699, %v4701
        %5122 = vmax.xlane.f32.xlu0 %v5121
        %v5123 = vpop.xlane.xlu0 %5122
        %v5124 = vmax.f32 %v4703, %v4705
        %5125 = vmax.xlane.f32.xlu0 %v5124
        %v5126 = vpop.xlane.xlu0 %5125
        %v5127 = vmax.f32 %v4709, %v4711
        %5128 = vmax.xlane.f32.xlu0 %v5127
        %v5129 = vpop.xlane.xlu0 %5128
        %v5130 = vmax.f32 %v4713, %v4715
        %5131 = vmax.xlane.f32.xlu0 %v5130
        %v5132 = vpop.xlane.xlu0 %5131
        %v5133 = vmax.f32 %v4719, %v4721
        %5134 = vmax.xlane.f32.xlu0 %v5133
        %v5135 = vpop.xlane.xlu0 %5134
        %v5136 = vmax.f32 %v4723, %v4725
        %5137 = vmax.xlane.f32.xlu0 %v5136
        %v5138 = vpop.xlane.xlu0 %5137
        %v5139 = vmax.f32 %v4729, %v4731
        %5140 = vmax.xlane.f32.xlu0 %v5139
        %v5141 = vpop.xlane.xlu0 %5140
        %v5142 = vmax.f32 %v4733, %v4735
        %5143 = vmax.xlane.f32.xlu0 %v5142
        %v5144 = vpop.xlane.xlu0 %5143
        %v5145 = vmax.f32 %v4739, %v4741
        %5146 = vmax.xlane.f32.xlu0 %v5145
        %v5147 = vpop.xlane.xlu0 %5146
        %v5148 = vmax.f32 %v4743, %v4745
        %5149 = vmax.xlane.f32.xlu0 %v5148
        %v5150 = vpop.xlane.xlu0 %5149
        %v5151 = vmax.f32 %v4749, %v4751
        %5152 = vmax.xlane.f32.xlu0 %v5151
        %v5153 = vpop.xlane.xlu0 %5152
        %v5154 = vmax.f32 %v4753, %v4755
        %5155 = vmax.xlane.f32.xlu0 %v5154
        %v5156 = vpop.xlane.xlu0 %5155
        %v5157 = vmax.f32 %v4759, %v4761
        %5158 = vmax.xlane.f32.xlu0 %v5157
        %v5159 = vpop.xlane.xlu0 %5158
        %v5160 = vmax.f32 %v4763, %v4765
        %5161 = vmax.xlane.f32.xlu0 %v5160
        %v5162 = vpop.xlane.xlu0 %5161
        %v5163 = vmax.f32 %v4769, %v4771
        %5164 = vmax.xlane.f32.xlu0 %v5163
        %v5165 = vpop.xlane.xlu0 %5164
        %v5166 = vmax.f32 %v4773, %v4775
        %5167 = vmax.xlane.f32.xlu0 %v5166
        %v5168 = vpop.xlane.xlu0 %5167
        %v5169 = vmax.f32 %v4779, %v4781
        %5170 = vmax.xlane.f32.xlu0 %v5169
        %v5171 = vpop.xlane.xlu0 %5170
        %v5172 = vmax.f32 %v4783, %v4785
        %5173 = vmax.xlane.f32.xlu0 %v5172
        %v5174 = vpop.xlane.xlu0 %5173
        %v5175 = vmax.f32 %v4789, %v4791
        %5176 = vmax.xlane.f32.xlu0 %v5175
        %v5177 = vpop.xlane.xlu0 %5176
        %v5178 = vmax.f32 %v4793, %v4795
        %5179 = vmax.xlane.f32.xlu0 %v5178
        %v5180 = vpop.xlane.xlu0 %5179
        %v5181 = vsub.f32 %v3784, %v4799
        %v5182 = vsub.f32 %v3786, %v4799
        %v5183 = vsub.f32 %v3788, %v4802
        %v5184 = vsub.f32 %v3790, %v4802
        %v5185 = vsub.f32 %v3794, %v4805
        %v5186 = vsub.f32 %v3796, %v4805
        %v5187 = vsub.f32 %v3798, %v4808
        %v5188 = vsub.f32 %v3800, %v4808
        %v5189 = vsub.f32 %v3804, %v4811
        %v5190 = vsub.f32 %v3806, %v4811
        %v5191 = vsub.f32 %v3808, %v4814
        %v5192 = vsub.f32 %v3810, %v4814
        %v5193 = vsub.f32 %v3814, %v4817
        %v5194 = vsub.f32 %v3816, %v4817
        %v5195 = vsub.f32 %v3818, %v4820
        %v5196 = vsub.f32 %v3820, %v4820
        %v5197 = vsub.f32 %v3824, %v4823
        %v5198 = vsub.f32 %v3826, %v4823
        %v5199 = vsub.f32 %v3828, %v4826
        %v5200 = vsub.f32 %v3830, %v4826
        %v5201 = vsub.f32 %v3834, %v4829
        %v5202 = vsub.f32 %v3836, %v4829
        %v5203 = vsub.f32 %v3838, %v4832
        %v5204 = vsub.f32 %v3840, %v4832
        %v5205 = vsub.f32 %v3844, %v4835
        %v5206 = vsub.f32 %v3846, %v4835
        %v5207 = vsub.f32 %v3848, %v4838
        %v5208 = vsub.f32 %v3850, %v4838
        %v5209 = vsub.f32 %v3854, %v4841
        %v5210 = vsub.f32 %v3856, %v4841
        %v5211 = vsub.f32 %v3858, %v4844
        %v5212 = vsub.f32 %v3860, %v4844
        %v5213 = vsub.f32 %v3864, %v4847
        %v5214 = vsub.f32 %v3866, %v4847
        %v5215 = vsub.f32 %v3868, %v4850
        %v5216 = vsub.f32 %v3870, %v4850
        %v5217 = vsub.f32 %v3874, %v4853
        %v5218 = vsub.f32 %v3876, %v4853
        %v5219 = vsub.f32 %v3878, %v4856
        %v5220 = vsub.f32 %v3880, %v4856
        %v5221 = vsub.f32 %v3884, %v4859
        %v5222 = vsub.f32 %v3886, %v4859
        %v5223 = vsub.f32 %v3888, %v4862
        %v5224 = vsub.f32 %v3890, %v4862
        %v5225 = vsub.f32 %v3894, %v4865
        %v5226 = vsub.f32 %v3896, %v4865
        %v5227 = vsub.f32 %v3898, %v4868
        %v5228 = vsub.f32 %v3900, %v4868
        %v5229 = vsub.f32 %v3904, %v4871
        %v5230 = vsub.f32 %v3906, %v4871
        %v5231 = vsub.f32 %v3908, %v4874
        %v5232 = vsub.f32 %v3910, %v4874
        %v5233 = vsub.f32 %v3914, %v4877
        %v5234 = vsub.f32 %v3916, %v4877
        %v5235 = vsub.f32 %v3918, %v4880
        %v5236 = vsub.f32 %v3920, %v4880
        %v5237 = vsub.f32 %v3924, %v4883
        %v5238 = vsub.f32 %v3926, %v4883
        %v5239 = vsub.f32 %v3928, %v4886
        %v5240 = vsub.f32 %v3930, %v4886
        %v5241 = vsub.f32 %v3934, %v4889
        %v5242 = vsub.f32 %v3936, %v4889
        %v5243 = vsub.f32 %v3938, %v4892
        %v5244 = vsub.f32 %v3940, %v4892
        %v5245 = vsub.f32 %v4069, %v4895
        %v5246 = vsub.f32 %v4071, %v4895
        %v5247 = vsub.f32 %v4073, %v4898
        %v5248 = vsub.f32 %v4075, %v4898
        %v5249 = vsub.f32 %v4079, %v4901
        %v5250 = vsub.f32 %v4081, %v4901
        %v5251 = vsub.f32 %v4083, %v4904
        %v5252 = vsub.f32 %v4085, %v4904
        %v5253 = vsub.f32 %v4089, %v4907
        %v5254 = vsub.f32 %v4091, %v4907
        %v5255 = vsub.f32 %v4093, %v4910
        %v5256 = vsub.f32 %v4095, %v4910
        %v5257 = vsub.f32 %v4099, %v4913
        %v5258 = vsub.f32 %v4101, %v4913
        %v5259 = vsub.f32 %v4103, %v4916
        %v5260 = vsub.f32 %v4105, %v4916
        %v5261 = vsub.f32 %v4109, %v4919
        %v5262 = vsub.f32 %v4111, %v4919
        %v5263 = vsub.f32 %v4113, %v4922
        %v5264 = vsub.f32 %v4115, %v4922
        %v5265 = vsub.f32 %v4119, %v4925
        %v5266 = vsub.f32 %v4121, %v4925
        %v5267 = vsub.f32 %v4123, %v4928
        %v5268 = vsub.f32 %v4125, %v4928
        %v5269 = vsub.f32 %v4129, %v4931
        %v5270 = vsub.f32 %v4131, %v4931
        %v5271 = vsub.f32 %v4133, %v4934
        %v5272 = vsub.f32 %v4135, %v4934
        %v5273 = vsub.f32 %v4139, %v4937
        %v5274 = vsub.f32 %v4141, %v4937
        %v5275 = vsub.f32 %v4143, %v4940
        %v5276 = vsub.f32 %v4145, %v4940
        %v5277 = vsub.f32 %v4149, %v4943
        %v5278 = vsub.f32 %v4151, %v4943
        %v5279 = vsub.f32 %v4153, %v4946
        %v5280 = vsub.f32 %v4155, %v4946
        %v5281 = vsub.f32 %v4159, %v4949
        %v5282 = vsub.f32 %v4161, %v4949
        %v5283 = vsub.f32 %v4163, %v4952
        %v5284 = vsub.f32 %v4165, %v4952
        %v5285 = vsub.f32 %v4169, %v4955
        %v5286 = vsub.f32 %v4171, %v4955
        %v5287 = vsub.f32 %v4173, %v4958
        %v5288 = vsub.f32 %v4175, %v4958
        %v5289 = vsub.f32 %v4179, %v4961
        %v5290 = vsub.f32 %v4181, %v4961
        %v5291 = vsub.f32 %v4183, %v4964
        %v5292 = vsub.f32 %v4185, %v4964
        %v5293 = vsub.f32 %v4189, %v4967
        %v5294 = vsub.f32 %v4191, %v4967
        %v5295 = vsub.f32 %v4193, %v4970
        %v5296 = vsub.f32 %v4195, %v4970
        %v5297 = vsub.f32 %v4199, %v4973
        %v5298 = vsub.f32 %v4201, %v4973
        %v5299 = vsub.f32 %v4203, %v4976
        %v5300 = vsub.f32 %v4205, %v4976
        %v5301 = vsub.f32 %v4209, %v4979
        %v5302 = vsub.f32 %v4211, %v4979
        %v5303 = vsub.f32 %v4213, %v4982
        %v5304 = vsub.f32 %v4215, %v4982
        %v5305 = vsub.f32 %v4219, %v4985
        %v5306 = vsub.f32 %v4221, %v4985
        %v5307 = vsub.f32 %v4223, %v4988
        %v5308 = vsub.f32 %v4225, %v4988
        %v5309 = vsub.f32 %v4354, %v4991
        %v5310 = vsub.f32 %v4356, %v4991
        %v5311 = vsub.f32 %v4358, %v4994
        %v5312 = vsub.f32 %v4360, %v4994
        %v5313 = vsub.f32 %v4364, %v4997
        %v5314 = vsub.f32 %v4366, %v4997
        %v5315 = vsub.f32 %v4368, %v5000
        %v5316 = vsub.f32 %v4370, %v5000
        %v5317 = vsub.f32 %v4374, %v5003
        %v5318 = vsub.f32 %v4376, %v5003
        %v5319 = vsub.f32 %v4378, %v5006
        %v5320 = vsub.f32 %v4380, %v5006
        %v5321 = vsub.f32 %v4384, %v5009
        %v5322 = vsub.f32 %v4386, %v5009
        %v5323 = vsub.f32 %v4388, %v5012
        %v5324 = vsub.f32 %v4390, %v5012
        %v5325 = vsub.f32 %v4394, %v5015
        %v5326 = vsub.f32 %v4396, %v5015
        %v5327 = vsub.f32 %v4398, %v5018
        %v5328 = vsub.f32 %v4400, %v5018
        %v5329 = vsub.f32 %v4404, %v5021
        %v5330 = vsub.f32 %v4406, %v5021
        %v5331 = vsub.f32 %v4408, %v5024
        %v5332 = vsub.f32 %v4410, %v5024
        %v5333 = vsub.f32 %v4414, %v5027
        %v5334 = vsub.f32 %v4416, %v5027
        %v5335 = vsub.f32 %v4418, %v5030
        %v5336 = vsub.f32 %v4420, %v5030
        %v5337 = vsub.f32 %v4424, %v5033
        %v5338 = vsub.f32 %v4426, %v5033
        %v5339 = vsub.f32 %v4428, %v5036
        %v5340 = vsub.f32 %v4430, %v5036
        %v5341 = vsub.f32 %v4434, %v5039
        %v5342 = vsub.f32 %v4436, %v5039
        %v5343 = vsub.f32 %v4438, %v5042
        %v5344 = vsub.f32 %v4440, %v5042
        %v5345 = vsub.f32 %v4444, %v5045
        %v5346 = vsub.f32 %v4446, %v5045
        %v5347 = vsub.f32 %v4448, %v5048
        %v5348 = vsub.f32 %v4450, %v5048
        %v5349 = vsub.f32 %v4454, %v5051
        %v5350 = vsub.f32 %v4456, %v5051
        %v5351 = vsub.f32 %v4458, %v5054
        %v5352 = vsub.f32 %v4460, %v5054
        %v5353 = vsub.f32 %v4464, %v5057
        %v5354 = vsub.f32 %v4466, %v5057
        %v5355 = vsub.f32 %v4468, %v5060
        %v5356 = vsub.f32 %v4470, %v5060
        %v5357 = vsub.f32 %v4474, %v5063
        %v5358 = vsub.f32 %v4476, %v5063
        %v5359 = vsub.f32 %v4478, %v5066
        %v5360 = vsub.f32 %v4480, %v5066
        %v5361 = vsub.f32 %v4484, %v5069
        %v5362 = vsub.f32 %v4486, %v5069
        %v5363 = vsub.f32 %v4488, %v5072
        %v5364 = vsub.f32 %v4490, %v5072
        %v5365 = vsub.f32 %v4494, %v5075
        %v5366 = vsub.f32 %v4496, %v5075
        %v5367 = vsub.f32 %v4498, %v5078
        %v5368 = vsub.f32 %v4500, %v5078
        %v5369 = vsub.f32 %v4504, %v5081
        %v5370 = vsub.f32 %v4506, %v5081
        %v5371 = vsub.f32 %v4508, %v5084
        %v5372 = vsub.f32 %v4510, %v5084
        %v5373 = vsub.f32 %v4639, %v5087
        %v5374 = vsub.f32 %v4641, %v5087
        %v5375 = vsub.f32 %v4643, %v5090
        %v5376 = vsub.f32 %v4645, %v5090
        %v5377 = vsub.f32 %v4649, %v5093
        %v5378 = vsub.f32 %v4651, %v5093
        %v5379 = vsub.f32 %v4653, %v5096
        %v5380 = vsub.f32 %v4655, %v5096
        %v5381 = vsub.f32 %v4659, %v5099
        %v5382 = vsub.f32 %v4661, %v5099
        %v5383 = vsub.f32 %v4663, %v5102
        %v5384 = vsub.f32 %v4665, %v5102
        %v5385 = vsub.f32 %v4669, %v5105
        %v5386 = vsub.f32 %v4671, %v5105
        %v5387 = vsub.f32 %v4673, %v5108
        %v5388 = vsub.f32 %v4675, %v5108
        %v5389 = vsub.f32 %v4679, %v5111
        %v5390 = vsub.f32 %v4681, %v5111
        %v5391 = vsub.f32 %v4683, %v5114
        %v5392 = vsub.f32 %v4685, %v5114
        %v5393 = vsub.f32 %v4689, %v5117
        %v5394 = vsub.f32 %v4691, %v5117
        %v5395 = vsub.f32 %v4693, %v5120
        %v5396 = vsub.f32 %v4695, %v5120
        %v5397 = vsub.f32 %v4699, %v5123
        %v5398 = vsub.f32 %v4701, %v5123
        %v5399 = vsub.f32 %v4703, %v5126
        %v5400 = vsub.f32 %v4705, %v5126
        %v5401 = vsub.f32 %v4709, %v5129
        %v5402 = vsub.f32 %v4711, %v5129
        %v5403 = vsub.f32 %v4713, %v5132
        %v5404 = vsub.f32 %v4715, %v5132
        %v5405 = vsub.f32 %v4719, %v5135
        %v5406 = vsub.f32 %v4721, %v5135
        %v5407 = vsub.f32 %v4723, %v5138
        %v5408 = vsub.f32 %v4725, %v5138
        %v5409 = vsub.f32 %v4729, %v5141
        %v5410 = vsub.f32 %v4731, %v5141
        %v5411 = vsub.f32 %v4733, %v5144
        %v5412 = vsub.f32 %v4735, %v5144
        %v5413 = vsub.f32 %v4739, %v5147
        %v5414 = vsub.f32 %v4741, %v5147
        %v5415 = vsub.f32 %v4743, %v5150
        %v5416 = vsub.f32 %v4745, %v5150
        %v5417 = vsub.f32 %v4749, %v5153
        %v5418 = vsub.f32 %v4751, %v5153
        %v5419 = vsub.f32 %v4753, %v5156
        %v5420 = vsub.f32 %v4755, %v5156
        %v5421 = vsub.f32 %v4759, %v5159
        %v5422 = vsub.f32 %v4761, %v5159
        %v5423 = vsub.f32 %v4763, %v5162
        %v5424 = vsub.f32 %v4765, %v5162
        %v5425 = vsub.f32 %v4769, %v5165
        %v5426 = vsub.f32 %v4771, %v5165
        %v5427 = vsub.f32 %v4773, %v5168
        %v5428 = vsub.f32 %v4775, %v5168
        %v5429 = vsub.f32 %v4779, %v5171
        %v5430 = vsub.f32 %v4781, %v5171
        %v5431 = vsub.f32 %v4783, %v5174
        %v5432 = vsub.f32 %v4785, %v5174
        %v5433 = vsub.f32 %v4789, %v5177
        %v5434 = vsub.f32 %v4791, %v5177
        %v5435 = vsub.f32 %v4793, %v5180
        %v5436 = vsub.f32 %v4795, %v5180
        %v5437 = vmul.f32 %v5181, 1.442695
        %v5438 = vpow.pop %v5437
        %v5439 = vmul.f32 %v5182, 1.442695
        %v5440 = vpow.pop %v5439
        %v5441 = vmul.f32 %v5183, 1.442695
        %v5442 = vpow.pop %v5441
        %v5443 = vmul.f32 %v5184, 1.442695
        %v5444 = vpow.pop %v5443
        %v5445 = vmul.f32 %v5185, 1.442695
        %v5446 = vpow.pop %v5445
        %v5447 = vmul.f32 %v5186, 1.442695
        %v5448 = vpow.pop %v5447
        %v5449 = vmul.f32 %v5187, 1.442695
        %v5450 = vpow.pop %v5449
        %v5451 = vmul.f32 %v5188, 1.442695
        %v5452 = vpow.pop %v5451
        %v5453 = vmul.f32 %v5189, 1.442695
        %v5454 = vpow.pop %v5453
        %v5455 = vmul.f32 %v5190, 1.442695
        %v5456 = vpow.pop %v5455
        %v5457 = vmul.f32 %v5191, 1.442695
        %v5458 = vpow.pop %v5457
        %v5459 = vmul.f32 %v5192, 1.442695
        %v5460 = vpow.pop %v5459
        %v5461 = vmul.f32 %v5193, 1.442695
        %v5462 = vpow.pop %v5461
        %v5463 = vmul.f32 %v5194, 1.442695
        %v5464 = vpow.pop %v5463
        %v5465 = vmul.f32 %v5195, 1.442695
        %v5466 = vpow.pop %v5465
        %v5467 = vmul.f32 %v5196, 1.442695
        %v5468 = vpow.pop %v5467
        %v5469 = vmul.f32 %v5197, 1.442695
        %v5470 = vpow.pop %v5469
        %v5471 = vmul.f32 %v5198, 1.442695
        %v5472 = vpow.pop %v5471
        %v5473 = vmul.f32 %v5199, 1.442695
        %v5474 = vpow.pop %v5473
        %v5475 = vmul.f32 %v5200, 1.442695
        %v5476 = vpow.pop %v5475
        %v5477 = vmul.f32 %v5201, 1.442695
        %v5478 = vpow.pop %v5477
        %v5479 = vmul.f32 %v5202, 1.442695
        %v5480 = vpow.pop %v5479
        %v5481 = vmul.f32 %v5203, 1.442695
        %v5482 = vpow.pop %v5481
        %v5483 = vmul.f32 %v5204, 1.442695
        %v5484 = vpow.pop %v5483
        %v5485 = vmul.f32 %v5205, 1.442695
        %v5486 = vpow.pop %v5485
        %v5487 = vmul.f32 %v5206, 1.442695
        %v5488 = vpow.pop %v5487
        %v5489 = vmul.f32 %v5207, 1.442695
        %v5490 = vpow.pop %v5489
        %v5491 = vmul.f32 %v5208, 1.442695
        %v5492 = vpow.pop %v5491
        %v5493 = vmul.f32 %v5209, 1.442695
        %v5494 = vpow.pop %v5493
        %v5495 = vmul.f32 %v5210, 1.442695
        %v5496 = vpow.pop %v5495
        %v5497 = vmul.f32 %v5211, 1.442695
        %v5498 = vpow.pop %v5497
        %v5499 = vmul.f32 %v5212, 1.442695
        %v5500 = vpow.pop %v5499
        %v5501 = vmul.f32 %v5213, 1.442695
        %v5502 = vpow.pop %v5501
        %v5503 = vmul.f32 %v5214, 1.442695
        %v5504 = vpow.pop %v5503
        %v5505 = vmul.f32 %v5215, 1.442695
        %v5506 = vpow.pop %v5505
        %v5507 = vmul.f32 %v5216, 1.442695
        %v5508 = vpow.pop %v5507
        %v5509 = vmul.f32 %v5217, 1.442695
        %v5510 = vpow.pop %v5509
        %v5511 = vmul.f32 %v5218, 1.442695
        %v5512 = vpow.pop %v5511
        %v5513 = vmul.f32 %v5219, 1.442695
        %v5514 = vpow.pop %v5513
        %v5515 = vmul.f32 %v5220, 1.442695
        %v5516 = vpow.pop %v5515
        %v5517 = vmul.f32 %v5221, 1.442695
        %v5518 = vpow.pop %v5517
        %v5519 = vmul.f32 %v5222, 1.442695
        %v5520 = vpow.pop %v5519
        %v5521 = vmul.f32 %v5223, 1.442695
        %v5522 = vpow.pop %v5521
        %v5523 = vmul.f32 %v5224, 1.442695
        %v5524 = vpow.pop %v5523
        %v5525 = vmul.f32 %v5225, 1.442695
        %v5526 = vpow.pop %v5525
        %v5527 = vmul.f32 %v5226, 1.442695
        %v5528 = vpow.pop %v5527
        %v5529 = vmul.f32 %v5227, 1.442695
        %v5530 = vpow.pop %v5529
        %v5531 = vmul.f32 %v5228, 1.442695
        %v5532 = vpow.pop %v5531
        %v5533 = vmul.f32 %v5229, 1.442695
        %v5534 = vpow.pop %v5533
        %v5535 = vmul.f32 %v5230, 1.442695
        %v5536 = vpow.pop %v5535
        %v5537 = vmul.f32 %v5231, 1.442695
        %v5538 = vpow.pop %v5537
        %v5539 = vmul.f32 %v5232, 1.442695
        %v5540 = vpow.pop %v5539
        %v5541 = vmul.f32 %v5233, 1.442695
        %v5542 = vpow.pop %v5541
        %v5543 = vmul.f32 %v5234, 1.442695
        %v5544 = vpow.pop %v5543
        %v5545 = vmul.f32 %v5235, 1.442695
        %v5546 = vpow.pop %v5545
        %v5547 = vmul.f32 %v5236, 1.442695
        %v5548 = vpow.pop %v5547
        %v5549 = vmul.f32 %v5237, 1.442695
        %v5550 = vpow.pop %v5549
        %v5551 = vmul.f32 %v5238, 1.442695
        %v5552 = vpow.pop %v5551
        %v5553 = vmul.f32 %v5239, 1.442695
        %v5554 = vpow.pop %v5553
        %v5555 = vmul.f32 %v5240, 1.442695
        %v5556 = vpow.pop %v5555
        %v5557 = vmul.f32 %v5241, 1.442695
        %v5558 = vpow.pop %v5557
        %v5559 = vmul.f32 %v5242, 1.442695
        %v5560 = vpow.pop %v5559
        %v5561 = vmul.f32 %v5243, 1.442695
        %v5562 = vpow.pop %v5561
        %v5563 = vmul.f32 %v5244, 1.442695
        %v5564 = vpow.pop %v5563
        %v5565 = vmul.f32 %v5245, 1.442695
        %v5566 = vpow.pop %v5565
        %v5567 = vmul.f32 %v5246, 1.442695
        %v5568 = vpow.pop %v5567
        %v5569 = vmul.f32 %v5247, 1.442695
        %v5570 = vpow.pop %v5569
        %v5571 = vmul.f32 %v5248, 1.442695
        %v5572 = vpow.pop %v5571
        %v5573 = vmul.f32 %v5249, 1.442695
        %v5574 = vpow.pop %v5573
        %v5575 = vmul.f32 %v5250, 1.442695
        %v5576 = vpow.pop %v5575
        %v5577 = vmul.f32 %v5251, 1.442695
        %v5578 = vpow.pop %v5577
        %v5579 = vmul.f32 %v5252, 1.442695
        %v5580 = vpow.pop %v5579
        %v5581 = vmul.f32 %v5253, 1.442695
        %v5582 = vpow.pop %v5581
        %v5583 = vmul.f32 %v5254, 1.442695
        %v5584 = vpow.pop %v5583
        %v5585 = vmul.f32 %v5255, 1.442695
        %v5586 = vpow.pop %v5585
        %v5587 = vmul.f32 %v5256, 1.442695
        %v5588 = vpow.pop %v5587
        %v5589 = vmul.f32 %v5257, 1.442695
        %v5590 = vpow.pop %v5589
        %v5591 = vmul.f32 %v5258, 1.442695
        %v5592 = vpow.pop %v5591
        %v5593 = vmul.f32 %v5259, 1.442695
        %v5594 = vpow.pop %v5593
        %v5595 = vmul.f32 %v5260, 1.442695
        %v5596 = vpow.pop %v5595
        %v5597 = vmul.f32 %v5261, 1.442695
        %v5598 = vpow.pop %v5597
        %v5599 = vmul.f32 %v5262, 1.442695
        %v5600 = vpow.pop %v5599
        %v5601 = vmul.f32 %v5263, 1.442695
        %v5602 = vpow.pop %v5601
        %v5603 = vmul.f32 %v5264, 1.442695
        %v5604 = vpow.pop %v5603
        %v5605 = vmul.f32 %v5265, 1.442695
        %v5606 = vpow.pop %v5605
        %v5607 = vmul.f32 %v5266, 1.442695
        %v5608 = vpow.pop %v5607
        %v5609 = vmul.f32 %v5267, 1.442695
        %v5610 = vpow.pop %v5609
        %v5611 = vmul.f32 %v5268, 1.442695
        %v5612 = vpow.pop %v5611
        %v5613 = vmul.f32 %v5269, 1.442695
        %v5614 = vpow.pop %v5613
        %v5615 = vmul.f32 %v5270, 1.442695
        %v5616 = vpow.pop %v5615
        %v5617 = vmul.f32 %v5271, 1.442695
        %v5618 = vpow.pop %v5617
        %v5619 = vmul.f32 %v5272, 1.442695
        %v5620 = vpow.pop %v5619
        %v5621 = vmul.f32 %v5273, 1.442695
        %v5622 = vpow.pop %v5621
        %v5623 = vmul.f32 %v5274, 1.442695
        %v5624 = vpow.pop %v5623
        %v5625 = vmul.f32 %v5275, 1.442695
        %v5626 = vpow.pop %v5625
        %v5627 = vmul.f32 %v5276, 1.442695
        %v5628 = vpow.pop %v5627
        %v5629 = vmul.f32 %v5277, 1.442695
        %v5630 = vpow.pop %v5629
        %v5631 = vmul.f32 %v5278, 1.442695
        %v5632 = vpow.pop %v5631
        %v5633 = vmul.f32 %v5279, 1.442695
        %v5634 = vpow.pop %v5633
        %v5635 = vmul.f32 %v5280, 1.442695
        %v5636 = vpow.pop %v5635
        %v5637 = vmul.f32 %v5281, 1.442695
        %v5638 = vpow.pop %v5637
        %v5639 = vmul.f32 %v5282, 1.442695
        %v5640 = vpow.pop %v5639
        %v5641 = vmul.f32 %v5283, 1.442695
        %v5642 = vpow.pop %v5641
        %v5643 = vmul.f32 %v5284, 1.442695
        %v5644 = vpow.pop %v5643
        %v5645 = vmul.f32 %v5285, 1.442695
        %v5646 = vpow.pop %v5645
        %v5647 = vmul.f32 %v5286, 1.442695
        %v5648 = vpow.pop %v5647
        %v5649 = vmul.f32 %v5287, 1.442695
        %v5650 = vpow.pop %v5649
        %v5651 = vmul.f32 %v5288, 1.442695
        %v5652 = vpow.pop %v5651
        %v5653 = vmul.f32 %v5289, 1.442695
        %v5654 = vpow.pop %v5653
        %v5655 = vmul.f32 %v5290, 1.442695
        %v5656 = vpow.pop %v5655
        %v5657 = vmul.f32 %v5291, 1.442695
        %v5658 = vpow.pop %v5657
        %v5659 = vmul.f32 %v5292, 1.442695
        %v5660 = vpow.pop %v5659
        %v5661 = vmul.f32 %v5293, 1.442695
        %v5662 = vpow.pop %v5661
        %v5663 = vmul.f32 %v5294, 1.442695
        %v5664 = vpow.pop %v5663
        %v5665 = vmul.f32 %v5295, 1.442695
        %v5666 = vpow.pop %v5665
        %v5667 = vmul.f32 %v5296, 1.442695
        %v5668 = vpow.pop %v5667
        %v5669 = vmul.f32 %v5297, 1.442695
        %v5670 = vpow.pop %v5669
        %v5671 = vmul.f32 %v5298, 1.442695
        %v5672 = vpow.pop %v5671
        %v5673 = vmul.f32 %v5299, 1.442695
        %v5674 = vpow.pop %v5673
        %v5675 = vmul.f32 %v5300, 1.442695
        %v5676 = vpow.pop %v5675
        %v5677 = vmul.f32 %v5301, 1.442695
        %v5678 = vpow.pop %v5677
        %v5679 = vmul.f32 %v5302, 1.442695
        %v5680 = vpow.pop %v5679
        %v5681 = vmul.f32 %v5303, 1.442695
        %v5682 = vpow.pop %v5681
        %v5683 = vmul.f32 %v5304, 1.442695
        %v5684 = vpow.pop %v5683
        %v5685 = vmul.f32 %v5305, 1.442695
        %v5686 = vpow.pop %v5685
        %v5687 = vmul.f32 %v5306, 1.442695
        %v5688 = vpow.pop %v5687
        %v5689 = vmul.f32 %v5307, 1.442695
        %v5690 = vpow.pop %v5689
        %v5691 = vmul.f32 %v5308, 1.442695
        %v5692 = vpow.pop %v5691
        %v5693 = vmul.f32 %v5309, 1.442695
        %v5694 = vpow.pop %v5693
        %v5695 = vmul.f32 %v5310, 1.442695
        %v5696 = vpow.pop %v5695
        %v5697 = vmul.f32 %v5311, 1.442695
        %v5698 = vpow.pop %v5697
        %v5699 = vmul.f32 %v5312, 1.442695
        %v5700 = vpow.pop %v5699
        %v5701 = vmul.f32 %v5313, 1.442695
        %v5702 = vpow.pop %v5701
        %v5703 = vmul.f32 %v5314, 1.442695
        %v5704 = vpow.pop %v5703
        %v5705 = vmul.f32 %v5315, 1.442695
        %v5706 = vpow.pop %v5705
        %v5707 = vmul.f32 %v5316, 1.442695
        %v5708 = vpow.pop %v5707
        %v5709 = vmul.f32 %v5317, 1.442695
        %v5710 = vpow.pop %v5709
        %v5711 = vmul.f32 %v5318, 1.442695
        %v5712 = vpow.pop %v5711
        %v5713 = vmul.f32 %v5319, 1.442695
        %v5714 = vpow.pop %v5713
        %v5715 = vmul.f32 %v5320, 1.442695
        %v5716 = vpow.pop %v5715
        %v5717 = vmul.f32 %v5321, 1.442695
        %v5718 = vpow.pop %v5717
        %v5719 = vmul.f32 %v5322, 1.442695
        %v5720 = vpow.pop %v5719
        %v5721 = vmul.f32 %v5323, 1.442695
        %v5722 = vpow.pop %v5721
        %v5723 = vmul.f32 %v5324, 1.442695
        %v5724 = vpow.pop %v5723
        %v5725 = vmul.f32 %v5325, 1.442695
        %v5726 = vpow.pop %v5725
        %v5727 = vmul.f32 %v5326, 1.442695
        %v5728 = vpow.pop %v5727
        %v5729 = vmul.f32 %v5327, 1.442695
        %v5730 = vpow.pop %v5729
        %v5731 = vmul.f32 %v5328, 1.442695
        %v5732 = vpow.pop %v5731
        %v5733 = vmul.f32 %v5329, 1.442695
        %v5734 = vpow.pop %v5733
        %v5735 = vmul.f32 %v5330, 1.442695
        %v5736 = vpow.pop %v5735
        %v5737 = vmul.f32 %v5331, 1.442695
        %v5738 = vpow.pop %v5737
        %v5739 = vmul.f32 %v5332, 1.442695
        %v5740 = vpow.pop %v5739
        %v5741 = vmul.f32 %v5333, 1.442695
        %v5742 = vpow.pop %v5741
        %v5743 = vmul.f32 %v5334, 1.442695
        %v5744 = vpow.pop %v5743
        %v5745 = vmul.f32 %v5335, 1.442695
        %v5746 = vpow.pop %v5745
        %v5747 = vmul.f32 %v5336, 1.442695
        %v5748 = vpow.pop %v5747
        %v5749 = vmul.f32 %v5337, 1.442695
        %v5750 = vpow.pop %v5749
        %v5751 = vmul.f32 %v5338, 1.442695
        %v5752 = vpow.pop %v5751
        %v5753 = vmul.f32 %v5339, 1.442695
        %v5754 = vpow.pop %v5753
        %v5755 = vmul.f32 %v5340, 1.442695
        %v5756 = vpow.pop %v5755
        %v5757 = vmul.f32 %v5341, 1.442695
        %v5758 = vpow.pop %v5757
        %v5759 = vmul.f32 %v5342, 1.442695
        %v5760 = vpow.pop %v5759
        %v5761 = vmul.f32 %v5343, 1.442695
        %v5762 = vpow.pop %v5761
        %v5763 = vmul.f32 %v5344, 1.442695
        %v5764 = vpow.pop %v5763
        %v5765 = vmul.f32 %v5345, 1.442695
        %v5766 = vpow.pop %v5765
        %v5767 = vmul.f32 %v5346, 1.442695
        %v5768 = vpow.pop %v5767
        %v5769 = vmul.f32 %v5347, 1.442695
        %v5770 = vpow.pop %v5769
        %v5771 = vmul.f32 %v5348, 1.442695
        %v5772 = vpow.pop %v5771
        %v5773 = vmul.f32 %v5349, 1.442695
        %v5774 = vpow.pop %v5773
        %v5775 = vmul.f32 %v5350, 1.442695
        %v5776 = vpow.pop %v5775
        %v5777 = vmul.f32 %v5351, 1.442695
        %v5778 = vpow.pop %v5777
        %v5779 = vmul.f32 %v5352, 1.442695
        %v5780 = vpow.pop %v5779
        %v5781 = vmul.f32 %v5353, 1.442695
        %v5782 = vpow.pop %v5781
        %v5783 = vmul.f32 %v5354, 1.442695
        %v5784 = vpow.pop %v5783
        %v5785 = vmul.f32 %v5355, 1.442695
        %v5786 = vpow.pop %v5785
        %v5787 = vmul.f32 %v5356, 1.442695
        %v5788 = vpow.pop %v5787
        %v5789 = vmul.f32 %v5357, 1.442695
        %v5790 = vpow.pop %v5789
        %v5791 = vmul.f32 %v5358, 1.442695
        %v5792 = vpow.pop %v5791
        %v5793 = vmul.f32 %v5359, 1.442695
        %v5794 = vpow.pop %v5793
        %v5795 = vmul.f32 %v5360, 1.442695
        %v5796 = vpow.pop %v5795
        %v5797 = vmul.f32 %v5361, 1.442695
        %v5798 = vpow.pop %v5797
        %v5799 = vmul.f32 %v5362, 1.442695
        %v5800 = vpow.pop %v5799
        %v5801 = vmul.f32 %v5363, 1.442695
        %v5802 = vpow.pop %v5801
        %v5803 = vmul.f32 %v5364, 1.442695
        %v5804 = vpow.pop %v5803
        %v5805 = vmul.f32 %v5365, 1.442695
        %v5806 = vpow.pop %v5805
        %v5807 = vmul.f32 %v5366, 1.442695
        %v5808 = vpow.pop %v5807
        %v5809 = vmul.f32 %v5367, 1.442695
        %v5810 = vpow.pop %v5809
        %v5811 = vmul.f32 %v5368, 1.442695
        %v5812 = vpow.pop %v5811
        %v5813 = vmul.f32 %v5369, 1.442695
        %v5814 = vpow.pop %v5813
        %v5815 = vmul.f32 %v5370, 1.442695
        %v5816 = vpow.pop %v5815
        %v5817 = vmul.f32 %v5371, 1.442695
        %v5818 = vpow.pop %v5817
        %v5819 = vmul.f32 %v5372, 1.442695
        %v5820 = vpow.pop %v5819
        %v5821 = vmul.f32 %v5373, 1.442695
        %v5822 = vpow.pop %v5821
        %v5823 = vmul.f32 %v5374, 1.442695
        %v5824 = vpow.pop %v5823
        %v5825 = vmul.f32 %v5375, 1.442695
        %v5826 = vpow.pop %v5825
        %v5827 = vmul.f32 %v5376, 1.442695
        %v5828 = vpow.pop %v5827
        %v5829 = vmul.f32 %v5377, 1.442695
        %v5830 = vpow.pop %v5829
        %v5831 = vmul.f32 %v5378, 1.442695
        %v5832 = vpow.pop %v5831
        %v5833 = vmul.f32 %v5379, 1.442695
        %v5834 = vpow.pop %v5833
        %v5835 = vmul.f32 %v5380, 1.442695
        %v5836 = vpow.pop %v5835
        %v5837 = vmul.f32 %v5381, 1.442695
        %v5838 = vpow.pop %v5837
        %v5839 = vmul.f32 %v5382, 1.442695
        %v5840 = vpow.pop %v5839
        %v5841 = vmul.f32 %v5383, 1.442695
        %v5842 = vpow.pop %v5841
        %v5843 = vmul.f32 %v5384, 1.442695
        %v5844 = vpow.pop %v5843
        %v5845 = vmul.f32 %v5385, 1.442695
        %v5846 = vpow.pop %v5845
        %v5847 = vmul.f32 %v5386, 1.442695
        %v5848 = vpow.pop %v5847
        %v5849 = vmul.f32 %v5387, 1.442695
        %v5850 = vpow.pop %v5849
        %v5851 = vmul.f32 %v5388, 1.442695
        %v5852 = vpow.pop %v5851
        %v5853 = vmul.f32 %v5389, 1.442695
        %v5854 = vpow.pop %v5853
        %v5855 = vmul.f32 %v5390, 1.442695
        %v5856 = vpow.pop %v5855
        %v5857 = vmul.f32 %v5391, 1.442695
        %v5858 = vpow.pop %v5857
        %v5859 = vmul.f32 %v5392, 1.442695
        %v5860 = vpow.pop %v5859
        %v5861 = vmul.f32 %v5393, 1.442695
        %v5862 = vpow.pop %v5861
        %v5863 = vmul.f32 %v5394, 1.442695
        %v5864 = vpow.pop %v5863
        %v5865 = vmul.f32 %v5395, 1.442695
        %v5866 = vpow.pop %v5865
        %v5867 = vmul.f32 %v5396, 1.442695
        %v5868 = vpow.pop %v5867
        %v5869 = vmul.f32 %v5397, 1.442695
        %v5870 = vpow.pop %v5869
        %v5871 = vmul.f32 %v5398, 1.442695
        %v5872 = vpow.pop %v5871
        %v5873 = vmul.f32 %v5399, 1.442695
        %v5874 = vpow.pop %v5873
        %v5875 = vmul.f32 %v5400, 1.442695
        %v5876 = vpow.pop %v5875
        %v5877 = vmul.f32 %v5401, 1.442695
        %v5878 = vpow.pop %v5877
        %v5879 = vmul.f32 %v5402, 1.442695
        %v5880 = vpow.pop %v5879
        %v5881 = vmul.f32 %v5403, 1.442695
        %v5882 = vpow.pop %v5881
        %v5883 = vmul.f32 %v5404, 1.442695
        %v5884 = vpow.pop %v5883
        %v5885 = vmul.f32 %v5405, 1.442695
        %v5886 = vpow.pop %v5885
        %v5887 = vmul.f32 %v5406, 1.442695
        %v5888 = vpow.pop %v5887
        %v5889 = vmul.f32 %v5407, 1.442695
        %v5890 = vpow.pop %v5889
        %v5891 = vmul.f32 %v5408, 1.442695
        %v5892 = vpow.pop %v5891
        %v5893 = vmul.f32 %v5409, 1.442695
        %v5894 = vpow.pop %v5893
        %v5895 = vmul.f32 %v5410, 1.442695
        %v5896 = vpow.pop %v5895
        %v5897 = vmul.f32 %v5411, 1.442695
        %v5898 = vpow.pop %v5897
        %v5899 = vmul.f32 %v5412, 1.442695
        %v5900 = vpow.pop %v5899
        %v5901 = vmul.f32 %v5413, 1.442695
        %v5902 = vpow.pop %v5901
        %v5903 = vmul.f32 %v5414, 1.442695
        %v5904 = vpow.pop %v5903
        %v5905 = vmul.f32 %v5415, 1.442695
        %v5906 = vpow.pop %v5905
        %v5907 = vmul.f32 %v5416, 1.442695
        %v5908 = vpow.pop %v5907
        %v5909 = vmul.f32 %v5417, 1.442695
        %v5910 = vpow.pop %v5909
        %v5911 = vmul.f32 %v5418, 1.442695
        %v5912 = vpow.pop %v5911
        %v5913 = vmul.f32 %v5419, 1.442695
        %v5914 = vpow.pop %v5913
        %v5915 = vmul.f32 %v5420, 1.442695
        %v5916 = vpow.pop %v5915
        %v5917 = vmul.f32 %v5421, 1.442695
        %v5918 = vpow.pop %v5917
        %v5919 = vmul.f32 %v5422, 1.442695
        %v5920 = vpow.pop %v5919
        %v5921 = vmul.f32 %v5423, 1.442695
        %v5922 = vpow.pop %v5921
        %v5923 = vmul.f32 %v5424, 1.442695
        %v5924 = vpow.pop %v5923
        %v5925 = vmul.f32 %v5425, 1.442695
        %v5926 = vpow.pop %v5925
        %v5927 = vmul.f32 %v5426, 1.442695
        %v5928 = vpow.pop %v5927
        %v5929 = vmul.f32 %v5427, 1.442695
        %v5930 = vpow.pop %v5929
        %v5931 = vmul.f32 %v5428, 1.442695
        %v5932 = vpow.pop %v5931
        %v5933 = vmul.f32 %v5429, 1.442695
        %v5934 = vpow.pop %v5933
        %v5935 = vmul.f32 %v5430, 1.442695
        %v5936 = vpow.pop %v5935
        %v5937 = vmul.f32 %v5431, 1.442695
        %v5938 = vpow.pop %v5937
        %v5939 = vmul.f32 %v5432, 1.442695
        %v5940 = vpow.pop %v5939
        %v5941 = vmul.f32 %v5433, 1.442695
        %v5942 = vpow.pop %v5941
        %v5943 = vmul.f32 %v5434, 1.442695
        %v5944 = vpow.pop %v5943
        %v5945 = vmul.f32 %v5435, 1.442695
        %v5946 = vpow.pop %v5945
        %v5947 = vmul.f32 %v5436, 1.442695
        %v5948 = vpow.pop %v5947
        %v5949 = vpack.c.bf16 %v5442, %v5438
        %v5950 = vpack.c.bf16 %v5444, %v5440
        %v5951 = vpack.c.bf16 %v5450, %v5446
        %v5952 = vpack.c.bf16 %v5452, %v5448
        %v5953 = vpack.c.bf16 %v5458, %v5454
        %v5954 = vpack.c.bf16 %v5460, %v5456
        %v5955 = vpack.c.bf16 %v5466, %v5462
        %v5956 = vpack.c.bf16 %v5468, %v5464
        %v5957 = vpack.c.bf16 %v5474, %v5470
        %v5958 = vpack.c.bf16 %v5476, %v5472
        %v5959 = vpack.c.bf16 %v5482, %v5478
        %v5960 = vpack.c.bf16 %v5484, %v5480
        %v5961 = vpack.c.bf16 %v5490, %v5486
        %v5962 = vpack.c.bf16 %v5492, %v5488
        %v5963 = vpack.c.bf16 %v5498, %v5494
        %v5964 = vpack.c.bf16 %v5500, %v5496
        %v5965 = vpack.c.bf16 %v5506, %v5502
        %v5966 = vpack.c.bf16 %v5508, %v5504
        %v5967 = vpack.c.bf16 %v5514, %v5510
        %v5968 = vpack.c.bf16 %v5516, %v5512
        %v5969 = vpack.c.bf16 %v5522, %v5518
        %v5970 = vpack.c.bf16 %v5524, %v5520
        %v5971 = vpack.c.bf16 %v5530, %v5526
        %v5972 = vpack.c.bf16 %v5532, %v5528
        %v5973 = vpack.c.bf16 %v5538, %v5534
        %v5974 = vpack.c.bf16 %v5540, %v5536
        %v5975 = vpack.c.bf16 %v5546, %v5542
        %v5976 = vpack.c.bf16 %v5548, %v5544
        %v5977 = vpack.c.bf16 %v5554, %v5550
        %v5978 = vpack.c.bf16 %v5556, %v5552
        %v5979 = vpack.c.bf16 %v5562, %v5558
        %v5980 = vpack.c.bf16 %v5564, %v5560
        %v5981 = vpack.c.bf16 %v5570, %v5566
        %v5982 = vpack.c.bf16 %v5572, %v5568
        %v5983 = vpack.c.bf16 %v5578, %v5574
        %v5984 = vpack.c.bf16 %v5580, %v5576
        %v5985 = vpack.c.bf16 %v5586, %v5582
        %v5986 = vpack.c.bf16 %v5588, %v5584
        %v5987 = vpack.c.bf16 %v5594, %v5590
        %v5988 = vpack.c.bf16 %v5596, %v5592
        %v5989 = vpack.c.bf16 %v5602, %v5598
        %v5990 = vpack.c.bf16 %v5604, %v5600
        %v5991 = vpack.c.bf16 %v5610, %v5606
        %v5992 = vpack.c.bf16 %v5612, %v5608
        %v5993 = vpack.c.bf16 %v5618, %v5614
        %v5994 = vpack.c.bf16 %v5620, %v5616
        %v5995 = vpack.c.bf16 %v5626, %v5622
        %v5996 = vpack.c.bf16 %v5628, %v5624
        %v5997 = vpack.c.bf16 %v5634, %v5630
        %v5998 = vpack.c.bf16 %v5636, %v5632
        %v5999 = vpack.c.bf16 %v5642, %v5638
        %v6000 = vpack.c.bf16 %v5644, %v5640
        %v6001 = vpack.c.bf16 %v5650, %v5646
        %v6002 = vpack.c.bf16 %v5652, %v5648
        %v6003 = vpack.c.bf16 %v5658, %v5654
        %v6004 = vpack.c.bf16 %v5660, %v5656
        %v6005 = vpack.c.bf16 %v5666, %v5662
        %v6006 = vpack.c.bf16 %v5668, %v5664
        %v6007 = vpack.c.bf16 %v5674, %v5670
        %v6008 = vpack.c.bf16 %v5676, %v5672
        %v6009 = vpack.c.bf16 %v5682, %v5678
        %v6010 = vpack.c.bf16 %v5684, %v5680
        %v6011 = vpack.c.bf16 %v5690, %v5686
        %v6012 = vpack.c.bf16 %v5692, %v5688
        %v6013 = vpack.c.bf16 %v5698, %v5694
        %v6014 = vpack.c.bf16 %v5700, %v5696
        %v6015 = vpack.c.bf16 %v5706, %v5702
        %v6016 = vpack.c.bf16 %v5708, %v5704
        %v6017 = vpack.c.bf16 %v5714, %v5710
        %v6018 = vpack.c.bf16 %v5716, %v5712
        %v6019 = vpack.c.bf16 %v5722, %v5718
        %v6020 = vpack.c.bf16 %v5724, %v5720
        %v6021 = vpack.c.bf16 %v5730, %v5726
        %v6022 = vpack.c.bf16 %v5732, %v5728
        %v6023 = vpack.c.bf16 %v5738, %v5734
        %v6024 = vpack.c.bf16 %v5740, %v5736
        %v6025 = vpack.c.bf16 %v5746, %v5742
        %v6026 = vpack.c.bf16 %v5748, %v5744
        %v6027 = vpack.c.bf16 %v5754, %v5750
        %v6028 = vpack.c.bf16 %v5756, %v5752
        %v6029 = vpack.c.bf16 %v5762, %v5758
        %v6030 = vpack.c.bf16 %v5764, %v5760
        %v6031 = vpack.c.bf16 %v5770, %v5766
        %v6032 = vpack.c.bf16 %v5772, %v5768
        %v6033 = vpack.c.bf16 %v5778, %v5774
        %v6034 = vpack.c.bf16 %v5780, %v5776
        %v6035 = vpack.c.bf16 %v5786, %v5782
        %v6036 = vpack.c.bf16 %v5788, %v5784
        %v6037 = vpack.c.bf16 %v5794, %v5790
        %v6038 = vpack.c.bf16 %v5796, %v5792
        %v6039 = vpack.c.bf16 %v5802, %v5798
        %v6040 = vpack.c.bf16 %v5804, %v5800
        %v6041 = vpack.c.bf16 %v5810, %v5806
        %v6042 = vpack.c.bf16 %v5812, %v5808
        %v6043 = vpack.c.bf16 %v5818, %v5814
        %v6044 = vpack.c.bf16 %v5820, %v5816
        %v6045 = vpack.c.bf16 %v5826, %v5822
        %v6046 = vpack.c.bf16 %v5828, %v5824
        %v6047 = vpack.c.bf16 %v5834, %v5830
        %v6048 = vpack.c.bf16 %v5836, %v5832
        %v6049 = vpack.c.bf16 %v5842, %v5838
        %v6050 = vpack.c.bf16 %v5844, %v5840
        %v6051 = vpack.c.bf16 %v5850, %v5846
        %v6052 = vpack.c.bf16 %v5852, %v5848
        %v6053 = vpack.c.bf16 %v5858, %v5854
        %v6054 = vpack.c.bf16 %v5860, %v5856
        %v6055 = vpack.c.bf16 %v5866, %v5862
        %v6056 = vpack.c.bf16 %v5868, %v5864
        %v6057 = vpack.c.bf16 %v5874, %v5870
        %v6058 = vpack.c.bf16 %v5876, %v5872
        %v6059 = vpack.c.bf16 %v5882, %v5878
        %v6060 = vpack.c.bf16 %v5884, %v5880
        %v6061 = vpack.c.bf16 %v5890, %v5886
        %v6062 = vpack.c.bf16 %v5892, %v5888
        %v6063 = vpack.c.bf16 %v5898, %v5894
        %v6064 = vpack.c.bf16 %v5900, %v5896
        %v6065 = vpack.c.bf16 %v5906, %v5902
        %v6066 = vpack.c.bf16 %v5908, %v5904
        %v6067 = vpack.c.bf16 %v5914, %v5910
        %v6068 = vpack.c.bf16 %v5916, %v5912
        %v6069 = vpack.c.bf16 %v5922, %v5918
        %v6070 = vpack.c.bf16 %v5924, %v5920
        %v6071 = vpack.c.bf16 %v5930, %v5926
        %v6072 = vpack.c.bf16 %v5932, %v5928
        %v6073 = vpack.c.bf16 %v5938, %v5934
        %v6074 = vpack.c.bf16 %v5940, %v5936
        %v6075 = vpack.c.bf16 %v5946, %v5942
        %v6076 = vpack.c.bf16 %v5948, %v5944
        %v6077 = vpack.c.b16 %v3649, %v3649
        %v6078 = vpack.c.b16 %v3650, %v3650
        %6081 = vmatprep.subr.bf16.mxu0 %v5950
        %6082 = vmatpush1.bf16.xpose.msra.mxu0 %v5949
        %6083 = vmatprep.subr.bf16.mxu0 %v5952
        %6084 = vmatpush1.bf16.xpose.msra.mxu0 %v5951
        %6085 = vmatprep.subr.bf16.mxu0 %v5954
        %6086 = vmatpush1.bf16.xpose.msra.mxu0 %v5953
        %6087 = vmatprep.subr.bf16.mxu0 %v5956
        %6088 = vmatpush1.bf16.xpose.msra.mxu0 %v5955
        %6089 = vmatprep.subr.bf16.mxu0 %v5958
        %6090 = vmatpush1.bf16.xpose.msra.mxu0 %v5957
        %6091 = vmatprep.subr.bf16.mxu0 %v5960
        %6092 = vmatpush1.bf16.xpose.msra.mxu0 %v5959
        %6093 = vmatprep.subr.bf16.mxu0 %v5962
        %6094 = vmatpush1.bf16.xpose.msra.mxu0 %v5961
        %6095 = vmatprep.subr.bf16.mxu0 %v5964
        %6096 = vmatpush1.bf16.xpose.msra.mxu0 %v5963
        %6097 = vmatprep.subr.bf16.mxu0 %v5966
        %6098 = vmatpush1.bf16.xpose.msra.mxu0 %v5965
        %6099 = vmatprep.subr.bf16.mxu0 %v5968
        %6100 = vmatpush1.bf16.xpose.msra.mxu0 %v5967
        %6101 = vmatprep.subr.bf16.mxu0 %v5970
        %6102 = vmatpush1.bf16.xpose.msra.mxu0 %v5969
        %6103 = vmatprep.subr.bf16.mxu0 %v5972
        %6104 = vmatpush1.bf16.xpose.msra.mxu0 %v5971
        %6105 = vmatprep.subr.bf16.mxu0 %v5974
        %6106 = vmatpush1.bf16.xpose.msra.mxu0 %v5973
        %6107 = vmatprep.subr.bf16.mxu0 %v5976
        %6108 = vmatpush1.bf16.xpose.msra.mxu0 %v5975
        %6109 = vmatprep.subr.bf16.mxu0 %v5978
        %6110 = vmatpush1.bf16.xpose.msra.mxu0 %v5977
        %6111 = vmatprep.subr.bf16.mxu0 %v5980
        %6112 = vmatpush1.bf16.xpose.msra.mxu0 %v5979
        %6113 = vmatprep.mubr.bf16.mxu0 %v6078
        %6114 = vmatmul.mubr.bf16.gmra.mrb[0].mxu0 %v6077
        %v6115 = vpop.f32.mrb[0].mxu0
        %v6116 = vadd.f32 0.0, %v6115
        %v6117 = vpop.f32.mrb[0].mxu0
        %v6118 = vadd.f32 0.0, %v6117
        %v6119 = vpop.f32.mrb[0].mxu0
        %v6120 = vpop.f32.mrb[0].mxu0
        %6121 = vdwg.mxu0
        %v6122 = vpack.c.b16 %v3651, %v3651
        %v6123 = vpack.c.b16 %v3652, %v3652
        %6126 = vmatprep.subr.bf16.mxu0 %v5982
        %6127 = vmatpush1.bf16.xpose.msra.mxu0 %v5981
        %6128 = vmatprep.subr.bf16.mxu0 %v5984
        %6129 = vmatpush1.bf16.xpose.msra.mxu0 %v5983
        %6130 = vmatprep.subr.bf16.mxu0 %v5986
        %6131 = vmatpush1.bf16.xpose.msra.mxu0 %v5985
        %6132 = vmatprep.subr.bf16.mxu0 %v5988
        %6133 = vmatpush1.bf16.xpose.msra.mxu0 %v5987
        %6134 = vmatprep.subr.bf16.mxu0 %v5990
        %6135 = vmatpush1.bf16.xpose.msra.mxu0 %v5989
        %6136 = vmatprep.subr.bf16.mxu0 %v5992
        %6137 = vmatpush1.bf16.xpose.msra.mxu0 %v5991
        %6138 = vmatprep.subr.bf16.mxu0 %v5994
        %6139 = vmatpush1.bf16.xpose.msra.mxu0 %v5993
        %6140 = vmatprep.subr.bf16.mxu0 %v5996
        %6141 = vmatpush1.bf16.xpose.msra.mxu0 %v5995
        %6142 = vmatprep.subr.bf16.mxu0 %v5998
        %6143 = vmatpush1.bf16.xpose.msra.mxu0 %v5997
        %6144 = vmatprep.subr.bf16.mxu0 %v6000
        %6145 = vmatpush1.bf16.xpose.msra.mxu0 %v5999
        %6146 = vmatprep.subr.bf16.mxu0 %v6002
        %6147 = vmatpush1.bf16.xpose.msra.mxu0 %v6001
        %6148 = vmatprep.subr.bf16.mxu0 %v6004
        %6149 = vmatpush1.bf16.xpose.msra.mxu0 %v6003
        %6150 = vmatprep.subr.bf16.mxu0 %v6006
        %6151 = vmatpush1.bf16.xpose.msra.mxu0 %v6005
        %6152 = vmatprep.subr.bf16.mxu0 %v6008
        %6153 = vmatpush1.bf16.xpose.msra.mxu0 %v6007
        %6154 = vmatprep.subr.bf16.mxu0 %v6010
        %6155 = vmatpush1.bf16.xpose.msra.mxu0 %v6009
        %6156 = vmatprep.subr.bf16.mxu0 %v6012
        %6157 = vmatpush1.bf16.xpose.msra.mxu0 %v6011
        %6158 = vmatprep.mubr.bf16.mxu0 %v6123
        %6159 = vmatmul.mubr.bf16.gmra.mrb[0].mxu0 %v6122
        %v6160 = vpop.f32.mrb[0].mxu0
        %v6161 = vadd.f32 0.0, %v6160
        %v6162 = vpop.f32.mrb[0].mxu0
        %v6163 = vadd.f32 0.0, %v6162
        %v6164 = vpop.f32.mrb[0].mxu0
        %v6165 = vpop.f32.mrb[0].mxu0
        %6166 = vdwg.mxu0
        %v6167 = vpack.c.b16 %v3653, %v3653
        %v6168 = vpack.c.b16 %v3654, %v3654
        %6171 = vmatprep.subr.bf16.mxu0 %v6014
        %6172 = vmatpush1.bf16.xpose.msra.mxu0 %v6013
        %6173 = vmatprep.subr.bf16.mxu0 %v6016
        %6174 = vmatpush1.bf16.xpose.msra.mxu0 %v6015
        %6175 = vmatprep.subr.bf16.mxu0 %v6018
        %6176 = vmatpush1.bf16.xpose.msra.mxu0 %v6017
        %6177 = vmatprep.subr.bf16.mxu0 %v6020
        %6178 = vmatpush1.bf16.xpose.msra.mxu0 %v6019
        %6179 = vmatprep.subr.bf16.mxu0 %v6022
        %6180 = vmatpush1.bf16.xpose.msra.mxu0 %v6021
        %6181 = vmatprep.subr.bf16.mxu0 %v6024
        %6182 = vmatpush1.bf16.xpose.msra.mxu0 %v6023
        %6183 = vmatprep.subr.bf16.mxu0 %v6026
        %6184 = vmatpush1.bf16.xpose.msra.mxu0 %v6025
        %6185 = vmatprep.subr.bf16.mxu0 %v6028
        %6186 = vmatpush1.bf16.xpose.msra.mxu0 %v6027
        %6187 = vmatprep.subr.bf16.mxu0 %v6030
        %6188 = vmatpush1.bf16.xpose.msra.mxu0 %v6029
        %6189 = vmatprep.subr.bf16.mxu0 %v6032
        %6190 = vmatpush1.bf16.xpose.msra.mxu0 %v6031
        %6191 = vmatprep.subr.bf16.mxu0 %v6034
        %6192 = vmatpush1.bf16.xpose.msra.mxu0 %v6033
        %6193 = vmatprep.subr.bf16.mxu0 %v6036
        %6194 = vmatpush1.bf16.xpose.msra.mxu0 %v6035
        %6195 = vmatprep.subr.bf16.mxu0 %v6038
        %6196 = vmatpush1.bf16.xpose.msra.mxu0 %v6037
        %6197 = vmatprep.subr.bf16.mxu0 %v6040
        %6198 = vmatpush1.bf16.xpose.msra.mxu0 %v6039
        %6199 = vmatprep.subr.bf16.mxu0 %v6042
        %6200 = vmatpush1.bf16.xpose.msra.mxu0 %v6041
        %6201 = vmatprep.subr.bf16.mxu0 %v6044
        %6202 = vmatpush1.bf16.xpose.msra.mxu0 %v6043
        %6203 = vmatprep.mubr.bf16.mxu0 %v6168
        %6204 = vmatmul.mubr.bf16.gmra.mrb[0].mxu0 %v6167
        %v6205 = vpop.f32.mrb[0].mxu0
        %v6206 = vadd.f32 0.0, %v6205
        %v6207 = vpop.f32.mrb[0].mxu0
        %v6208 = vadd.f32 0.0, %v6207
        %v6209 = vpop.f32.mrb[0].mxu0
        %v6210 = vpop.f32.mrb[0].mxu0
        %6211 = vdwg.mxu0
        %v6212 = vpack.c.b16 %v3655, %v3655
        %v6213 = vpack.c.b16 %v3656, %v3656
        %6216 = vmatprep.subr.bf16.mxu0 %v6046
        %6217 = vmatpush1.bf16.xpose.msra.mxu0 %v6045
        %6218 = vmatprep.subr.bf16.mxu0 %v6048
        %6219 = vmatpush1.bf16.xpose.msra.mxu0 %v6047
        %6220 = vmatprep.subr.bf16.mxu0 %v6050
        %6221 = vmatpush1.bf16.xpose.msra.mxu0 %v6049
        %6222 = vmatprep.subr.bf16.mxu0 %v6052
        %6223 = vmatpush1.bf16.xpose.msra.mxu0 %v6051
        %6224 = vmatprep.subr.bf16.mxu0 %v6054
        %6225 = vmatpush1.bf16.xpose.msra.mxu0 %v6053
        %6226 = vmatprep.subr.bf16.mxu0 %v6056
        %6227 = vmatpush1.bf16.xpose.msra.mxu0 %v6055
        %6228 = vmatprep.subr.bf16.mxu0 %v6058
        %6229 = vmatpush1.bf16.xpose.msra.mxu0 %v6057
        %6230 = vmatprep.subr.bf16.mxu0 %v6060
        %6231 = vmatpush1.bf16.xpose.msra.mxu0 %v6059
        %6232 = vmatprep.subr.bf16.mxu0 %v6062
        %6233 = vmatpush1.bf16.xpose.msra.mxu0 %v6061
        %6234 = vmatprep.subr.bf16.mxu0 %v6064
        %6235 = vmatpush1.bf16.xpose.msra.mxu0 %v6063
        %6236 = vmatprep.subr.bf16.mxu0 %v6066
        %6237 = vmatpush1.bf16.xpose.msra.mxu0 %v6065
        %6238 = vmatprep.subr.bf16.mxu0 %v6068
        %6239 = vmatpush1.bf16.xpose.msra.mxu0 %v6067
        %6240 = vmatprep.subr.bf16.mxu0 %v6070
        %6241 = vmatpush1.bf16.xpose.msra.mxu0 %v6069
        %6242 = vmatprep.subr.bf16.mxu0 %v6072
        %6243 = vmatpush1.bf16.xpose.msra.mxu0 %v6071
        %6244 = vmatprep.subr.bf16.mxu0 %v6074
        %6245 = vmatpush1.bf16.xpose.msra.mxu0 %v6073
        %6246 = vmatprep.subr.bf16.mxu0 %v6076
        %6247 = vmatpush1.bf16.xpose.msra.mxu0 %v6075
        %6248 = vmatprep.mubr.bf16.mxu0 %v6213
        %6249 = vmatmul.mubr.bf16.gmra.mrb[0].mxu0 %v6212
        %v6250 = vpop.f32.mrb[0].mxu0
        %v6251 = vadd.f32 0.0, %v6250
        %v6252 = vpop.f32.mrb[0].mxu0
        %v6253 = vadd.f32 0.0, %v6252
        %v6254 = vpop.f32.mrb[0].mxu0
        %v6255 = vpop.f32.mrb[0].mxu0
        %6256 = vdwg.mxu0
        %6257 = vmatprep.subr.bf16.mxu0 %v5950
        %6258 = vmatpush1.bf16.xpose.msra.mxu0 %v5949
        %6259 = vmatprep.subr.bf16.mxu0 %v5952
        %6260 = vmatpush1.bf16.xpose.msra.mxu0 %v5951
        %6261 = vmatprep.subr.bf16.mxu0 %v5954
        %6262 = vmatpush1.bf16.xpose.msra.mxu0 %v5953
        %6263 = vmatprep.subr.bf16.mxu0 %v5956
        %6264 = vmatpush1.bf16.xpose.msra.mxu0 %v5955
        %6265 = vmatprep.subr.bf16.mxu0 %v5958
        %6266 = vmatpush1.bf16.xpose.msra.mxu0 %v5957
        %6267 = vmatprep.subr.bf16.mxu0 %v5960
        %6268 = vmatpush1.bf16.xpose.msra.mxu0 %v5959
        %6269 = vmatprep.subr.bf16.mxu0 %v5962
        %6270 = vmatpush1.bf16.xpose.msra.mxu0 %v5961
        %6271 = vmatprep.subr.bf16.mxu0 %v5964
        %6272 = vmatpush1.bf16.xpose.msra.mxu0 %v5963
        %6273 = vmatprep.subr.bf16.mxu0 %v5966
        %6274 = vmatpush1.bf16.xpose.msra.mxu0 %v5965
        %6275 = vmatprep.subr.bf16.mxu0 %v5968
        %6276 = vmatpush1.bf16.xpose.msra.mxu0 %v5967
        %6277 = vmatprep.subr.bf16.mxu0 %v5970
        %6278 = vmatpush1.bf16.xpose.msra.mxu0 %v5969
        %6279 = vmatprep.subr.bf16.mxu0 %v5972
        %6280 = vmatpush1.bf16.xpose.msra.mxu0 %v5971
        %6281 = vmatprep.subr.bf16.mxu0 %v5974
        %6282 = vmatpush1.bf16.xpose.msra.mxu0 %v5973
        %6283 = vmatprep.subr.bf16.mxu0 %v5976
        %6284 = vmatpush1.bf16.xpose.msra.mxu0 %v5975
        %6285 = vmatprep.subr.bf16.mxu0 %v5978
        %6286 = vmatpush1.bf16.xpose.msra.mxu0 %v5977
        %6287 = vmatprep.subr.bf16.mxu0 %v5980
        %6288 = vmatpush1.bf16.xpose.msra.mxu0 %v5979
        %6289 = vmatprep.mubr.bf16.mxu0 1065369472
        %6290 = vmatmul.mubr.bf16.gmra.mrb[0].mxu0 1065369472
        %v6291 = vpop.f32.mrb[0].mxu0
        %v6292 = vadd.f32 0.0, %v6291
        %v6293 = vpop.f32.mrb[0].mxu0
        %v6294 = vadd.f32 0.0, %v6293
        %v6295 = vpop.f32.mrb[0].mxu0
        %v6296 = vpop.f32.mrb[0].mxu0
        %6297 = vdwg.mxu0
        %6298 = vmatprep.subr.bf16.mxu0 %v5982
        %6299 = vmatpush1.bf16.xpose.msra.mxu0 %v5981
        %6300 = vmatprep.subr.bf16.mxu0 %v5984
        %6301 = vmatpush1.bf16.xpose.msra.mxu0 %v5983
        %6302 = vmatprep.subr.bf16.mxu0 %v5986
        %6303 = vmatpush1.bf16.xpose.msra.mxu0 %v5985
        %6304 = vmatprep.subr.bf16.mxu0 %v5988
        %6305 = vmatpush1.bf16.xpose.msra.mxu0 %v5987
        %6306 = vmatprep.subr.bf16.mxu0 %v5990
        %6307 = vmatpush1.bf16.xpose.msra.mxu0 %v5989
        %6308 = vmatprep.subr.bf16.mxu0 %v5992
        %6309 = vmatpush1.bf16.xpose.msra.mxu0 %v5991
        %6310 = vmatprep.subr.bf16.mxu0 %v5994
        %6311 = vmatpush1.bf16.xpose.msra.mxu0 %v5993
        %6312 = vmatprep.subr.bf16.mxu0 %v5996
        %6313 = vmatpush1.bf16.xpose.msra.mxu0 %v5995
        %6314 = vmatprep.subr.bf16.mxu0 %v5998
        %6315 = vmatpush1.bf16.xpose.msra.mxu0 %v5997
        %6316 = vmatprep.subr.bf16.mxu0 %v6000
        %6317 = vmatpush1.bf16.xpose.msra.mxu0 %v5999
        %6318 = vmatprep.subr.bf16.mxu0 %v6002
        %6319 = vmatpush1.bf16.xpose.msra.mxu0 %v6001
        %6320 = vmatprep.subr.bf16.mxu0 %v6004
        %6321 = vmatpush1.bf16.xpose.msra.mxu0 %v6003
        %6322 = vmatprep.subr.bf16.mxu0 %v6006
        %6323 = vmatpush1.bf16.xpose.msra.mxu0 %v6005
        %6324 = vmatprep.subr.bf16.mxu0 %v6008
        %6325 = vmatpush1.bf16.xpose.msra.mxu0 %v6007
        %6326 = vmatprep.subr.bf16.mxu0 %v6010
        %6327 = vmatpush1.bf16.xpose.msra.mxu0 %v6009
        %6328 = vmatprep.subr.bf16.mxu0 %v6012
        %6329 = vmatpush1.bf16.xpose.msra.mxu0 %v6011
        %6330 = vmatprep.mubr.bf16.mxu0 1065369472
        %6331 = vmatmul.mubr.bf16.gmra.mrb[0].mxu0 1065369472
        %v6332 = vpop.f32.mrb[0].mxu0
        %v6333 = vadd.f32 0.0, %v6332
        %v6334 = vpop.f32.mrb[0].mxu0
        %v6335 = vadd.f32 0.0, %v6334
        %v6336 = vpop.f32.mrb[0].mxu0
        %v6337 = vpop.f32.mrb[0].mxu0
        %6338 = vdwg.mxu0
        %6339 = vmatprep.subr.bf16.mxu0 %v6014
        %6340 = vmatpush1.bf16.xpose.msra.mxu0 %v6013
        %6341 = vmatprep.subr.bf16.mxu0 %v6016
        %6342 = vmatpush1.bf16.xpose.msra.mxu0 %v6015
        %6343 = vmatprep.subr.bf16.mxu0 %v6018
        %6344 = vmatpush1.bf16.xpose.msra.mxu0 %v6017
        %6345 = vmatprep.subr.bf16.mxu0 %v6020
        %6346 = vmatpush1.bf16.xpose.msra.mxu0 %v6019
        %6347 = vmatprep.subr.bf16.mxu0 %v6022
        %6348 = vmatpush1.bf16.xpose.msra.mxu0 %v6021
        %6349 = vmatprep.subr.bf16.mxu0 %v6024
        %6350 = vmatpush1.bf16.xpose.msra.mxu0 %v6023
        %6351 = vmatprep.subr.bf16.mxu0 %v6026
        %6352 = vmatpush1.bf16.xpose.msra.mxu0 %v6025
        %6353 = vmatprep.subr.bf16.mxu0 %v6028
        %6354 = vmatpush1.bf16.xpose.msra.mxu0 %v6027
        %6355 = vmatprep.subr.bf16.mxu0 %v6030
        %6356 = vmatpush1.bf16.xpose.msra.mxu0 %v6029
        %6357 = vmatprep.subr.bf16.mxu0 %v6032
        %6358 = vmatpush1.bf16.xpose.msra.mxu0 %v6031
        %6359 = vmatprep.subr.bf16.mxu0 %v6034
        %6360 = vmatpush1.bf16.xpose.msra.mxu0 %v6033
        %6361 = vmatprep.subr.bf16.mxu0 %v6036
        %6362 = vmatpush1.bf16.xpose.msra.mxu0 %v6035
        %6363 = vmatprep.subr.bf16.mxu0 %v6038
        %6364 = vmatpush1.bf16.xpose.msra.mxu0 %v6037
        %6365 = vmatprep.subr.bf16.mxu0 %v6040
        %6366 = vmatpush1.bf16.xpose.msra.mxu0 %v6039
        %6367 = vmatprep.subr.bf16.mxu0 %v6042
        %6368 = vmatpush1.bf16.xpose.msra.mxu0 %v6041
        %6369 = vmatprep.subr.bf16.mxu0 %v6044
        %6370 = vmatpush1.bf16.xpose.msra.mxu0 %v6043
        %6371 = vmatprep.mubr.bf16.mxu0 1065369472
        %6372 = vmatmul.mubr.bf16.gmra.mrb[0].mxu0 1065369472
        %v6373 = vpop.f32.mrb[0].mxu0
        %v6374 = vadd.f32 0.0, %v6373
        %v6375 = vpop.f32.mrb[0].mxu0
        %v6376 = vadd.f32 0.0, %v6375
        %v6377 = vpop.f32.mrb[0].mxu0
        %v6378 = vpop.f32.mrb[0].mxu0
        %6379 = vdwg.mxu0
        %6380 = vmatprep.subr.bf16.mxu0 %v6046
        %6381 = vmatpush1.bf16.xpose.msra.mxu0 %v6045
        %6382 = vmatprep.subr.bf16.mxu0 %v6048
        %6383 = vmatpush1.bf16.xpose.msra.mxu0 %v6047
        %6384 = vmatprep.subr.bf16.mxu0 %v6050
        %6385 = vmatpush1.bf16.xpose.msra.mxu0 %v6049
        %6386 = vmatprep.subr.bf16.mxu0 %v6052
        %6387 = vmatpush1.bf16.xpose.msra.mxu0 %v6051
        %6388 = vmatprep.subr.bf16.mxu0 %v6054
        %6389 = vmatpush1.bf16.xpose.msra.mxu0 %v6053
        %6390 = vmatprep.subr.bf16.mxu0 %v6056
        %6391 = vmatpush1.bf16.xpose.msra.mxu0 %v6055
        %6392 = vmatprep.subr.bf16.mxu0 %v6058
        %6393 = vmatpush1.bf16.xpose.msra.mxu0 %v6057
        %6394 = vmatprep.subr.bf16.mxu0 %v6060
        %6395 = vmatpush1.bf16.xpose.msra.mxu0 %v6059
        %6396 = vmatprep.subr.bf16.mxu0 %v6062
        %6397 = vmatpush1.bf16.xpose.msra.mxu0 %v6061
        %6398 = vmatprep.subr.bf16.mxu0 %v6064
        %6399 = vmatpush1.bf16.xpose.msra.mxu0 %v6063
        %6400 = vmatprep.subr.bf16.mxu0 %v6066
        %6401 = vmatpush1.bf16.xpose.msra.mxu0 %v6065
        %6402 = vmatprep.subr.bf16.mxu0 %v6068
        %6403 = vmatpush1.bf16.xpose.msra.mxu0 %v6067
        %6404 = vmatprep.subr.bf16.mxu0 %v6070
        %6405 = vmatpush1.bf16.xpose.msra.mxu0 %v6069
        %6406 = vmatprep.subr.bf16.mxu0 %v6072
        %6407 = vmatpush1.bf16.xpose.msra.mxu0 %v6071
        %6408 = vmatprep.subr.bf16.mxu0 %v6074
        %6409 = vmatpush1.bf16.xpose.msra.mxu0 %v6073
        %6410 = vmatprep.subr.bf16.mxu0 %v6076
        %6411 = vmatpush1.bf16.xpose.msra.mxu0 %v6075
        %6412 = vmatprep.mubr.bf16.mxu0 1065369472
        %6413 = vmatmul.mubr.bf16.gmra.mrb[0].mxu0 1065369472
        %v6414 = vpop.f32.mrb[0].mxu0
        %v6415 = vadd.f32 0.0, %v6414
        %v6416 = vpop.f32.mrb[0].mxu0
        %v6417 = vadd.f32 0.0, %v6416
        %v6418 = vpop.f32.mrb[0].mxu0
        %v6419 = vpop.f32.mrb[0].mxu0
        %6420 = vdwg.mxu0
        %v6421 = vrcp.pop %v6292
        %v6422 = vrcp.pop %v6294
        %v6423 = vrcp.pop %v6333
        %v6424 = vrcp.pop %v6335
        %v6425 = vrcp.pop %v6374
        %v6426 = vrcp.pop %v6376
        %v6427 = vrcp.pop %v6415
        %v6428 = vrcp.pop %v6417
        %v6429 = vlaneseq
        %v6430 = vshrl.u32 %v6429, 7
        %v6431 = vsub.s32 0, %v6430
        %v6432 = vrot.slane %v6421, %v6431
        %v6433 = vlaneseq
        %v6434 = vshrl.u32 %v6433, 7
        %v6435 = vsub.s32 0, %v6434
        %v6436 = vrot.slane %v6422, %v6435
        %v6437 = vlaneseq
        %v6438 = vshrl.u32 %v6437, 7
        %v6439 = vsub.s32 0, %v6438
        %v6440 = vrot.slane %v6423, %v6439
        %v6441 = vlaneseq
        %v6442 = vshrl.u32 %v6441, 7
        %v6443 = vsub.s32 0, %v6442
        %v6444 = vrot.slane %v6424, %v6443
        %v6445 = vlaneseq
        %v6446 = vshrl.u32 %v6445, 7
        %v6447 = vsub.s32 0, %v6446
        %v6448 = vrot.slane %v6425, %v6447
        %v6449 = vlaneseq
        %v6450 = vshrl.u32 %v6449, 7
        %v6451 = vsub.s32 0, %v6450
        %v6452 = vrot.slane %v6426, %v6451
        %v6453 = vlaneseq
        %v6454 = vshrl.u32 %v6453, 7
        %v6455 = vsub.s32 0, %v6454
        %v6456 = vrot.slane %v6427, %v6455
        %v6457 = vlaneseq
        %v6458 = vshrl.u32 %v6457, 7
        %v6459 = vsub.s32 0, %v6458
        %v6460 = vrot.slane %v6428, %v6459
        %v6461 = vmul.f32 %v6116, %v6432
        %v6462 = vmul.f32 %v6118, %v6436
        %v6463 = vmul.f32 %v6161, %v6440
        %v6464 = vmul.f32 %v6163, %v6444
        %v6465 = vmul.f32 %v6206, %v6448
        %v6466 = vmul.f32 %v6208, %v6452
        %v6467 = vmul.f32 %v6251, %v6456
        %v6468 = vmul.f32 %v6253, %v6460
        %v6469 = vpack.c.bf16 %v6463, %v6461
        %v6470 = vpack.c.bf16 %v6464, %v6462
        %v6471 = vpack.c.bf16 %v6467, %v6465
        %v6472 = vpack.c.bf16 %v6468, %v6466
        %6473 = vmatprep.subr.bf16.mxu0 %v6470
        %6474 = vmatpush1.bf16.msra.mxu0 %v6469
        %6475 = vmatprep.subr.bf16.mxu0 %v6472
        %6476 = vmatpush1.bf16.msra.mxu0 %v6471
        %6477 = vmatprep.subr.bf16.mxu0 0
        %6478 = vmatpush1.bf16.msra.mxu0 0
        %6479 = vmatprep.subr.bf16.mxu0 0
        %6480 = vmatpush1.bf16.msra.mxu0 0
        %6481 = vmatprep.subr.bf16.mxu0 0
        %6482 = vmatpush1.bf16.msra.mxu0 0
        %6483 = vmatprep.subr.bf16.mxu0 0
        %6484 = vmatpush1.bf16.msra.mxu0 0
        %6485 = vmatprep.subr.bf16.mxu0 0
        %6486 = vmatpush1.bf16.msra.mxu0 0
        %6487 = vmatprep.subr.bf16.mxu0 0
        %6488 = vmatpush1.bf16.msra.mxu0 0
        %6489 = vmatprep.subr.bf16.mxu0 0
        %6490 = vmatpush1.bf16.msra.mxu0 0
        %6491 = vmatprep.subr.bf16.mxu0 0
        %6492 = vmatpush1.bf16.msra.mxu0 0
        %6493 = vmatprep.subr.bf16.mxu0 0
        %6494 = vmatpush1.bf16.msra.mxu0 0
        %6495 = vmatprep.subr.bf16.mxu0 0
        %6496 = vmatpush1.bf16.msra.mxu0 0
        %6497 = vmatprep.subr.bf16.mxu0 0
        %6498 = vmatpush1.bf16.msra.mxu0 0
        %6499 = vmatprep.subr.bf16.mxu0 0
        %6500 = vmatpush1.bf16.msra.mxu0 0
        %6501 = vmatprep.subr.bf16.mxu0 0
        %6502 = vmatpush1.bf16.msra.mxu0 0
        %6503 = vmatprep.subr.bf16.mxu0 0
        %6504 = vmatpush1.bf16.msra.mxu0 0
        %6505 = vmatprep.mubr.bf16.mxu0 0
        %6506 = vmatmul.mubr.bf16.gmra.mrb[0].mxu0 %v3420
        %v6507 = vpop.f32.mrb[0].mxu0
        %v6508 = vadd.f32 %v3392, %v6507
        %v6509 = vpop.f32.mrb[0].mxu0
        %v6510 = vadd.f32 %v3392, %v6509
        %v6511 = vpop.f32.mrb[0].mxu0
        %v6512 = vadd.f32 %v3397, %v6511
        %v6513 = vpop.f32.mrb[0].mxu0
        %v6514 = vadd.f32 %v3397, %v6513
        %6515 = vmatprep.mubr.bf16.mxu0 0
        %6516 = vmatmul.mubr.bf16.gmra.mrb[0].mxu0 %v3423
        %v6517 = vpop.f32.mrb[0].mxu0
        %v6518 = vadd.f32 %v3402, %v6517
        %v6519 = vpop.f32.mrb[0].mxu0
        %v6520 = vadd.f32 %v3402, %v6519
        %v6521 = vpop.f32.mrb[0].mxu0
        %v6522 = vadd.f32 %v3407, %v6521
        %v6523 = vpop.f32.mrb[0].mxu0
        %v6524 = vadd.f32 %v3407, %v6523
        %6525 = vdwg.mxu0
        %v6526 = vmul.f32 %v3478, %v6508
        %v6527 = vmul.f32 %v3478, %v6510
        %v6528 = vmul.f32 %v3478, %v6512
        %v6529 = vmul.f32 %v3478, %v6514
        %v6530 = vmul.f32 %v3478, %v6518
        %v6531 = vmul.f32 %v3478, %v6520
        %v6532 = vmul.f32 %v3478, %v6522
        %v6533 = vmul.f32 %v3478, %v6524
        %v6534 = vadd.f32 %v6526, %v3504
        %v6535 = vadd.f32 %v6527, %v3505
        %v6536 = vadd.f32 %v6528, %v3506
        %v6537 = vadd.f32 %v6529, %v3507
        %v6538 = vadd.f32 %v6530, %v3508
        %v6539 = vadd.f32 %v6531, %v3509
        %v6540 = vadd.f32 %v6532, %v3510
        %v6541 = vadd.f32 %v6533, %v3511
        %s6542 = scalar_lea.vmem %s271, 64 [#allocation6]
        %6543 = vst [vmem:[%s6542] sm:$0xff] %v6534
        %6544 = vst [vmem:[%s6542 + $0x8] sm:$0xff] %v6535
        %6545 = vst [vmem:[%s6542 + $0x10] sm:$0xff] %v6536
        %6546 = vst [vmem:[%s6542 + $0x18] sm:$0xff] %v6537
        %6547 = vst [vmem:[%s6542 + $0x20] sm:$0xff] %v6538
        %6548 = vst [vmem:[%s6542 + $0x28] sm:$0xff] %v6539
        %6549 = vst [vmem:[%s6542 + $0x30] sm:$0xff] %v6540
        %6550 = vst [vmem:[%s6542 + $0x38] sm:$0xff] %v6541
        %s6551 = sand.u32 %s163, 1
        %s6552 = scalar_lea.sflag [#allocation5], %s6551
        %s6553 = sand.u32 %s163, 1
        %s6554 = smul.addr %s6553, 128
        %s6555 = scalar_lea.vmem [#allocation6], %s6554
        // Predicated region
        $region49: #{tpu_custom_call.1} parent=43 // pred_check
          %p6556 = pneg %p173
        $region50: #{tpu_custom_call.1} parent=43 // pred_check_branch
          %6558 = sbr.rel (%p6556) target = $region52
        $region51: #{tpu_custom_call.1} parent=43 // pred_region
          %s6559 = smul.u32 2, %s24
          %s6561 = ssub.s32 2048, 2048
          %6562 = vsyncadd %s6552, %s6561
          %s6563 = smul.addr %s6559, 8
          %s6564 = smul.addr %s6563, 128
          %s6565 = scalar_lea.hbm %s6, %s6564
          %s6566 = sshll.u32 %s6555, 4
          %s6567 = int_to_ptr.vmem [resolvable:$true] %s6566
          %6572 = dma.vmem_to_hbm [thread:$0]  %s6567, 2048, %s6565, %s6552, 256, 256, 16
        $region52: #{tpu_custom_call.1} parent=43 // pred_fallthru
          _
      $region44: #{tpu_custom_call.1} parent=5 // pred_fallthru
        _
      %p6573 = scmp.le.s32.totalorder 2, %s19
      // Predicated region
      $region53: #{tpu_custom_call.1} parent=5 // pred_check
        %p6574 = pneg %p6573
      $region54: #{tpu_custom_call.1} parent=5 // pred_check_branch
        %6576 = sbr.rel (%p6574) target = $region56
      $region55: #{tpu_custom_call.1} parent=5 // pred_region
        %s6577 = ssub.s32 %s19, 2
        // Predicated region
        $region57: #{tpu_custom_call.1} parent=55 // pred_check
          %p6578 = pneg %p179
        $region58: #{tpu_custom_call.1} parent=55 // pred_check_branch
          %6580 = sbr.rel (%p6578) target = $region60
        $region59: #{tpu_custom_call.1} parent=55 // pred_region
          %s6581 = sand.u32 %s164, 1
          %s6582 = scalar_lea.sflag [#allocation5], %s6581
          %s6583 = sand.u32 %s164, 1
          %s6584 = smul.addr %s6583, 128
          %s6585 = scalar_lea.vmem [#allocation6], %s6584
          %6586 = dma.done %s6582, 2048
        $region60: #{tpu_custom_call.1} parent=55 // pred_fallthru
          _
      $region56: #{tpu_custom_call.1} parent=5 // pred_fallthru
        _
    $region6: #{tpu_custom_call.1} parent=1 // loop_footer
      %s23 = sadd.s32 1, %s19
    $region7: #{tpu_custom_call.1} parent=1 // loop_footer_branch
      %18 = sbr.rel target = $region3
    $region8: #{tpu_custom_call.1} parent=1 // loop_exit
      _
    %6587 = vsyncpa [#allocation4], 1
    %s6588 = scalar_lea.sflag [#allocation4], 1
    %6589 = vsyncpa %s6588, 1
    %6590 = vsyncpa [#allocation5], 1
    %s6591 = scalar_lea.sflag [#allocation5], 1
    %6592 = vsyncpa %s6591, 1

</llo_original>
